<compile_context>
chip_gen: v5e
topology: v5e:2x2
jax: 0.10.0
libtpu: 0.0.40
codegen_flags: <defaults>
</compile_context>

<pallas_src>
import jax
import jax.numpy as jnp
from jax.experimental import pallas as pl
from jax.experimental.pallas import tpu as pltpu


# ---------------------------------------------------------------------------
# Configuration (small shapes consistent with the module)
# ---------------------------------------------------------------------------
T_SEQ = 8            # word sequence length  (text.shape[0])
BATCH = 2            # batch size            (text.shape[1])
CHAR_LEN = 6         # characters per word   (chars.shape[0])
CHAR_VOCAB = 50      # char_rnn_input_dim
CHAR_EMB = 16        # char_rnn_embedding_dim
CHAR_HID = 16        # char_rnn_hidden_dim   (bidirectional -> char_rnn_output_dim = 32)
HIDDEN = 32          # hidden_dim            (main LSTM)
N_LAYERS = 2         # n_layers              (main LSTM, bidirectional)
OUT_DIM = 10         # output_dim
OUT_PAD = 128        # lane-dense fc output width; real OUT_DIM columns sliced outside


# ---------------------------------------------------------------------------
# Fused Pallas kernel (whole network, single invocation, all VMEM-resident)
# ---------------------------------------------------------------------------
def _make_fused_call(T, B, Lc, TB, Ec, Hc, H, vocab, out_pad, n_operands):
    """Build the single fused pallas_call for the whole forward pass."""

    def kernel(chars_ref, emb_ref,                        # (Lc*TB,1) int32, (vocab,Ec)
               cwih_f_ref, cwhh_f_ref, cb_f_ref,          # char fwd  (Ec,4Hc),(Hc,4Hc),(1,4Hc)
               cwih_b_ref, cwhh_b_ref, cb_b_ref,          # char bwd
               w0ih_f_ref, w0hh_f_ref, b0_f_ref,          # main L0 fwd (2Hc,4H),(H,4H),(1,4H)
               w0ih_b_ref, w0hh_b_ref, b0_b_ref,          # main L0 bwd
               w1ih_f_ref, w1hh_f_ref, b1_f_ref,          # main L1 fwd (2H,4H),(H,4H),(1,4H)
               w1ih_b_ref, w1hh_b_ref, b1_b_ref,          # main L1 bwd
               fcw_ref, fcb_ref,                          # fc (2H,out_pad),(1,out_pad)
               out_ref,                                   # (TB, out_pad)
               s0_ref, s1_ref):                           # VMEM scratch (TB, 2H) each
        f32 = jnp.float32

        # --- char embedding gather via one-hot matmul (no dynamic gather, MXU) ---
        ids = chars_ref[...]                                              # (Lc*TB, 1)
        vocab_iota = jax.lax.broadcasted_iota(jnp.int32, (Lc * TB, vocab), 1)
        onehot = (ids == vocab_iota).astype(f32)                          # (Lc*TB, vocab)
        ce = jnp.dot(onehot, emb_ref[...], preferred_element_type=f32)    # (Lc*TB, Ec)

        def step(x_proj, h, c, whh, hd):
            # Recurrent-only matmul: gates = x_proj (precomputed) + h @ W_hh.
            gates = x_proj + jnp.dot(h, whh, preferred_element_type=f32)
            sg = jax.nn.sigmoid(gates)     # one EUP pass over full 4H gates
            tg = jnp.tanh(gates)           # one EUP pass over full 4H gates
            i = sg[:, 0 * hd:1 * hd]       # PyTorch gate order: i, f, g, o
            f = sg[:, 1 * hd:2 * hd]
            g = tg[:, 2 * hd:3 * hd]
            o = sg[:, 3 * hd:4 * hd]
            c_new = f * c + i * g
            h_new = o * jnp.tanh(c_new)
            return h_new, c_new

        # --- char BiLSTM: only output[0] is consumed downstream -------------
        # fwd direction needs exactly ONE step (its hidden at t=0, zero init);
        # bwd direction needs only its FINAL hidden (reverse pass ends at t=0).
        zc = jnp.zeros((TB, Hc), f32)
        xp_cf0 = (jnp.dot(ce[0:TB, :], cwih_f_ref[...],
                          preferred_element_type=f32) + cb_f_ref[...])
        h_cf, _ = step(xp_cf0, zc, zc, cwhh_f_ref[...], Hc)

        xp_cb = (jnp.dot(ce, cwih_b_ref[...],                              # (Lc*TB, 4Hc)
                         preferred_element_type=f32) + cb_b_ref[...])
        whh_cb = cwhh_b_ref[...]                                           # hoisted
        h_cb, c_cb = zc, zc
        for t in range(Lc - 1, -1, -1):
            h_cb, c_cb = step(xp_cb[t * TB:(t + 1) * TB, :], h_cb, c_cb, whh_cb, Hc)

        embedded = jnp.concatenate([h_cf, h_cb], axis=-1)                  # (TB, 2*Hc)

        # --- main stacked BiLSTM; fwd & bwd interleaved; outputs -> scratch --
        def bilstm(x_in, wih_f_ref, whh_f_ref, b_f_ref,
                   wih_b_ref, whh_b_ref, b_b_ref, out_scratch):
            # Hoisted, pipelined input projections (bias folded in).
            xp_f = (jnp.dot(x_in, wih_f_ref[...],
                            preferred_element_type=f32) + b_f_ref[...])    # (TB, 4H)
            xp_b = (jnp.dot(x_in, wih_b_ref[...],
                            preferred_element_type=f32) + b_b_ref[...])    # (TB, 4H)
            whh_f = whh_f_ref[...]                                         # hoisted (H,4H)
            whh_b = whh_b_ref[...]
            zh = jnp.zeros((B, H), f32)
            h_f, c_f, h_b, c_b = zh, zh, zh, zh
            for s in range(T):
                h_f, c_f = step(xp_f[s * B:(s + 1) * B, :], h_f, c_f, whh_f, H)
                h_b, c_b = step(xp_b[(T - 1 - s) * B:(T - s) * B, :], h_b, c_b, whh_b, H)
                out_scratch[s * B:(s + 1) * B, 0:H] = h_f
                out_scratch[(T - 1 - s) * B:(T - s) * B, H:2 * H] = h_b

        # embedded.view(T, B, -1) == word-major row blocks of the (TB, 2Hc) slab
        bilstm(embedded, w0ih_f_ref, w0hh_f_ref, b0_f_ref,
               w0ih_b_ref, w0hh_b_ref, b0_b_ref, s0_ref)
        bilstm(s0_ref[...], w1ih_f_ref, w1hh_f_ref, b1_f_ref,
               w1ih_b_ref, w1hh_b_ref, b1_b_ref, s1_ref)

        # --- fc epilogue; lane-dense (out_pad = 128) output slab -------------
        out_ref[...] = (jnp.dot(s1_ref[...], fcw_ref[...],
                                preferred_element_type=f32) + fcb_ref[...])

    # No grid: single invocation, every operand placed whole in VMEM.
    vmem = pltpu.MemorySpace.VMEM
    return pl.pallas_call(
        kernel,
        out_shape=jax.ShapeDtypeStruct((TB, out_pad), jnp.float32),
        in_specs=[pl.BlockSpec(memory_space=vmem)] * n_operands,
        out_specs=pl.BlockSpec(memory_space=vmem),
        scratch_shapes=[pltpu.VMEM((TB, 2 * H), jnp.float32),
                        pltpu.VMEM((TB, 2 * H), jnp.float32)],
    )


# ---------------------------------------------------------------------------
# Parameters + forward
# ---------------------------------------------------------------------------
def init_params(key):
    keys = iter(jax.random.split(key, 64))

    def p(shape, scale=0.1):
        return scale * jax.random.normal(next(keys), shape, dtype=jnp.float32)

    def lstm_dir(d_in, h):
        # Split weights (cuDNN-style): W_ih (d_in,4h), W_hh (h,4h); b = b_ih + b_hh.
        return {"wih": p((d_in, 4 * h)), "whh": p((h, 4 * h)), "b": p((1, 4 * h))}

    fc_w = p((2 * HIDDEN, OUT_DIM))
    fc_b = p((1, OUT_DIM))
    params = {
        "char_emb": p((CHAR_VOCAB, CHAR_EMB)),
        "char_fwd": lstm_dir(CHAR_EMB, CHAR_HID),
        "char_bwd": lstm_dir(CHAR_EMB, CHAR_HID),
        "lstm": [],
        "fc_w": fc_w,
        "fc_b": fc_b,
        # Pad fc ONCE here to the lane-dense 128-wide slab (not per forward call).
        "fc_w_pad": jnp.pad(fc_w, ((0, 0), (0, OUT_PAD - OUT_DIM))),
        "fc_b_pad": jnp.pad(fc_b, ((0, 0), (0, OUT_PAD - OUT_DIM))),
    }
    for layer in range(N_LAYERS):
        d_in = 2 * CHAR_HID if layer == 0 else 2 * HIDDEN
        params["lstm"].append((lstm_dir(d_in, HIDDEN), lstm_dir(d_in, HIDDEN)))
    return params


def forward(params, text, chars):
    """text: (T, B) int32; chars: (CHAR_LEN, T*B) int32 (word-major). -> (T, B, OUT_DIM)."""
    T, B = text.shape            # text is used only for its shape (as in the module)
    Lc, TB = chars.shape

    chars_flat = chars.reshape(Lc * TB, 1).astype(jnp.int32)   # row-major: (l, word)

    cf, cb = params["char_fwd"], params["char_bwd"]
    (l0f, l0b), (l1f, l1b) = params["lstm"]
    operands = (
        chars_flat, params["char_emb"],
        cf["wih"], cf["whh"], cf["b"],
        cb["wih"], cb["whh"], cb["b"],
        l0f["wih"], l0f["whh"], l0f["b"],
        l0b["wih"], l0b["whh"], l0b["b"],
        l1f["wih"], l1f["whh"], l1f["b"],
        l1b["wih"], l1b["whh"], l1b["b"],
        params["fc_w_pad"], params["fc_b_pad"],
    )
    fused = _make_fused_call(T, B, Lc, TB, CHAR_EMB, CHAR_HID, HIDDEN,
                             CHAR_VOCAB, OUT_PAD, len(operands))
    out = fused(*operands)                                      # (TB, OUT_PAD)
    return out[:, :OUT_DIM].reshape(T, B, OUT_DIM)


# ---------------------------------------------------------------------------
# Pure-JAX reference (mirrors the PyTorch module in eval mode) for validation
# ---------------------------------------------------------------------------
def reference_forward(params, text, chars):
    T, B = text.shape
    ce = params["char_emb"][chars]                              # (Lc, TB, Ec)

    def lstm_step(x, h, c, d, hd):
        gates = x @ d["wih"] + h @ d["whh"] + d["b"]
        i = jax.nn.sigmoid(gates[:, :hd])
        f = jax.nn.sigmoid(gates[:, hd:2 * hd])
        g = jnp.tanh(gates[:, 2 * hd:3 * hd])
        o = jax.nn.sigmoid(gates[:, 3 * hd:])
        c = f * c + i * g
        return o * jnp.tanh(c), c

    def run_dir(xs, d, hd, reverse):
        L, N = xs.shape[0], xs.shape[1]
        h = jnp.zeros((N, hd), jnp.float32)
        c = jnp.zeros((N, hd), jnp.float32)
        outs = [None] * L
        order = range(L - 1, -1, -1) if reverse else range(L)
        for t in order:
            h, c = lstm_step(xs[t], h, c, d, hd)
            outs[t] = h
        return jnp.stack(outs)                                  # (L, N, hd)

    cfo = run_dir(ce, params["char_fwd"], CHAR_HID, False)
    cbo = run_dir(ce, params["char_bwd"], CHAR_HID, True)
    char_out = jnp.concatenate([cfo, cbo], axis=-1)[0]          # output[0]: (TB, 2Hc)
    x = char_out.reshape(T, B, 2 * CHAR_HID)

    for layer in range(N_LAYERS):
        pf, pb = params["lstm"][layer]
        of = run_dir(x, pf, HIDDEN, False)
        ob = run_dir(x, pb, HIDDEN, True)
        x = jnp.concatenate([of, ob], axis=-1)                  # (T, B, 2H)

    return jnp.einsum("tbh,ho->tbo", x, params["fc_w"]) + params["fc_b"][0]


# TODO(synk): bpe path and lang-embedding path are structurally identical to the
# char path and are disabled here (bpe_*_dim = 0, lang_idx = None), matching the
# module defaults that keep them off; Dropout is identity in eval mode.
# TODO(synk): block-diagonal fwd/bwd recurrent-matmul fusion (one MXU push per
# step for both directions) and a v7x 2-TensorCore direction split via
# pl.core_map are left out; both are modest gains at B=2 and gated on measurement.


if __name__ == "__main__":
    key = jax.random.PRNGKey(0)
    k_param, k_text, k_chars = jax.random.split(key, 3)

    params = init_params(k_param)
    text = jax.random.randint(k_text, (T_SEQ, BATCH), 0, 100, dtype=jnp.int32)
    chars = jax.random.randint(k_chars, (CHAR_LEN, T_SEQ * BATCH), 0, CHAR_VOCAB,
                               dtype=jnp.int32)

    preds = jax.jit(forward)(params, text, chars)
    preds = jax.block_until_ready(preds)

    assert preds.shape == (T_SEQ, BATCH, OUT_DIM), preds.shape
    assert preds.dtype == jnp.float32
    assert bool(jnp.all(jnp.isfinite(preds)))

    # Correctness check vs. pure-JAX reference (loose tol: MXU matmul precision).
    ref = reference_forward(params, text, chars)
    max_err = float(jnp.max(jnp.abs(preds - ref)))
    assert max_err < 5e-2, f"kernel/reference mismatch, max abs err = {max_err}"

    print("KERNEL_OK")
</pallas_src>

<mosaic_0001>
module attributes {stable_mosaic.version = 11 : i64} {
  func.func @kernel(%arg0: memref<96x1xi32, #tpu.memory_space<vmem>>, %arg1: memref<50x16xf32, #tpu.memory_space<vmem>>, %arg2: memref<16x64xf32, #tpu.memory_space<vmem>>, %arg3: memref<16x64xf32, #tpu.memory_space<vmem>>, %arg4: memref<1x64xf32, #tpu.memory_space<vmem>>, %arg5: memref<16x64xf32, #tpu.memory_space<vmem>>, %arg6: memref<16x64xf32, #tpu.memory_space<vmem>>, %arg7: memref<1x64xf32, #tpu.memory_space<vmem>>, %arg8: memref<32x128xf32, #tpu.memory_space<vmem>>, %arg9: memref<32x128xf32, #tpu.memory_space<vmem>>, %arg10: memref<1x128xf32, #tpu.memory_space<vmem>>, %arg11: memref<32x128xf32, #tpu.memory_space<vmem>>, %arg12: memref<32x128xf32, #tpu.memory_space<vmem>>, %arg13: memref<1x128xf32, #tpu.memory_space<vmem>>, %arg14: memref<64x128xf32, #tpu.memory_space<vmem>>, %arg15: memref<32x128xf32, #tpu.memory_space<vmem>>, %arg16: memref<1x128xf32, #tpu.memory_space<vmem>>, %arg17: memref<64x128xf32, #tpu.memory_space<vmem>>, %arg18: memref<32x128xf32, #tpu.memory_space<vmem>>, %arg19: memref<1x128xf32, #tpu.memory_space<vmem>>, %arg20: memref<64x128xf32, #tpu.memory_space<vmem>>, %arg21: memref<1x128xf32, #tpu.memory_space<vmem>>, %arg22: memref<16x128xf32, #tpu.memory_space<vmem>>, %arg23: memref<16x64xf32, #tpu.memory_space<vmem>>, %arg24: memref<16x64xf32, #tpu.memory_space<vmem>>) attributes {dimension_semantics = [], scalar_prefetch = 0 : i64, scratch_operands = 2 : i64, tpu.core_type = #tpu.core_type<tc>} {
    %c0 = arith.constant 0 : index
    %c0_0 = arith.constant 0 : index
    %0 = vector.load %arg0[%c0, %c0_0] : memref<96x1xi32, #tpu.memory_space<vmem>>, vector<96x1xi32>
    %1 = tpu.iota {dimensions = array<i32: 1>} : vector<96x50xi32>
    %2 = vector.broadcast %0 : vector<96x1xi32> to vector<96x50xi32>
    %3 = arith.cmpi eq, %2, %1 : vector<96x50xi32>
    %4 = arith.extui %3 : vector<96x50xi1> to vector<96x50xi32>
    %5 = arith.sitofp %4 : vector<96x50xi32> to vector<96x50xf32>
    %c0_1 = arith.constant 0 : index
    %c0_2 = arith.constant 0 : index
    %6 = vector.load %arg1[%c0_1, %c0_2] : memref<50x16xf32, #tpu.memory_space<vmem>>, vector<50x16xf32>
    %cst = arith.constant dense<0.000000e+00> : vector<96x16xf32>
    %7 = tpu.matmul %5, %6, %cst {dimension_numbers = #tpu.dot_dimension_numbers<[1], [0], [0], [1], [0, 0, 1, 1], [], []>} : vector<96x50xf32>, vector<50x16xf32>, vector<96x16xf32> -> vector<96x16xf32>
    %cst_3 = arith.constant 0.000000e+00 : f32
    %8 = vector.broadcast %cst_3 : f32 to vector<16x16xf32>
    %9 = vector.extract_strided_slice %7 {offsets = [0, 0], sizes = [16, 16], strides = [1, 1]} : vector<96x16xf32> to vector<16x16xf32>
    %c0_4 = arith.constant 0 : index
    %c0_5 = arith.constant 0 : index
    %10 = vector.load %arg2[%c0_4, %c0_5] : memref<16x64xf32, #tpu.memory_space<vmem>>, vector<16x64xf32>
    %cst_6 = arith.constant dense<0.000000e+00> : vector<16x64xf32>
    %11 = tpu.matmul %9, %10, %cst_6 {dimension_numbers = #tpu.dot_dimension_numbers<[1], [0], [0], [1], [0, 0, 1, 1], [], []>} : vector<16x16xf32>, vector<16x64xf32>, vector<16x64xf32> -> vector<16x64xf32>
    %c0_7 = arith.constant 0 : index
    %c0_8 = arith.constant 0 : index
    %12 = vector.load %arg4[%c0_7, %c0_8] : memref<1x64xf32, #tpu.memory_space<vmem>>, vector<1x64xf32>
    %13 = vector.broadcast %12 : vector<1x64xf32> to vector<16x64xf32>
    %14 = arith.addf %11, %13 : vector<16x64xf32>
    %c0_9 = arith.constant 0 : index
    %c0_10 = arith.constant 0 : index
    %15 = vector.load %arg3[%c0_9, %c0_10] : memref<16x64xf32, #tpu.memory_space<vmem>>, vector<16x64xf32>
    %cst_11 = arith.constant dense<0.000000e+00> : vector<16x64xf32>
    %16 = tpu.matmul %8, %15, %cst_11 {dimension_numbers = #tpu.dot_dimension_numbers<[1], [0], [0], [1], [0, 0, 1, 1], [], []>} : vector<16x16xf32>, vector<16x64xf32>, vector<16x64xf32> -> vector<16x64xf32>
    %17 = arith.addf %14, %16 : vector<16x64xf32>
    %18 = arith.negf %17 : vector<16x64xf32>
    %19 = math.exp %18 : vector<16x64xf32>
    %cst_12 = arith.constant 1.000000e+00 : f32
    %20 = vector.broadcast %cst_12 : f32 to vector<16x64xf32>
    %21 = arith.addf %20, %19 : vector<16x64xf32>
    %22 = arith.divf %20, %21 : vector<16x64xf32>
    %23 = math.tanh %17 : vector<16x64xf32>
    %24 = vector.extract_strided_slice %22 {offsets = [0, 0], sizes = [16, 16], strides = [1, 1]} : vector<16x64xf32> to vector<16x16xf32>
    %25 = vector.extract_strided_slice %22 {offsets = [0, 16], sizes = [16, 16], strides = [1, 1]} : vector<16x64xf32> to vector<16x16xf32>
    %26 = vector.extract_strided_slice %23 {offsets = [0, 32], sizes = [16, 16], strides = [1, 1]} : vector<16x64xf32> to vector<16x16xf32>
    %27 = vector.extract_strided_slice %22 {offsets = [0, 48], sizes = [16, 16], strides = [1, 1]} : vector<16x64xf32> to vector<16x16xf32>
    %28 = arith.mulf %25, %8 : vector<16x16xf32>
    %29 = arith.mulf %24, %26 : vector<16x16xf32>
    %30 = arith.addf %28, %29 : vector<16x16xf32>
    %31 = math.tanh %30 : vector<16x16xf32>
    %32 = arith.mulf %27, %31 : vector<16x16xf32>
    %c0_13 = arith.constant 0 : index
    %c0_14 = arith.constant 0 : index
    %33 = vector.load %arg5[%c0_13, %c0_14] : memref<16x64xf32, #tpu.memory_space<vmem>>, vector<16x64xf32>
    %cst_15 = arith.constant dense<0.000000e+00> : vector<96x64xf32>
    %34 = tpu.matmul %7, %33, %cst_15 {dimension_numbers = #tpu.dot_dimension_numbers<[1], [0], [0], [1], [0, 0, 1, 1], [], []>} : vector<96x16xf32>, vector<16x64xf32>, vector<96x64xf32> -> vector<96x64xf32>
    %c0_16 = arith.constant 0 : index
    %c0_17 = arith.constant 0 : index
    %35 = vector.load %arg7[%c0_16, %c0_17] : memref<1x64xf32, #tpu.memory_space<vmem>>, vector<1x64xf32>
    %36 = vector.broadcast %35 : vector<1x64xf32> to vector<96x64xf32>
    %37 = arith.addf %34, %36 : vector<96x64xf32>
    %c0_18 = arith.constant 0 : index
    %c0_19 = arith.constant 0 : index
    %38 = vector.load %arg6[%c0_18, %c0_19] : memref<16x64xf32, #tpu.memory_space<vmem>>, vector<16x64xf32>
    %39 = vector.extract_strided_slice %37 {offsets = [80, 0], sizes = [16, 64], strides = [1, 1]} : vector<96x64xf32> to vector<16x64xf32>
    %cst_20 = arith.constant dense<0.000000e+00> : vector<16x64xf32>
    %40 = tpu.matmul %8, %38, %cst_20 {dimension_numbers = #tpu.dot_dimension_numbers<[1], [0], [0], [1], [0, 0, 1, 1], [], []>} : vector<16x16xf32>, vector<16x64xf32>, vector<16x64xf32> -> vector<16x64xf32>
    %41 = arith.addf %39, %40 : vector<16x64xf32>
    %42 = arith.negf %41 : vector<16x64xf32>
    %43 = math.exp %42 : vector<16x64xf32>
    %cst_21 = arith.constant 1.000000e+00 : f32
    %44 = vector.broadcast %cst_21 : f32 to vector<16x64xf32>
    %45 = arith.addf %44, %43 : vector<16x64xf32>
    %46 = arith.divf %44, %45 : vector<16x64xf32>
    %47 = math.tanh %41 : vector<16x64xf32>
    %48 = vector.extract_strided_slice %46 {offsets = [0, 0], sizes = [16, 16], strides = [1, 1]} : vector<16x64xf32> to vector<16x16xf32>
    %49 = vector.extract_strided_slice %46 {offsets = [0, 16], sizes = [16, 16], strides = [1, 1]} : vector<16x64xf32> to vector<16x16xf32>
    %50 = vector.extract_strided_slice %47 {offsets = [0, 32], sizes = [16, 16], strides = [1, 1]} : vector<16x64xf32> to vector<16x16xf32>
    %51 = vector.extract_strided_slice %46 {offsets = [0, 48], sizes = [16, 16], strides = [1, 1]} : vector<16x64xf32> to vector<16x16xf32>
    %52 = arith.mulf %49, %8 : vector<16x16xf32>
    %53 = arith.mulf %48, %50 : vector<16x16xf32>
    %54 = arith.addf %52, %53 : vector<16x16xf32>
    %55 = math.tanh %54 : vector<16x16xf32>
    %56 = arith.mulf %51, %55 : vector<16x16xf32>
    %57 = vector.extract_strided_slice %37 {offsets = [64, 0], sizes = [16, 64], strides = [1, 1]} : vector<96x64xf32> to vector<16x64xf32>
    %cst_22 = arith.constant dense<0.000000e+00> : vector<16x64xf32>
    %58 = tpu.matmul %56, %38, %cst_22 {dimension_numbers = #tpu.dot_dimension_numbers<[1], [0], [0], [1], [0, 0, 1, 1], [], []>} : vector<16x16xf32>, vector<16x64xf32>, vector<16x64xf32> -> vector<16x64xf32>
    %59 = arith.addf %57, %58 : vector<16x64xf32>
    %60 = arith.negf %59 : vector<16x64xf32>
    %61 = math.exp %60 : vector<16x64xf32>
    %cst_23 = arith.constant 1.000000e+00 : f32
    %62 = vector.broadcast %cst_23 : f32 to vector<16x64xf32>
    %63 = arith.addf %62, %61 : vector<16x64xf32>
    %64 = arith.divf %62, %63 : vector<16x64xf32>
    %65 = math.tanh %59 : vector<16x64xf32>
    %66 = vector.extract_strided_slice %64 {offsets = [0, 0], sizes = [16, 16], strides = [1, 1]} : vector<16x64xf32> to vector<16x16xf32>
    %67 = vector.extract_strided_slice %64 {offsets = [0, 16], sizes = [16, 16], strides = [1, 1]} : vector<16x64xf32> to vector<16x16xf32>
    %68 = vector.extract_strided_slice %65 {offsets = [0, 32], sizes = [16, 16], strides = [1, 1]} : vector<16x64xf32> to vector<16x16xf32>
    %69 = vector.extract_strided_slice %64 {offsets = [0, 48], sizes = [16, 16], strides = [1, 1]} : vector<16x64xf32> to vector<16x16xf32>
    %70 = arith.mulf %67, %54 : vector<16x16xf32>
    %71 = arith.mulf %66, %68 : vector<16x16xf32>
    %72 = arith.addf %70, %71 : vector<16x16xf32>
    %73 = math.tanh %72 : vector<16x16xf32>
    %74 = arith.mulf %69, %73 : vector<16x16xf32>
    %75 = vector.extract_strided_slice %37 {offsets = [48, 0], sizes = [16, 64], strides = [1, 1]} : vector<96x64xf32> to vector<16x64xf32>
    %cst_24 = arith.constant dense<0.000000e+00> : vector<16x64xf32>
    %76 = tpu.matmul %74, %38, %cst_24 {dimension_numbers = #tpu.dot_dimension_numbers<[1], [0], [0], [1], [0, 0, 1, 1], [], []>} : vector<16x16xf32>, vector<16x64xf32>, vector<16x64xf32> -> vector<16x64xf32>
    %77 = arith.addf %75, %76 : vector<16x64xf32>
    %78 = arith.negf %77 : vector<16x64xf32>
    %79 = math.exp %78 : vector<16x64xf32>
    %cst_25 = arith.constant 1.000000e+00 : f32
    %80 = vector.broadcast %cst_25 : f32 to vector<16x64xf32>
    %81 = arith.addf %80, %79 : vector<16x64xf32>
    %82 = arith.divf %80, %81 : vector<16x64xf32>
    %83 = math.tanh %77 : vector<16x64xf32>
    %84 = vector.extract_strided_slice %82 {offsets = [0, 0], sizes = [16, 16], strides = [1, 1]} : vector<16x64xf32> to vector<16x16xf32>
    %85 = vector.extract_strided_slice %82 {offsets = [0, 16], sizes = [16, 16], strides = [1, 1]} : vector<16x64xf32> to vector<16x16xf32>
    %86 = vector.extract_strided_slice %83 {offsets = [0, 32], sizes = [16, 16], strides = [1, 1]} : vector<16x64xf32> to vector<16x16xf32>
    %87 = vector.extract_strided_slice %82 {offsets = [0, 48], sizes = [16, 16], strides = [1, 1]} : vector<16x64xf32> to vector<16x16xf32>
    %88 = arith.mulf %85, %72 : vector<16x16xf32>
    %89 = arith.mulf %84, %86 : vector<16x16xf32>
    %90 = arith.addf %88, %89 : vector<16x16xf32>
    %91 = math.tanh %90 : vector<16x16xf32>
    %92 = arith.mulf %87, %91 : vector<16x16xf32>
    %93 = vector.extract_strided_slice %37 {offsets = [32, 0], sizes = [16, 64], strides = [1, 1]} : vector<96x64xf32> to vector<16x64xf32>
    %cst_26 = arith.constant dense<0.000000e+00> : vector<16x64xf32>
    %94 = tpu.matmul %92, %38, %cst_26 {dimension_numbers = #tpu.dot_dimension_numbers<[1], [0], [0], [1], [0, 0, 1, 1], [], []>} : vector<16x16xf32>, vector<16x64xf32>, vector<16x64xf32> -> vector<16x64xf32>
    %95 = arith.addf %93, %94 : vector<16x64xf32>
    %96 = arith.negf %95 : vector<16x64xf32>
    %97 = math.exp %96 : vector<16x64xf32>
    %cst_27 = arith.constant 1.000000e+00 : f32
    %98 = vector.broadcast %cst_27 : f32 to vector<16x64xf32>
    %99 = arith.addf %98, %97 : vector<16x64xf32>
    %100 = arith.divf %98, %99 : vector<16x64xf32>
    %101 = math.tanh %95 : vector<16x64xf32>
    %102 = vector.extract_strided_slice %100 {offsets = [0, 0], sizes = [16, 16], strides = [1, 1]} : vector<16x64xf32> to vector<16x16xf32>
    %103 = vector.extract_strided_slice %100 {offsets = [0, 16], sizes = [16, 16], strides = [1, 1]} : vector<16x64xf32> to vector<16x16xf32>
    %104 = vector.extract_strided_slice %101 {offsets = [0, 32], sizes = [16, 16], strides = [1, 1]} : vector<16x64xf32> to vector<16x16xf32>
    %105 = vector.extract_strided_slice %100 {offsets = [0, 48], sizes = [16, 16], strides = [1, 1]} : vector<16x64xf32> to vector<16x16xf32>
    %106 = arith.mulf %103, %90 : vector<16x16xf32>
    %107 = arith.mulf %102, %104 : vector<16x16xf32>
    %108 = arith.addf %106, %107 : vector<16x16xf32>
    %109 = math.tanh %108 : vector<16x16xf32>
    %110 = arith.mulf %105, %109 : vector<16x16xf32>
    %111 = vector.extract_strided_slice %37 {offsets = [16, 0], sizes = [16, 64], strides = [1, 1]} : vector<96x64xf32> to vector<16x64xf32>
    %cst_28 = arith.constant dense<0.000000e+00> : vector<16x64xf32>
    %112 = tpu.matmul %110, %38, %cst_28 {dimension_numbers = #tpu.dot_dimension_numbers<[1], [0], [0], [1], [0, 0, 1, 1], [], []>} : vector<16x16xf32>, vector<16x64xf32>, vector<16x64xf32> -> vector<16x64xf32>
    %113 = arith.addf %111, %112 : vector<16x64xf32>
    %114 = arith.negf %113 : vector<16x64xf32>
    %115 = math.exp %114 : vector<16x64xf32>
    %cst_29 = arith.constant 1.000000e+00 : f32
    %116 = vector.broadcast %cst_29 : f32 to vector<16x64xf32>
    %117 = arith.addf %116, %115 : vector<16x64xf32>
    %118 = arith.divf %116, %117 : vector<16x64xf32>
    %119 = math.tanh %113 : vector<16x64xf32>
    %120 = vector.extract_strided_slice %118 {offsets = [0, 0], sizes = [16, 16], strides = [1, 1]} : vector<16x64xf32> to vector<16x16xf32>
    %121 = vector.extract_strided_slice %118 {offsets = [0, 16], sizes = [16, 16], strides = [1, 1]} : vector<16x64xf32> to vector<16x16xf32>
    %122 = vector.extract_strided_slice %119 {offsets = [0, 32], sizes = [16, 16], strides = [1, 1]} : vector<16x64xf32> to vector<16x16xf32>
    %123 = vector.extract_strided_slice %118 {offsets = [0, 48], sizes = [16, 16], strides = [1, 1]} : vector<16x64xf32> to vector<16x16xf32>
    %124 = arith.mulf %121, %108 : vector<16x16xf32>
    %125 = arith.mulf %120, %122 : vector<16x16xf32>
    %126 = arith.addf %124, %125 : vector<16x16xf32>
    %127 = math.tanh %126 : vector<16x16xf32>
    %128 = arith.mulf %123, %127 : vector<16x16xf32>
    %129 = vector.extract_strided_slice %37 {offsets = [0, 0], sizes = [16, 64], strides = [1, 1]} : vector<96x64xf32> to vector<16x64xf32>
    %cst_30 = arith.constant dense<0.000000e+00> : vector<16x64xf32>
    %130 = tpu.matmul %128, %38, %cst_30 {dimension_numbers = #tpu.dot_dimension_numbers<[1], [0], [0], [1], [0, 0, 1, 1], [], []>} : vector<16x16xf32>, vector<16x64xf32>, vector<16x64xf32> -> vector<16x64xf32>
    %131 = arith.addf %129, %130 : vector<16x64xf32>
    %132 = arith.negf %131 : vector<16x64xf32>
    %133 = math.exp %132 : vector<16x64xf32>
    %cst_31 = arith.constant 1.000000e+00 : f32
    %134 = vector.broadcast %cst_31 : f32 to vector<16x64xf32>
    %135 = arith.addf %134, %133 : vector<16x64xf32>
    %136 = arith.divf %134, %135 : vector<16x64xf32>
    %137 = math.tanh %131 : vector<16x64xf32>
    %138 = vector.extract_strided_slice %136 {offsets = [0, 0], sizes = [16, 16], strides = [1, 1]} : vector<16x64xf32> to vector<16x16xf32>
    %139 = vector.extract_strided_slice %136 {offsets = [0, 16], sizes = [16, 16], strides = [1, 1]} : vector<16x64xf32> to vector<16x16xf32>
    %140 = vector.extract_strided_slice %137 {offsets = [0, 32], sizes = [16, 16], strides = [1, 1]} : vector<16x64xf32> to vector<16x16xf32>
    %141 = vector.extract_strided_slice %136 {offsets = [0, 48], sizes = [16, 16], strides = [1, 1]} : vector<16x64xf32> to vector<16x16xf32>
    %142 = arith.mulf %139, %126 : vector<16x16xf32>
    %143 = arith.mulf %138, %140 : vector<16x16xf32>
    %144 = arith.addf %142, %143 : vector<16x16xf32>
    %145 = math.tanh %144 : vector<16x16xf32>
    %146 = arith.mulf %141, %145 : vector<16x16xf32>
    %147 = tpu.concatenate %32, %146 in 1 : vector<16x16xf32>, vector<16x16xf32> -> vector<16x32xf32>
    %c0_32 = arith.constant 0 : index
    %c0_33 = arith.constant 0 : index
    %148 = vector.load %arg8[%c0_32, %c0_33] : memref<32x128xf32, #tpu.memory_space<vmem>>, vector<32x128xf32>
    %cst_34 = arith.constant dense<0.000000e+00> : vector<16x128xf32>
    %149 = tpu.matmul %147, %148, %cst_34 {dimension_numbers = #tpu.dot_dimension_numbers<[1], [0], [0], [1], [0, 0, 1, 1], [], []>} : vector<16x32xf32>, vector<32x128xf32>, vector<16x128xf32> -> vector<16x128xf32>
    %c0_35 = arith.constant 0 : index
    %c0_36 = arith.constant 0 : index
    %150 = vector.load %arg10[%c0_35, %c0_36] : memref<1x128xf32, #tpu.memory_space<vmem>>, vector<1x128xf32>
    %151 = vector.broadcast %150 : vector<1x128xf32> to vector<16x128xf32>
    %152 = arith.addf %149, %151 : vector<16x128xf32>
    %c0_37 = arith.constant 0 : index
    %c0_38 = arith.constant 0 : index
    %153 = vector.load %arg11[%c0_37, %c0_38] : memref<32x128xf32, #tpu.memory_space<vmem>>, vector<32x128xf32>
    %cst_39 = arith.constant dense<0.000000e+00> : vector<16x128xf32>
    %154 = tpu.matmul %147, %153, %cst_39 {dimension_numbers = #tpu.dot_dimension_numbers<[1], [0], [0], [1], [0, 0, 1, 1], [], []>} : vector<16x32xf32>, vector<32x128xf32>, vector<16x128xf32> -> vector<16x128xf32>
    %c0_40 = arith.constant 0 : index
    %c0_41 = arith.constant 0 : index
    %155 = vector.load %arg13[%c0_40, %c0_41] : memref<1x128xf32, #tpu.memory_space<vmem>>, vector<1x128xf32>
    %156 = vector.broadcast %155 : vector<1x128xf32> to vector<16x128xf32>
    %157 = arith.addf %154, %156 : vector<16x128xf32>
    %c0_42 = arith.constant 0 : index
    %c0_43 = arith.constant 0 : index
    %158 = vector.load %arg9[%c0_42, %c0_43] : memref<32x128xf32, #tpu.memory_space<vmem>>, vector<32x128xf32>
    %c0_44 = arith.constant 0 : index
    %c0_45 = arith.constant 0 : index
    %159 = vector.load %arg12[%c0_44, %c0_45] : memref<32x128xf32, #tpu.memory_space<vmem>>, vector<32x128xf32>
    %cst_46 = arith.constant 0.000000e+00 : f32
    %160 = vector.broadcast %cst_46 : f32 to vector<2x32xf32>
    %161 = vector.extract_strided_slice %152 {offsets = [0, 0], sizes = [2, 128], strides = [1, 1]} : vector<16x128xf32> to vector<2x128xf32>
    %cst_47 = arith.constant dense<0.000000e+00> : vector<2x128xf32>
    %162 = tpu.matmul %160, %158, %cst_47 {dimension_numbers = #tpu.dot_dimension_numbers<[1], [0], [0], [1], [0, 0, 1, 1], [], []>} : vector<2x32xf32>, vector<32x128xf32>, vector<2x128xf32> -> vector<2x128xf32>
    %163 = arith.addf %161, %162 : vector<2x128xf32>
    %164 = arith.negf %163 : vector<2x128xf32>
    %165 = math.exp %164 : vector<2x128xf32>
    %cst_48 = arith.constant 1.000000e+00 : f32
    %166 = vector.broadcast %cst_48 : f32 to vector<2x128xf32>
    %167 = arith.addf %166, %165 : vector<2x128xf32>
    %168 = arith.divf %166, %167 : vector<2x128xf32>
    %169 = math.tanh %163 : vector<2x128xf32>
    %170 = vector.extract_strided_slice %168 {offsets = [0, 0], sizes = [2, 32], strides = [1, 1]} : vector<2x128xf32> to vector<2x32xf32>
    %171 = vector.extract_strided_slice %168 {offsets = [0, 32], sizes = [2, 32], strides = [1, 1]} : vector<2x128xf32> to vector<2x32xf32>
    %172 = vector.extract_strided_slice %169 {offsets = [0, 64], sizes = [2, 32], strides = [1, 1]} : vector<2x128xf32> to vector<2x32xf32>
    %173 = vector.extract_strided_slice %168 {offsets = [0, 96], sizes = [2, 32], strides = [1, 1]} : vector<2x128xf32> to vector<2x32xf32>
    %174 = arith.mulf %171, %160 : vector<2x32xf32>
    %175 = arith.mulf %170, %172 : vector<2x32xf32>
    %176 = arith.addf %174, %175 : vector<2x32xf32>
    %177 = math.tanh %176 : vector<2x32xf32>
    %178 = arith.mulf %173, %177 : vector<2x32xf32>
    %179 = vector.extract_strided_slice %157 {offsets = [14, 0], sizes = [2, 128], strides = [1, 1]} : vector<16x128xf32> to vector<2x128xf32>
    %cst_49 = arith.constant dense<0.000000e+00> : vector<2x128xf32>
    %180 = tpu.matmul %160, %159, %cst_49 {dimension_numbers = #tpu.dot_dimension_numbers<[1], [0], [0], [1], [0, 0, 1, 1], [], []>} : vector<2x32xf32>, vector<32x128xf32>, vector<2x128xf32> -> vector<2x128xf32>
    %181 = arith.addf %179, %180 : vector<2x128xf32>
    %182 = arith.negf %181 : vector<2x128xf32>
    %183 = math.exp %182 : vector<2x128xf32>
    %cst_50 = arith.constant 1.000000e+00 : f32
    %184 = vector.broadcast %cst_50 : f32 to vector<2x128xf32>
    %185 = arith.addf %184, %183 : vector<2x128xf32>
    %186 = arith.divf %184, %185 : vector<2x128xf32>
    %187 = math.tanh %181 : vector<2x128xf32>
    %188 = vector.extract_strided_slice %186 {offsets = [0, 0], sizes = [2, 32], strides = [1, 1]} : vector<2x128xf32> to vector<2x32xf32>
    %189 = vector.extract_strided_slice %186 {offsets = [0, 32], sizes = [2, 32], strides = [1, 1]} : vector<2x128xf32> to vector<2x32xf32>
    %190 = vector.extract_strided_slice %187 {offsets = [0, 64], sizes = [2, 32], strides = [1, 1]} : vector<2x128xf32> to vector<2x32xf32>
    %191 = vector.extract_strided_slice %186 {offsets = [0, 96], sizes = [2, 32], strides = [1, 1]} : vector<2x128xf32> to vector<2x32xf32>
    %192 = arith.mulf %189, %160 : vector<2x32xf32>
    %193 = arith.mulf %188, %190 : vector<2x32xf32>
    %194 = arith.addf %192, %193 : vector<2x32xf32>
    %195 = math.tanh %194 : vector<2x32xf32>
    %196 = arith.mulf %191, %195 : vector<2x32xf32>
    %c0_51 = arith.constant 0 : index
    %c0_52 = arith.constant 0 : index
    %197 = vector.load %arg23[%c0_51, %c0_52] : memref<16x64xf32, #tpu.memory_space<vmem>>, vector<2x32xf32>
    tpu.vector_store %arg23[%c0_51, %c0_52], %178 {strides = array<i32>} : memref<16x64xf32, #tpu.memory_space<vmem>>, vector<2x32xf32>,
    %c14 = arith.constant 14 : index
    %c32 = arith.constant 32 : index
    %198 = vector.load %arg23[%c14, %c32] : memref<16x64xf32, #tpu.memory_space<vmem>>, vector<2x32xf32>
    tpu.vector_store %arg23[%c14, %c32], %196 {strides = array<i32>} : memref<16x64xf32, #tpu.memory_space<vmem>>, vector<2x32xf32>,
    %199 = vector.extract_strided_slice %152 {offsets = [2, 0], sizes = [2, 128], strides = [1, 1]} : vector<16x128xf32> to vector<2x128xf32>
    %cst_53 = arith.constant dense<0.000000e+00> : vector<2x128xf32>
    %200 = tpu.matmul %178, %158, %cst_53 {dimension_numbers = #tpu.dot_dimension_numbers<[1], [0], [0], [1], [0, 0, 1, 1], [], []>} : vector<2x32xf32>, vector<32x128xf32>, vector<2x128xf32> -> vector<2x128xf32>
    %201 = arith.addf %199, %200 : vector<2x128xf32>
    %202 = arith.negf %201 : vector<2x128xf32>
    %203 = math.exp %202 : vector<2x128xf32>
    %cst_54 = arith.constant 1.000000e+00 : f32
    %204 = vector.broadcast %cst_54 : f32 to vector<2x128xf32>
    %205 = arith.addf %204, %203 : vector<2x128xf32>
    %206 = arith.divf %204, %205 : vector<2x128xf32>
    %207 = math.tanh %201 : vector<2x128xf32>
    %208 = vector.extract_strided_slice %206 {offsets = [0, 0], sizes = [2, 32], strides = [1, 1]} : vector<2x128xf32> to vector<2x32xf32>
    %209 = vector.extract_strided_slice %206 {offsets = [0, 32], sizes = [2, 32], strides = [1, 1]} : vector<2x128xf32> to vector<2x32xf32>
    %210 = vector.extract_strided_slice %207 {offsets = [0, 64], sizes = [2, 32], strides = [1, 1]} : vector<2x128xf32> to vector<2x32xf32>
    %211 = vector.extract_strided_slice %206 {offsets = [0, 96], sizes = [2, 32], strides = [1, 1]} : vector<2x128xf32> to vector<2x32xf32>
    %212 = arith.mulf %209, %176 : vector<2x32xf32>
    %213 = arith.mulf %208, %210 : vector<2x32xf32>
    %214 = arith.addf %212, %213 : vector<2x32xf32>
    %215 = math.tanh %214 : vector<2x32xf32>
    %216 = arith.mulf %211, %215 : vector<2x32xf32>
    %217 = vector.extract_strided_slice %157 {offsets = [12, 0], sizes = [2, 128], strides = [1, 1]} : vector<16x128xf32> to vector<2x128xf32>
    %cst_55 = arith.constant dense<0.000000e+00> : vector<2x128xf32>
    %218 = tpu.matmul %196, %159, %cst_55 {dimension_numbers = #tpu.dot_dimension_numbers<[1], [0], [0], [1], [0, 0, 1, 1], [], []>} : vector<2x32xf32>, vector<32x128xf32>, vector<2x128xf32> -> vector<2x128xf32>
    %219 = arith.addf %217, %218 : vector<2x128xf32>
    %220 = arith.negf %219 : vector<2x128xf32>
    %221 = math.exp %220 : vector<2x128xf32>
    %cst_56 = arith.constant 1.000000e+00 : f32
    %222 = vector.broadcast %cst_56 : f32 to vector<2x128xf32>
    %223 = arith.addf %222, %221 : vector<2x128xf32>
    %224 = arith.divf %222, %223 : vector<2x128xf32>
    %225 = math.tanh %219 : vector<2x128xf32>
    %226 = vector.extract_strided_slice %224 {offsets = [0, 0], sizes = [2, 32], strides = [1, 1]} : vector<2x128xf32> to vector<2x32xf32>
    %227 = vector.extract_strided_slice %224 {offsets = [0, 32], sizes = [2, 32], strides = [1, 1]} : vector<2x128xf32> to vector<2x32xf32>
    %228 = vector.extract_strided_slice %225 {offsets = [0, 64], sizes = [2, 32], strides = [1, 1]} : vector<2x128xf32> to vector<2x32xf32>
    %229 = vector.extract_strided_slice %224 {offsets = [0, 96], sizes = [2, 32], strides = [1, 1]} : vector<2x128xf32> to vector<2x32xf32>
    %230 = arith.mulf %227, %194 : vector<2x32xf32>
    %231 = arith.mulf %226, %228 : vector<2x32xf32>
    %232 = arith.addf %230, %231 : vector<2x32xf32>
    %233 = math.tanh %232 : vector<2x32xf32>
    %234 = arith.mulf %229, %233 : vector<2x32xf32>
    %c2 = arith.constant 2 : index
    %c0_57 = arith.constant 0 : index
    %235 = vector.load %arg23[%c2, %c0_57] : memref<16x64xf32, #tpu.memory_space<vmem>>, vector<2x32xf32>
    tpu.vector_store %arg23[%c2, %c0_57], %216 {strides = array<i32>} : memref<16x64xf32, #tpu.memory_space<vmem>>, vector<2x32xf32>,
    %c12 = arith.constant 12 : index
    %c32_58 = arith.constant 32 : index
    %236 = vector.load %arg23[%c12, %c32_58] : memref<16x64xf32, #tpu.memory_space<vmem>>, vector<2x32xf32>
    tpu.vector_store %arg23[%c12, %c32_58], %234 {strides = array<i32>} : memref<16x64xf32, #tpu.memory_space<vmem>>, vector<2x32xf32>,
    %237 = vector.extract_strided_slice %152 {offsets = [4, 0], sizes = [2, 128], strides = [1, 1]} : vector<16x128xf32> to vector<2x128xf32>
    %cst_59 = arith.constant dense<0.000000e+00> : vector<2x128xf32>
    %238 = tpu.matmul %216, %158, %cst_59 {dimension_numbers = #tpu.dot_dimension_numbers<[1], [0], [0], [1], [0, 0, 1, 1], [], []>} : vector<2x32xf32>, vector<32x128xf32>, vector<2x128xf32> -> vector<2x128xf32>
    %239 = arith.addf %237, %238 : vector<2x128xf32>
    %240 = arith.negf %239 : vector<2x128xf32>
    %241 = math.exp %240 : vector<2x128xf32>
    %cst_60 = arith.constant 1.000000e+00 : f32
    %242 = vector.broadcast %cst_60 : f32 to vector<2x128xf32>
    %243 = arith.addf %242, %241 : vector<2x128xf32>
    %244 = arith.divf %242, %243 : vector<2x128xf32>
    %245 = math.tanh %239 : vector<2x128xf32>
    %246 = vector.extract_strided_slice %244 {offsets = [0, 0], sizes = [2, 32], strides = [1, 1]} : vector<2x128xf32> to vector<2x32xf32>
    %247 = vector.extract_strided_slice %244 {offsets = [0, 32], sizes = [2, 32], strides = [1, 1]} : vector<2x128xf32> to vector<2x32xf32>
    %248 = vector.extract_strided_slice %245 {offsets = [0, 64], sizes = [2, 32], strides = [1, 1]} : vector<2x128xf32> to vector<2x32xf32>
    %249 = vector.extract_strided_slice %244 {offsets = [0, 96], sizes = [2, 32], strides = [1, 1]} : vector<2x128xf32> to vector<2x32xf32>
    %250 = arith.mulf %247, %214 : vector<2x32xf32>
    %251 = arith.mulf %246, %248 : vector<2x32xf32>
    %252 = arith.addf %250, %251 : vector<2x32xf32>
    %253 = math.tanh %252 : vector<2x32xf32>
    %254 = arith.mulf %249, %253 : vector<2x32xf32>
    %255 = vector.extract_strided_slice %157 {offsets = [10, 0], sizes = [2, 128], strides = [1, 1]} : vector<16x128xf32> to vector<2x128xf32>
    %cst_61 = arith.constant dense<0.000000e+00> : vector<2x128xf32>
    %256 = tpu.matmul %234, %159, %cst_61 {dimension_numbers = #tpu.dot_dimension_numbers<[1], [0], [0], [1], [0, 0, 1, 1], [], []>} : vector<2x32xf32>, vector<32x128xf32>, vector<2x128xf32> -> vector<2x128xf32>
    %257 = arith.addf %255, %256 : vector<2x128xf32>
    %258 = arith.negf %257 : vector<2x128xf32>
    %259 = math.exp %258 : vector<2x128xf32>
    %cst_62 = arith.constant 1.000000e+00 : f32
    %260 = vector.broadcast %cst_62 : f32 to vector<2x128xf32>
    %261 = arith.addf %260, %259 : vector<2x128xf32>
    %262 = arith.divf %260, %261 : vector<2x128xf32>
    %263 = math.tanh %257 : vector<2x128xf32>
    %264 = vector.extract_strided_slice %262 {offsets = [0, 0], sizes = [2, 32], strides = [1, 1]} : vector<2x128xf32> to vector<2x32xf32>
    %265 = vector.extract_strided_slice %262 {offsets = [0, 32], sizes = [2, 32], strides = [1, 1]} : vector<2x128xf32> to vector<2x32xf32>
    %266 = vector.extract_strided_slice %263 {offsets = [0, 64], sizes = [2, 32], strides = [1, 1]} : vector<2x128xf32> to vector<2x32xf32>
    %267 = vector.extract_strided_slice %262 {offsets = [0, 96], sizes = [2, 32], strides = [1, 1]} : vector<2x128xf32> to vector<2x32xf32>
    %268 = arith.mulf %265, %232 : vector<2x32xf32>
    %269 = arith.mulf %264, %266 : vector<2x32xf32>
    %270 = arith.addf %268, %269 : vector<2x32xf32>
    %271 = math.tanh %270 : vector<2x32xf32>
    %272 = arith.mulf %267, %271 : vector<2x32xf32>
    %c4 = arith.constant 4 : index
    %c0_63 = arith.constant 0 : index
    %273 = vector.load %arg23[%c4, %c0_63] : memref<16x64xf32, #tpu.memory_space<vmem>>, vector<2x32xf32>
    tpu.vector_store %arg23[%c4, %c0_63], %254 {strides = array<i32>} : memref<16x64xf32, #tpu.memory_space<vmem>>, vector<2x32xf32>,
    %c10 = arith.constant 10 : index
    %c32_64 = arith.constant 32 : index
    %274 = vector.load %arg23[%c10, %c32_64] : memref<16x64xf32, #tpu.memory_space<vmem>>, vector<2x32xf32>
    tpu.vector_store %arg23[%c10, %c32_64], %272 {strides = array<i32>} : memref<16x64xf32, #tpu.memory_space<vmem>>, vector<2x32xf32>,
    %275 = vector.extract_strided_slice %152 {offsets = [6, 0], sizes = [2, 128], strides = [1, 1]} : vector<16x128xf32> to vector<2x128xf32>
    %cst_65 = arith.constant dense<0.000000e+00> : vector<2x128xf32>
    %276 = tpu.matmul %254, %158, %cst_65 {dimension_numbers = #tpu.dot_dimension_numbers<[1], [0], [0], [1], [0, 0, 1, 1], [], []>} : vector<2x32xf32>, vector<32x128xf32>, vector<2x128xf32> -> vector<2x128xf32>
    %277 = arith.addf %275, %276 : vector<2x128xf32>
    %278 = arith.negf %277 : vector<2x128xf32>
    %279 = math.exp %278 : vector<2x128xf32>
    %cst_66 = arith.constant 1.000000e+00 : f32
    %280 = vector.broadcast %cst_66 : f32 to vector<2x128xf32>
    %281 = arith.addf %280, %279 : vector<2x128xf32>
    %282 = arith.divf %280, %281 : vector<2x128xf32>
    %283 = math.tanh %277 : vector<2x128xf32>
    %284 = vector.extract_strided_slice %282 {offsets = [0, 0], sizes = [2, 32], strides = [1, 1]} : vector<2x128xf32> to vector<2x32xf32>
    %285 = vector.extract_strided_slice %282 {offsets = [0, 32], sizes = [2, 32], strides = [1, 1]} : vector<2x128xf32> to vector<2x32xf32>
    %286 = vector.extract_strided_slice %283 {offsets = [0, 64], sizes = [2, 32], strides = [1, 1]} : vector<2x128xf32> to vector<2x32xf32>
    %287 = vector.extract_strided_slice %282 {offsets = [0, 96], sizes = [2, 32], strides = [1, 1]} : vector<2x128xf32> to vector<2x32xf32>
    %288 = arith.mulf %285, %252 : vector<2x32xf32>
    %289 = arith.mulf %284, %286 : vector<2x32xf32>
    %290 = arith.addf %288, %289 : vector<2x32xf32>
    %291 = math.tanh %290 : vector<2x32xf32>
    %292 = arith.mulf %287, %291 : vector<2x32xf32>
    %293 = vector.extract_strided_slice %157 {offsets = [8, 0], sizes = [2, 128], strides = [1, 1]} : vector<16x128xf32> to vector<2x128xf32>
    %cst_67 = arith.constant dense<0.000000e+00> : vector<2x128xf32>
    %294 = tpu.matmul %272, %159, %cst_67 {dimension_numbers = #tpu.dot_dimension_numbers<[1], [0], [0], [1], [0, 0, 1, 1], [], []>} : vector<2x32xf32>, vector<32x128xf32>, vector<2x128xf32> -> vector<2x128xf32>
    %295 = arith.addf %293, %294 : vector<2x128xf32>
    %296 = arith.negf %295 : vector<2x128xf32>
    %297 = math.exp %296 : vector<2x128xf32>
    %cst_68 = arith.constant 1.000000e+00 : f32
    %298 = vector.broadcast %cst_68 : f32 to vector<2x128xf32>
    %299 = arith.addf %298, %297 : vector<2x128xf32>
    %300 = arith.divf %298, %299 : vector<2x128xf32>
    %301 = math.tanh %295 : vector<2x128xf32>
    %302 = vector.extract_strided_slice %300 {offsets = [0, 0], sizes = [2, 32], strides = [1, 1]} : vector<2x128xf32> to vector<2x32xf32>
    %303 = vector.extract_strided_slice %300 {offsets = [0, 32], sizes = [2, 32], strides = [1, 1]} : vector<2x128xf32> to vector<2x32xf32>
    %304 = vector.extract_strided_slice %301 {offsets = [0, 64], sizes = [2, 32], strides = [1, 1]} : vector<2x128xf32> to vector<2x32xf32>
    %305 = vector.extract_strided_slice %300 {offsets = [0, 96], sizes = [2, 32], strides = [1, 1]} : vector<2x128xf32> to vector<2x32xf32>
    %306 = arith.mulf %303, %270 : vector<2x32xf32>
    %307 = arith.mulf %302, %304 : vector<2x32xf32>
    %308 = arith.addf %306, %307 : vector<2x32xf32>
    %309 = math.tanh %308 : vector<2x32xf32>
    %310 = arith.mulf %305, %309 : vector<2x32xf32>
    %c6 = arith.constant 6 : index
    %c0_69 = arith.constant 0 : index
    %311 = vector.load %arg23[%c6, %c0_69] : memref<16x64xf32, #tpu.memory_space<vmem>>, vector<2x32xf32>
    tpu.vector_store %arg23[%c6, %c0_69], %292 {strides = array<i32>} : memref<16x64xf32, #tpu.memory_space<vmem>>, vector<2x32xf32>,
    %c8 = arith.constant 8 : index
    %c32_70 = arith.constant 32 : index
    %312 = vector.load %arg23[%c8, %c32_70] : memref<16x64xf32, #tpu.memory_space<vmem>>, vector<2x32xf32>
    tpu.vector_store %arg23[%c8, %c32_70], %310 {strides = array<i32>} : memref<16x64xf32, #tpu.memory_space<vmem>>, vector<2x32xf32>,
    %313 = vector.extract_strided_slice %152 {offsets = [8, 0], sizes = [2, 128], strides = [1, 1]} : vector<16x128xf32> to vector<2x128xf32>
    %cst_71 = arith.constant dense<0.000000e+00> : vector<2x128xf32>
    %314 = tpu.matmul %292, %158, %cst_71 {dimension_numbers = #tpu.dot_dimension_numbers<[1], [0], [0], [1], [0, 0, 1, 1], [], []>} : vector<2x32xf32>, vector<32x128xf32>, vector<2x128xf32> -> vector<2x128xf32>
    %315 = arith.addf %313, %314 : vector<2x128xf32>
    %316 = arith.negf %315 : vector<2x128xf32>
    %317 = math.exp %316 : vector<2x128xf32>
    %cst_72 = arith.constant 1.000000e+00 : f32
    %318 = vector.broadcast %cst_72 : f32 to vector<2x128xf32>
    %319 = arith.addf %318, %317 : vector<2x128xf32>
    %320 = arith.divf %318, %319 : vector<2x128xf32>
    %321 = math.tanh %315 : vector<2x128xf32>
    %322 = vector.extract_strided_slice %320 {offsets = [0, 0], sizes = [2, 32], strides = [1, 1]} : vector<2x128xf32> to vector<2x32xf32>
    %323 = vector.extract_strided_slice %320 {offsets = [0, 32], sizes = [2, 32], strides = [1, 1]} : vector<2x128xf32> to vector<2x32xf32>
    %324 = vector.extract_strided_slice %321 {offsets = [0, 64], sizes = [2, 32], strides = [1, 1]} : vector<2x128xf32> to vector<2x32xf32>
    %325 = vector.extract_strided_slice %320 {offsets = [0, 96], sizes = [2, 32], strides = [1, 1]} : vector<2x128xf32> to vector<2x32xf32>
    %326 = arith.mulf %323, %290 : vector<2x32xf32>
    %327 = arith.mulf %322, %324 : vector<2x32xf32>
    %328 = arith.addf %326, %327 : vector<2x32xf32>
    %329 = math.tanh %328 : vector<2x32xf32>
    %330 = arith.mulf %325, %329 : vector<2x32xf32>
    %331 = vector.extract_strided_slice %157 {offsets = [6, 0], sizes = [2, 128], strides = [1, 1]} : vector<16x128xf32> to vector<2x128xf32>
    %cst_73 = arith.constant dense<0.000000e+00> : vector<2x128xf32>
    %332 = tpu.matmul %310, %159, %cst_73 {dimension_numbers = #tpu.dot_dimension_numbers<[1], [0], [0], [1], [0, 0, 1, 1], [], []>} : vector<2x32xf32>, vector<32x128xf32>, vector<2x128xf32> -> vector<2x128xf32>
    %333 = arith.addf %331, %332 : vector<2x128xf32>
    %334 = arith.negf %333 : vector<2x128xf32>
    %335 = math.exp %334 : vector<2x128xf32>
    %cst_74 = arith.constant 1.000000e+00 : f32
    %336 = vector.broadcast %cst_74 : f32 to vector<2x128xf32>
    %337 = arith.addf %336, %335 : vector<2x128xf32>
    %338 = arith.divf %336, %337 : vector<2x128xf32>
    %339 = math.tanh %333 : vector<2x128xf32>
    %340 = vector.extract_strided_slice %338 {offsets = [0, 0], sizes = [2, 32], strides = [1, 1]} : vector<2x128xf32> to vector<2x32xf32>
    %341 = vector.extract_strided_slice %338 {offsets = [0, 32], sizes = [2, 32], strides = [1, 1]} : vector<2x128xf32> to vector<2x32xf32>
    %342 = vector.extract_strided_slice %339 {offsets = [0, 64], sizes = [2, 32], strides = [1, 1]} : vector<2x128xf32> to vector<2x32xf32>
    %343 = vector.extract_strided_slice %338 {offsets = [0, 96], sizes = [2, 32], strides = [1, 1]} : vector<2x128xf32> to vector<2x32xf32>
    %344 = arith.mulf %341, %308 : vector<2x32xf32>
    %345 = arith.mulf %340, %342 : vector<2x32xf32>
    %346 = arith.addf %344, %345 : vector<2x32xf32>
    %347 = math.tanh %346 : vector<2x32xf32>
    %348 = arith.mulf %343, %347 : vector<2x32xf32>
    %c8_75 = arith.constant 8 : index
    %c0_76 = arith.constant 0 : index
    %349 = vector.load %arg23[%c8_75, %c0_76] : memref<16x64xf32, #tpu.memory_space<vmem>>, vector<2x32xf32>
    tpu.vector_store %arg23[%c8_75, %c0_76], %330 {strides = array<i32>} : memref<16x64xf32, #tpu.memory_space<vmem>>, vector<2x32xf32>,
    %c6_77 = arith.constant 6 : index
    %c32_78 = arith.constant 32 : index
    %350 = vector.load %arg23[%c6_77, %c32_78] : memref<16x64xf32, #tpu.memory_space<vmem>>, vector<2x32xf32>
    tpu.vector_store %arg23[%c6_77, %c32_78], %348 {strides = array<i32>} : memref<16x64xf32, #tpu.memory_space<vmem>>, vector<2x32xf32>,
    %351 = vector.extract_strided_slice %152 {offsets = [10, 0], sizes = [2, 128], strides = [1, 1]} : vector<16x128xf32> to vector<2x128xf32>
    %cst_79 = arith.constant dense<0.000000e+00> : vector<2x128xf32>
    %352 = tpu.matmul %330, %158, %cst_79 {dimension_numbers = #tpu.dot_dimension_numbers<[1], [0], [0], [1], [0, 0, 1, 1], [], []>} : vector<2x32xf32>, vector<32x128xf32>, vector<2x128xf32> -> vector<2x128xf32>
    %353 = arith.addf %351, %352 : vector<2x128xf32>
    %354 = arith.negf %353 : vector<2x128xf32>
    %355 = math.exp %354 : vector<2x128xf32>
    %cst_80 = arith.constant 1.000000e+00 : f32
    %356 = vector.broadcast %cst_80 : f32 to vector<2x128xf32>
    %357 = arith.addf %356, %355 : vector<2x128xf32>
    %358 = arith.divf %356, %357 : vector<2x128xf32>
    %359 = math.tanh %353 : vector<2x128xf32>
    %360 = vector.extract_strided_slice %358 {offsets = [0, 0], sizes = [2, 32], strides = [1, 1]} : vector<2x128xf32> to vector<2x32xf32>
    %361 = vector.extract_strided_slice %358 {offsets = [0, 32], sizes = [2, 32], strides = [1, 1]} : vector<2x128xf32> to vector<2x32xf32>
    %362 = vector.extract_strided_slice %359 {offsets = [0, 64], sizes = [2, 32], strides = [1, 1]} : vector<2x128xf32> to vector<2x32xf32>
    %363 = vector.extract_strided_slice %358 {offsets = [0, 96], sizes = [2, 32], strides = [1, 1]} : vector<2x128xf32> to vector<2x32xf32>
    %364 = arith.mulf %361, %328 : vector<2x32xf32>
    %365 = arith.mulf %360, %362 : vector<2x32xf32>
    %366 = arith.addf %364, %365 : vector<2x32xf32>
    %367 = math.tanh %366 : vector<2x32xf32>
    %368 = arith.mulf %363, %367 : vector<2x32xf32>
    %369 = vector.extract_strided_slice %157 {offsets = [4, 0], sizes = [2, 128], strides = [1, 1]} : vector<16x128xf32> to vector<2x128xf32>
    %cst_81 = arith.constant dense<0.000000e+00> : vector<2x128xf32>
    %370 = tpu.matmul %348, %159, %cst_81 {dimension_numbers = #tpu.dot_dimension_numbers<[1], [0], [0], [1], [0, 0, 1, 1], [], []>} : vector<2x32xf32>, vector<32x128xf32>, vector<2x128xf32> -> vector<2x128xf32>
    %371 = arith.addf %369, %370 : vector<2x128xf32>
    %372 = arith.negf %371 : vector<2x128xf32>
    %373 = math.exp %372 : vector<2x128xf32>
    %cst_82 = arith.constant 1.000000e+00 : f32
    %374 = vector.broadcast %cst_82 : f32 to vector<2x128xf32>
    %375 = arith.addf %374, %373 : vector<2x128xf32>
    %376 = arith.divf %374, %375 : vector<2x128xf32>
    %377 = math.tanh %371 : vector<2x128xf32>
    %378 = vector.extract_strided_slice %376 {offsets = [0, 0], sizes = [2, 32], strides = [1, 1]} : vector<2x128xf32> to vector<2x32xf32>
    %379 = vector.extract_strided_slice %376 {offsets = [0, 32], sizes = [2, 32], strides = [1, 1]} : vector<2x128xf32> to vector<2x32xf32>
    %380 = vector.extract_strided_slice %377 {offsets = [0, 64], sizes = [2, 32], strides = [1, 1]} : vector<2x128xf32> to vector<2x32xf32>
    %381 = vector.extract_strided_slice %376 {offsets = [0, 96], sizes = [2, 32], strides = [1, 1]} : vector<2x128xf32> to vector<2x32xf32>
    %382 = arith.mulf %379, %346 : vector<2x32xf32>
    %383 = arith.mulf %378, %380 : vector<2x32xf32>
    %384 = arith.addf %382, %383 : vector<2x32xf32>
    %385 = math.tanh %384 : vector<2x32xf32>
    %386 = arith.mulf %381, %385 : vector<2x32xf32>
    %c10_83 = arith.constant 10 : index
    %c0_84 = arith.constant 0 : index
    %387 = vector.load %arg23[%c10_83, %c0_84] : memref<16x64xf32, #tpu.memory_space<vmem>>, vector<2x32xf32>
    tpu.vector_store %arg23[%c10_83, %c0_84], %368 {strides = array<i32>} : memref<16x64xf32, #tpu.memory_space<vmem>>, vector<2x32xf32>,
    %c4_85 = arith.constant 4 : index
    %c32_86 = arith.constant 32 : index
    %388 = vector.load %arg23[%c4_85, %c32_86] : memref<16x64xf32, #tpu.memory_space<vmem>>, vector<2x32xf32>
    tpu.vector_store %arg23[%c4_85, %c32_86], %386 {strides = array<i32>} : memref<16x64xf32, #tpu.memory_space<vmem>>, vector<2x32xf32>,
    %389 = vector.extract_strided_slice %152 {offsets = [12, 0], sizes = [2, 128], strides = [1, 1]} : vector<16x128xf32> to vector<2x128xf32>
    %cst_87 = arith.constant dense<0.000000e+00> : vector<2x128xf32>
    %390 = tpu.matmul %368, %158, %cst_87 {dimension_numbers = #tpu.dot_dimension_numbers<[1], [0], [0], [1], [0, 0, 1, 1], [], []>} : vector<2x32xf32>, vector<32x128xf32>, vector<2x128xf32> -> vector<2x128xf32>
    %391 = arith.addf %389, %390 : vector<2x128xf32>
    %392 = arith.negf %391 : vector<2x128xf32>
    %393 = math.exp %392 : vector<2x128xf32>
    %cst_88 = arith.constant 1.000000e+00 : f32
    %394 = vector.broadcast %cst_88 : f32 to vector<2x128xf32>
    %395 = arith.addf %394, %393 : vector<2x128xf32>
    %396 = arith.divf %394, %395 : vector<2x128xf32>
    %397 = math.tanh %391 : vector<2x128xf32>
    %398 = vector.extract_strided_slice %396 {offsets = [0, 0], sizes = [2, 32], strides = [1, 1]} : vector<2x128xf32> to vector<2x32xf32>
    %399 = vector.extract_strided_slice %396 {offsets = [0, 32], sizes = [2, 32], strides = [1, 1]} : vector<2x128xf32> to vector<2x32xf32>
    %400 = vector.extract_strided_slice %397 {offsets = [0, 64], sizes = [2, 32], strides = [1, 1]} : vector<2x128xf32> to vector<2x32xf32>
    %401 = vector.extract_strided_slice %396 {offsets = [0, 96], sizes = [2, 32], strides = [1, 1]} : vector<2x128xf32> to vector<2x32xf32>
    %402 = arith.mulf %399, %366 : vector<2x32xf32>
    %403 = arith.mulf %398, %400 : vector<2x32xf32>
    %404 = arith.addf %402, %403 : vector<2x32xf32>
    %405 = math.tanh %404 : vector<2x32xf32>
    %406 = arith.mulf %401, %405 : vector<2x32xf32>
    %407 = vector.extract_strided_slice %157 {offsets = [2, 0], sizes = [2, 128], strides = [1, 1]} : vector<16x128xf32> to vector<2x128xf32>
    %cst_89 = arith.constant dense<0.000000e+00> : vector<2x128xf32>
    %408 = tpu.matmul %386, %159, %cst_89 {dimension_numbers = #tpu.dot_dimension_numbers<[1], [0], [0], [1], [0, 0, 1, 1], [], []>} : vector<2x32xf32>, vector<32x128xf32>, vector<2x128xf32> -> vector<2x128xf32>
    %409 = arith.addf %407, %408 : vector<2x128xf32>
    %410 = arith.negf %409 : vector<2x128xf32>
    %411 = math.exp %410 : vector<2x128xf32>
    %cst_90 = arith.constant 1.000000e+00 : f32
    %412 = vector.broadcast %cst_90 : f32 to vector<2x128xf32>
    %413 = arith.addf %412, %411 : vector<2x128xf32>
    %414 = arith.divf %412, %413 : vector<2x128xf32>
    %415 = math.tanh %409 : vector<2x128xf32>
    %416 = vector.extract_strided_slice %414 {offsets = [0, 0], sizes = [2, 32], strides = [1, 1]} : vector<2x128xf32> to vector<2x32xf32>
    %417 = vector.extract_strided_slice %414 {offsets = [0, 32], sizes = [2, 32], strides = [1, 1]} : vector<2x128xf32> to vector<2x32xf32>
    %418 = vector.extract_strided_slice %415 {offsets = [0, 64], sizes = [2, 32], strides = [1, 1]} : vector<2x128xf32> to vector<2x32xf32>
    %419 = vector.extract_strided_slice %414 {offsets = [0, 96], sizes = [2, 32], strides = [1, 1]} : vector<2x128xf32> to vector<2x32xf32>
    %420 = arith.mulf %417, %384 : vector<2x32xf32>
    %421 = arith.mulf %416, %418 : vector<2x32xf32>
    %422 = arith.addf %420, %421 : vector<2x32xf32>
    %423 = math.tanh %422 : vector<2x32xf32>
    %424 = arith.mulf %419, %423 : vector<2x32xf32>
    %c12_91 = arith.constant 12 : index
    %c0_92 = arith.constant 0 : index
    %425 = vector.load %arg23[%c12_91, %c0_92] : memref<16x64xf32, #tpu.memory_space<vmem>>, vector<2x32xf32>
    tpu.vector_store %arg23[%c12_91, %c0_92], %406 {strides = array<i32>} : memref<16x64xf32, #tpu.memory_space<vmem>>, vector<2x32xf32>,
    %c2_93 = arith.constant 2 : index
    %c32_94 = arith.constant 32 : index
    %426 = vector.load %arg23[%c2_93, %c32_94] : memref<16x64xf32, #tpu.memory_space<vmem>>, vector<2x32xf32>
    tpu.vector_store %arg23[%c2_93, %c32_94], %424 {strides = array<i32>} : memref<16x64xf32, #tpu.memory_space<vmem>>, vector<2x32xf32>,
    %427 = vector.extract_strided_slice %152 {offsets = [14, 0], sizes = [2, 128], strides = [1, 1]} : vector<16x128xf32> to vector<2x128xf32>
    %cst_95 = arith.constant dense<0.000000e+00> : vector<2x128xf32>
    %428 = tpu.matmul %406, %158, %cst_95 {dimension_numbers = #tpu.dot_dimension_numbers<[1], [0], [0], [1], [0, 0, 1, 1], [], []>} : vector<2x32xf32>, vector<32x128xf32>, vector<2x128xf32> -> vector<2x128xf32>
    %429 = arith.addf %427, %428 : vector<2x128xf32>
    %430 = arith.negf %429 : vector<2x128xf32>
    %431 = math.exp %430 : vector<2x128xf32>
    %cst_96 = arith.constant 1.000000e+00 : f32
    %432 = vector.broadcast %cst_96 : f32 to vector<2x128xf32>
    %433 = arith.addf %432, %431 : vector<2x128xf32>
    %434 = arith.divf %432, %433 : vector<2x128xf32>
    %435 = math.tanh %429 : vector<2x128xf32>
    %436 = vector.extract_strided_slice %434 {offsets = [0, 0], sizes = [2, 32], strides = [1, 1]} : vector<2x128xf32> to vector<2x32xf32>
    %437 = vector.extract_strided_slice %434 {offsets = [0, 32], sizes = [2, 32], strides = [1, 1]} : vector<2x128xf32> to vector<2x32xf32>
    %438 = vector.extract_strided_slice %435 {offsets = [0, 64], sizes = [2, 32], strides = [1, 1]} : vector<2x128xf32> to vector<2x32xf32>
    %439 = vector.extract_strided_slice %434 {offsets = [0, 96], sizes = [2, 32], strides = [1, 1]} : vector<2x128xf32> to vector<2x32xf32>
    %440 = arith.mulf %437, %404 : vector<2x32xf32>
    %441 = arith.mulf %436, %438 : vector<2x32xf32>
    %442 = arith.addf %440, %441 : vector<2x32xf32>
    %443 = math.tanh %442 : vector<2x32xf32>
    %444 = arith.mulf %439, %443 : vector<2x32xf32>
    %445 = vector.extract_strided_slice %157 {offsets = [0, 0], sizes = [2, 128], strides = [1, 1]} : vector<16x128xf32> to vector<2x128xf32>
    %cst_97 = arith.constant dense<0.000000e+00> : vector<2x128xf32>
    %446 = tpu.matmul %424, %159, %cst_97 {dimension_numbers = #tpu.dot_dimension_numbers<[1], [0], [0], [1], [0, 0, 1, 1], [], []>} : vector<2x32xf32>, vector<32x128xf32>, vector<2x128xf32> -> vector<2x128xf32>
    %447 = arith.addf %445, %446 : vector<2x128xf32>
    %448 = arith.negf %447 : vector<2x128xf32>
    %449 = math.exp %448 : vector<2x128xf32>
    %cst_98 = arith.constant 1.000000e+00 : f32
    %450 = vector.broadcast %cst_98 : f32 to vector<2x128xf32>
    %451 = arith.addf %450, %449 : vector<2x128xf32>
    %452 = arith.divf %450, %451 : vector<2x128xf32>
    %453 = math.tanh %447 : vector<2x128xf32>
    %454 = vector.extract_strided_slice %452 {offsets = [0, 0], sizes = [2, 32], strides = [1, 1]} : vector<2x128xf32> to vector<2x32xf32>
    %455 = vector.extract_strided_slice %452 {offsets = [0, 32], sizes = [2, 32], strides = [1, 1]} : vector<2x128xf32> to vector<2x32xf32>
    %456 = vector.extract_strided_slice %453 {offsets = [0, 64], sizes = [2, 32], strides = [1, 1]} : vector<2x128xf32> to vector<2x32xf32>
    %457 = vector.extract_strided_slice %452 {offsets = [0, 96], sizes = [2, 32], strides = [1, 1]} : vector<2x128xf32> to vector<2x32xf32>
    %458 = arith.mulf %455, %422 : vector<2x32xf32>
    %459 = arith.mulf %454, %456 : vector<2x32xf32>
    %460 = arith.addf %458, %459 : vector<2x32xf32>
    %461 = math.tanh %460 : vector<2x32xf32>
    %462 = arith.mulf %457, %461 : vector<2x32xf32>
    %c14_99 = arith.constant 14 : index
    %c0_100 = arith.constant 0 : index
    %463 = vector.load %arg23[%c14_99, %c0_100] : memref<16x64xf32, #tpu.memory_space<vmem>>, vector<2x32xf32>
    tpu.vector_store %arg23[%c14_99, %c0_100], %444 {strides = array<i32>} : memref<16x64xf32, #tpu.memory_space<vmem>>, vector<2x32xf32>,
    %c0_101 = arith.constant 0 : index
    %c32_102 = arith.constant 32 : index
    %464 = vector.load %arg23[%c0_101, %c32_102] : memref<16x64xf32, #tpu.memory_space<vmem>>, vector<2x32xf32>
    tpu.vector_store %arg23[%c0_101, %c32_102], %462 {strides = array<i32>} : memref<16x64xf32, #tpu.memory_space<vmem>>, vector<2x32xf32>,
    %c0_103 = arith.constant 0 : index
    %c0_104 = arith.constant 0 : index
    %465 = vector.load %arg23[%c0_103, %c0_104] : memref<16x64xf32, #tpu.memory_space<vmem>>, vector<16x64xf32>
    %c0_105 = arith.constant 0 : index
    %c0_106 = arith.constant 0 : index
    %466 = vector.load %arg14[%c0_105, %c0_106] : memref<64x128xf32, #tpu.memory_space<vmem>>, vector<64x128xf32>
    %cst_107 = arith.constant dense<0.000000e+00> : vector<16x128xf32>
    %467 = tpu.matmul %465, %466, %cst_107 {dimension_numbers = #tpu.dot_dimension_numbers<[1], [0], [0], [1], [0, 0, 1, 1], [], []>} : vector<16x64xf32>, vector<64x128xf32>, vector<16x128xf32> -> vector<16x128xf32>
    %c0_108 = arith.constant 0 : index
    %c0_109 = arith.constant 0 : index
    %468 = vector.load %arg16[%c0_108, %c0_109] : memref<1x128xf32, #tpu.memory_space<vmem>>, vector<1x128xf32>
    %469 = vector.broadcast %468 : vector<1x128xf32> to vector<16x128xf32>
    %470 = arith.addf %467, %469 : vector<16x128xf32>
    %c0_110 = arith.constant 0 : index
    %c0_111 = arith.constant 0 : index
    %471 = vector.load %arg17[%c0_110, %c0_111] : memref<64x128xf32, #tpu.memory_space<vmem>>, vector<64x128xf32>
    %cst_112 = arith.constant dense<0.000000e+00> : vector<16x128xf32>
    %472 = tpu.matmul %465, %471, %cst_112 {dimension_numbers = #tpu.dot_dimension_numbers<[1], [0], [0], [1], [0, 0, 1, 1], [], []>} : vector<16x64xf32>, vector<64x128xf32>, vector<16x128xf32> -> vector<16x128xf32>
    %c0_113 = arith.constant 0 : index
    %c0_114 = arith.constant 0 : index
    %473 = vector.load %arg19[%c0_113, %c0_114] : memref<1x128xf32, #tpu.memory_space<vmem>>, vector<1x128xf32>
    %474 = vector.broadcast %473 : vector<1x128xf32> to vector<16x128xf32>
    %475 = arith.addf %472, %474 : vector<16x128xf32>
    %c0_115 = arith.constant 0 : index
    %c0_116 = arith.constant 0 : index
    %476 = vector.load %arg15[%c0_115, %c0_116] : memref<32x128xf32, #tpu.memory_space<vmem>>, vector<32x128xf32>
    %c0_117 = arith.constant 0 : index
    %c0_118 = arith.constant 0 : index
    %477 = vector.load %arg18[%c0_117, %c0_118] : memref<32x128xf32, #tpu.memory_space<vmem>>, vector<32x128xf32>
    %cst_119 = arith.constant 0.000000e+00 : f32
    %478 = vector.broadcast %cst_119 : f32 to vector<2x32xf32>
    %479 = vector.extract_strided_slice %470 {offsets = [0, 0], sizes = [2, 128], strides = [1, 1]} : vector<16x128xf32> to vector<2x128xf32>
    %cst_120 = arith.constant dense<0.000000e+00> : vector<2x128xf32>
    %480 = tpu.matmul %478, %476, %cst_120 {dimension_numbers = #tpu.dot_dimension_numbers<[1], [0], [0], [1], [0, 0, 1, 1], [], []>} : vector<2x32xf32>, vector<32x128xf32>, vector<2x128xf32> -> vector<2x128xf32>
    %481 = arith.addf %479, %480 : vector<2x128xf32>
    %482 = arith.negf %481 : vector<2x128xf32>
    %483 = math.exp %482 : vector<2x128xf32>
    %cst_121 = arith.constant 1.000000e+00 : f32
    %484 = vector.broadcast %cst_121 : f32 to vector<2x128xf32>
    %485 = arith.addf %484, %483 : vector<2x128xf32>
    %486 = arith.divf %484, %485 : vector<2x128xf32>
    %487 = math.tanh %481 : vector<2x128xf32>
    %488 = vector.extract_strided_slice %486 {offsets = [0, 0], sizes = [2, 32], strides = [1, 1]} : vector<2x128xf32> to vector<2x32xf32>
    %489 = vector.extract_strided_slice %486 {offsets = [0, 32], sizes = [2, 32], strides = [1, 1]} : vector<2x128xf32> to vector<2x32xf32>
    %490 = vector.extract_strided_slice %487 {offsets = [0, 64], sizes = [2, 32], strides = [1, 1]} : vector<2x128xf32> to vector<2x32xf32>
    %491 = vector.extract_strided_slice %486 {offsets = [0, 96], sizes = [2, 32], strides = [1, 1]} : vector<2x128xf32> to vector<2x32xf32>
    %492 = arith.mulf %489, %478 : vector<2x32xf32>
    %493 = arith.mulf %488, %490 : vector<2x32xf32>
    %494 = arith.addf %492, %493 : vector<2x32xf32>
    %495 = math.tanh %494 : vector<2x32xf32>
    %496 = arith.mulf %491, %495 : vector<2x32xf32>
    %497 = vector.extract_strided_slice %475 {offsets = [14, 0], sizes = [2, 128], strides = [1, 1]} : vector<16x128xf32> to vector<2x128xf32>
    %cst_122 = arith.constant dense<0.000000e+00> : vector<2x128xf32>
    %498 = tpu.matmul %478, %477, %cst_122 {dimension_numbers = #tpu.dot_dimension_numbers<[1], [0], [0], [1], [0, 0, 1, 1], [], []>} : vector<2x32xf32>, vector<32x128xf32>, vector<2x128xf32> -> vector<2x128xf32>
    %499 = arith.addf %497, %498 : vector<2x128xf32>
    %500 = arith.negf %499 : vector<2x128xf32>
    %501 = math.exp %500 : vector<2x128xf32>
    %cst_123 = arith.constant 1.000000e+00 : f32
    %502 = vector.broadcast %cst_123 : f32 to vector<2x128xf32>
    %503 = arith.addf %502, %501 : vector<2x128xf32>
    %504 = arith.divf %502, %503 : vector<2x128xf32>
    %505 = math.tanh %499 : vector<2x128xf32>
    %506 = vector.extract_strided_slice %504 {offsets = [0, 0], sizes = [2, 32], strides = [1, 1]} : vector<2x128xf32> to vector<2x32xf32>
    %507 = vector.extract_strided_slice %504 {offsets = [0, 32], sizes = [2, 32], strides = [1, 1]} : vector<2x128xf32> to vector<2x32xf32>
    %508 = vector.extract_strided_slice %505 {offsets = [0, 64], sizes = [2, 32], strides = [1, 1]} : vector<2x128xf32> to vector<2x32xf32>
    %509 = vector.extract_strided_slice %504 {offsets = [0, 96], sizes = [2, 32], strides = [1, 1]} : vector<2x128xf32> to vector<2x32xf32>
    %510 = arith.mulf %507, %478 : vector<2x32xf32>
    %511 = arith.mulf %506, %508 : vector<2x32xf32>
    %512 = arith.addf %510, %511 : vector<2x32xf32>
    %513 = math.tanh %512 : vector<2x32xf32>
    %514 = arith.mulf %509, %513 : vector<2x32xf32>
    %c0_124 = arith.constant 0 : index
    %c0_125 = arith.constant 0 : index
    %515 = vector.load %arg24[%c0_124, %c0_125] : memref<16x64xf32, #tpu.memory_space<vmem>>, vector<2x32xf32>
    tpu.vector_store %arg24[%c0_124, %c0_125], %496 {strides = array<i32>} : memref<16x64xf32, #tpu.memory_space<vmem>>, vector<2x32xf32>,
    %c14_126 = arith.constant 14 : index
    %c32_127 = arith.constant 32 : index
    %516 = vector.load %arg24[%c14_126, %c32_127] : memref<16x64xf32, #tpu.memory_space<vmem>>, vector<2x32xf32>
    tpu.vector_store %arg24[%c14_126, %c32_127], %514 {strides = array<i32>} : memref<16x64xf32, #tpu.memory_space<vmem>>, vector<2x32xf32>,
    %517 = vector.extract_strided_slice %470 {offsets = [2, 0], sizes = [2, 128], strides = [1, 1]} : vector<16x128xf32> to vector<2x128xf32>
    %cst_128 = arith.constant dense<0.000000e+00> : vector<2x128xf32>
    %518 = tpu.matmul %496, %476, %cst_128 {dimension_numbers = #tpu.dot_dimension_numbers<[1], [0], [0], [1], [0, 0, 1, 1], [], []>} : vector<2x32xf32>, vector<32x128xf32>, vector<2x128xf32> -> vector<2x128xf32>
    %519 = arith.addf %517, %518 : vector<2x128xf32>
    %520 = arith.negf %519 : vector<2x128xf32>
    %521 = math.exp %520 : vector<2x128xf32>
    %cst_129 = arith.constant 1.000000e+00 : f32
    %522 = vector.broadcast %cst_129 : f32 to vector<2x128xf32>
    %523 = arith.addf %522, %521 : vector<2x128xf32>
    %524 = arith.divf %522, %523 : vector<2x128xf32>
    %525 = math.tanh %519 : vector<2x128xf32>
    %526 = vector.extract_strided_slice %524 {offsets = [0, 0], sizes = [2, 32], strides = [1, 1]} : vector<2x128xf32> to vector<2x32xf32>
    %527 = vector.extract_strided_slice %524 {offsets = [0, 32], sizes = [2, 32], strides = [1, 1]} : vector<2x128xf32> to vector<2x32xf32>
    %528 = vector.extract_strided_slice %525 {offsets = [0, 64], sizes = [2, 32], strides = [1, 1]} : vector<2x128xf32> to vector<2x32xf32>
    %529 = vector.extract_strided_slice %524 {offsets = [0, 96], sizes = [2, 32], strides = [1, 1]} : vector<2x128xf32> to vector<2x32xf32>
    %530 = arith.mulf %527, %494 : vector<2x32xf32>
    %531 = arith.mulf %526, %528 : vector<2x32xf32>
    %532 = arith.addf %530, %531 : vector<2x32xf32>
    %533 = math.tanh %532 : vector<2x32xf32>
    %534 = arith.mulf %529, %533 : vector<2x32xf32>
    %535 = vector.extract_strided_slice %475 {offsets = [12, 0], sizes = [2, 128], strides = [1, 1]} : vector<16x128xf32> to vector<2x128xf32>
    %cst_130 = arith.constant dense<0.000000e+00> : vector<2x128xf32>
    %536 = tpu.matmul %514, %477, %cst_130 {dimension_numbers = #tpu.dot_dimension_numbers<[1], [0], [0], [1], [0, 0, 1, 1], [], []>} : vector<2x32xf32>, vector<32x128xf32>, vector<2x128xf32> -> vector<2x128xf32>
    %537 = arith.addf %535, %536 : vector<2x128xf32>
    %538 = arith.negf %537 : vector<2x128xf32>
    %539 = math.exp %538 : vector<2x128xf32>
    %cst_131 = arith.constant 1.000000e+00 : f32
    %540 = vector.broadcast %cst_131 : f32 to vector<2x128xf32>
    %541 = arith.addf %540, %539 : vector<2x128xf32>
    %542 = arith.divf %540, %541 : vector<2x128xf32>
    %543 = math.tanh %537 : vector<2x128xf32>
    %544 = vector.extract_strided_slice %542 {offsets = [0, 0], sizes = [2, 32], strides = [1, 1]} : vector<2x128xf32> to vector<2x32xf32>
    %545 = vector.extract_strided_slice %542 {offsets = [0, 32], sizes = [2, 32], strides = [1, 1]} : vector<2x128xf32> to vector<2x32xf32>
    %546 = vector.extract_strided_slice %543 {offsets = [0, 64], sizes = [2, 32], strides = [1, 1]} : vector<2x128xf32> to vector<2x32xf32>
    %547 = vector.extract_strided_slice %542 {offsets = [0, 96], sizes = [2, 32], strides = [1, 1]} : vector<2x128xf32> to vector<2x32xf32>
    %548 = arith.mulf %545, %512 : vector<2x32xf32>
    %549 = arith.mulf %544, %546 : vector<2x32xf32>
    %550 = arith.addf %548, %549 : vector<2x32xf32>
    %551 = math.tanh %550 : vector<2x32xf32>
    %552 = arith.mulf %547, %551 : vector<2x32xf32>
    %c2_132 = arith.constant 2 : index
    %c0_133 = arith.constant 0 : index
    %553 = vector.load %arg24[%c2_132, %c0_133] : memref<16x64xf32, #tpu.memory_space<vmem>>, vector<2x32xf32>
    tpu.vector_store %arg24[%c2_132, %c0_133], %534 {strides = array<i32>} : memref<16x64xf32, #tpu.memory_space<vmem>>, vector<2x32xf32>,
    %c12_134 = arith.constant 12 : index
    %c32_135 = arith.constant 32 : index
    %554 = vector.load %arg24[%c12_134, %c32_135] : memref<16x64xf32, #tpu.memory_space<vmem>>, vector<2x32xf32>
    tpu.vector_store %arg24[%c12_134, %c32_135], %552 {strides = array<i32>} : memref<16x64xf32, #tpu.memory_space<vmem>>, vector<2x32xf32>,
    %555 = vector.extract_strided_slice %470 {offsets = [4, 0], sizes = [2, 128], strides = [1, 1]} : vector<16x128xf32> to vector<2x128xf32>
    %cst_136 = arith.constant dense<0.000000e+00> : vector<2x128xf32>
    %556 = tpu.matmul %534, %476, %cst_136 {dimension_numbers = #tpu.dot_dimension_numbers<[1], [0], [0], [1], [0, 0, 1, 1], [], []>} : vector<2x32xf32>, vector<32x128xf32>, vector<2x128xf32> -> vector<2x128xf32>
    %557 = arith.addf %555, %556 : vector<2x128xf32>
    %558 = arith.negf %557 : vector<2x128xf32>
    %559 = math.exp %558 : vector<2x128xf32>
    %cst_137 = arith.constant 1.000000e+00 : f32
    %560 = vector.broadcast %cst_137 : f32 to vector<2x128xf32>
    %561 = arith.addf %560, %559 : vector<2x128xf32>
    %562 = arith.divf %560, %561 : vector<2x128xf32>
    %563 = math.tanh %557 : vector<2x128xf32>
    %564 = vector.extract_strided_slice %562 {offsets = [0, 0], sizes = [2, 32], strides = [1, 1]} : vector<2x128xf32> to vector<2x32xf32>
    %565 = vector.extract_strided_slice %562 {offsets = [0, 32], sizes = [2, 32], strides = [1, 1]} : vector<2x128xf32> to vector<2x32xf32>
    %566 = vector.extract_strided_slice %563 {offsets = [0, 64], sizes = [2, 32], strides = [1, 1]} : vector<2x128xf32> to vector<2x32xf32>
    %567 = vector.extract_strided_slice %562 {offsets = [0, 96], sizes = [2, 32], strides = [1, 1]} : vector<2x128xf32> to vector<2x32xf32>
    %568 = arith.mulf %565, %532 : vector<2x32xf32>
    %569 = arith.mulf %564, %566 : vector<2x32xf32>
    %570 = arith.addf %568, %569 : vector<2x32xf32>
    %571 = math.tanh %570 : vector<2x32xf32>
    %572 = arith.mulf %567, %571 : vector<2x32xf32>
    %573 = vector.extract_strided_slice %475 {offsets = [10, 0], sizes = [2, 128], strides = [1, 1]} : vector<16x128xf32> to vector<2x128xf32>
    %cst_138 = arith.constant dense<0.000000e+00> : vector<2x128xf32>
    %574 = tpu.matmul %552, %477, %cst_138 {dimension_numbers = #tpu.dot_dimension_numbers<[1], [0], [0], [1], [0, 0, 1, 1], [], []>} : vector<2x32xf32>, vector<32x128xf32>, vector<2x128xf32> -> vector<2x128xf32>
    %575 = arith.addf %573, %574 : vector<2x128xf32>
    %576 = arith.negf %575 : vector<2x128xf32>
    %577 = math.exp %576 : vector<2x128xf32>
    %cst_139 = arith.constant 1.000000e+00 : f32
    %578 = vector.broadcast %cst_139 : f32 to vector<2x128xf32>
    %579 = arith.addf %578, %577 : vector<2x128xf32>
    %580 = arith.divf %578, %579 : vector<2x128xf32>
    %581 = math.tanh %575 : vector<2x128xf32>
    %582 = vector.extract_strided_slice %580 {offsets = [0, 0], sizes = [2, 32], strides = [1, 1]} : vector<2x128xf32> to vector<2x32xf32>
    %583 = vector.extract_strided_slice %580 {offsets = [0, 32], sizes = [2, 32], strides = [1, 1]} : vector<2x128xf32> to vector<2x32xf32>
    %584 = vector.extract_strided_slice %581 {offsets = [0, 64], sizes = [2, 32], strides = [1, 1]} : vector<2x128xf32> to vector<2x32xf32>
    %585 = vector.extract_strided_slice %580 {offsets = [0, 96], sizes = [2, 32], strides = [1, 1]} : vector<2x128xf32> to vector<2x32xf32>
    %586 = arith.mulf %583, %550 : vector<2x32xf32>
    %587 = arith.mulf %582, %584 : vector<2x32xf32>
    %588 = arith.addf %586, %587 : vector<2x32xf32>
    %589 = math.tanh %588 : vector<2x32xf32>
    %590 = arith.mulf %585, %589 : vector<2x32xf32>
    %c4_140 = arith.constant 4 : index
    %c0_141 = arith.constant 0 : index
    %591 = vector.load %arg24[%c4_140, %c0_141] : memref<16x64xf32, #tpu.memory_space<vmem>>, vector<2x32xf32>
    tpu.vector_store %arg24[%c4_140, %c0_141], %572 {strides = array<i32>} : memref<16x64xf32, #tpu.memory_space<vmem>>, vector<2x32xf32>,
    %c10_142 = arith.constant 10 : index
    %c32_143 = arith.constant 32 : index
    %592 = vector.load %arg24[%c10_142, %c32_143] : memref<16x64xf32, #tpu.memory_space<vmem>>, vector<2x32xf32>
    tpu.vector_store %arg24[%c10_142, %c32_143], %590 {strides = array<i32>} : memref<16x64xf32, #tpu.memory_space<vmem>>, vector<2x32xf32>,
    %593 = vector.extract_strided_slice %470 {offsets = [6, 0], sizes = [2, 128], strides = [1, 1]} : vector<16x128xf32> to vector<2x128xf32>
    %cst_144 = arith.constant dense<0.000000e+00> : vector<2x128xf32>
    %594 = tpu.matmul %572, %476, %cst_144 {dimension_numbers = #tpu.dot_dimension_numbers<[1], [0], [0], [1], [0, 0, 1, 1], [], []>} : vector<2x32xf32>, vector<32x128xf32>, vector<2x128xf32> -> vector<2x128xf32>
    %595 = arith.addf %593, %594 : vector<2x128xf32>
    %596 = arith.negf %595 : vector<2x128xf32>
    %597 = math.exp %596 : vector<2x128xf32>
    %cst_145 = arith.constant 1.000000e+00 : f32
    %598 = vector.broadcast %cst_145 : f32 to vector<2x128xf32>
    %599 = arith.addf %598, %597 : vector<2x128xf32>
    %600 = arith.divf %598, %599 : vector<2x128xf32>
    %601 = math.tanh %595 : vector<2x128xf32>
    %602 = vector.extract_strided_slice %600 {offsets = [0, 0], sizes = [2, 32], strides = [1, 1]} : vector<2x128xf32> to vector<2x32xf32>
    %603 = vector.extract_strided_slice %600 {offsets = [0, 32], sizes = [2, 32], strides = [1, 1]} : vector<2x128xf32> to vector<2x32xf32>
    %604 = vector.extract_strided_slice %601 {offsets = [0, 64], sizes = [2, 32], strides = [1, 1]} : vector<2x128xf32> to vector<2x32xf32>
    %605 = vector.extract_strided_slice %600 {offsets = [0, 96], sizes = [2, 32], strides = [1, 1]} : vector<2x128xf32> to vector<2x32xf32>
    %606 = arith.mulf %603, %570 : vector<2x32xf32>
    %607 = arith.mulf %602, %604 : vector<2x32xf32>
    %608 = arith.addf %606, %607 : vector<2x32xf32>
    %609 = math.tanh %608 : vector<2x32xf32>
    %610 = arith.mulf %605, %609 : vector<2x32xf32>
    %611 = vector.extract_strided_slice %475 {offsets = [8, 0], sizes = [2, 128], strides = [1, 1]} : vector<16x128xf32> to vector<2x128xf32>
    %cst_146 = arith.constant dense<0.000000e+00> : vector<2x128xf32>
    %612 = tpu.matmul %590, %477, %cst_146 {dimension_numbers = #tpu.dot_dimension_numbers<[1], [0], [0], [1], [0, 0, 1, 1], [], []>} : vector<2x32xf32>, vector<32x128xf32>, vector<2x128xf32> -> vector<2x128xf32>
    %613 = arith.addf %611, %612 : vector<2x128xf32>
    %614 = arith.negf %613 : vector<2x128xf32>
    %615 = math.exp %614 : vector<2x128xf32>
    %cst_147 = arith.constant 1.000000e+00 : f32
    %616 = vector.broadcast %cst_147 : f32 to vector<2x128xf32>
    %617 = arith.addf %616, %615 : vector<2x128xf32>
    %618 = arith.divf %616, %617 : vector<2x128xf32>
    %619 = math.tanh %613 : vector<2x128xf32>
    %620 = vector.extract_strided_slice %618 {offsets = [0, 0], sizes = [2, 32], strides = [1, 1]} : vector<2x128xf32> to vector<2x32xf32>
    %621 = vector.extract_strided_slice %618 {offsets = [0, 32], sizes = [2, 32], strides = [1, 1]} : vector<2x128xf32> to vector<2x32xf32>
    %622 = vector.extract_strided_slice %619 {offsets = [0, 64], sizes = [2, 32], strides = [1, 1]} : vector<2x128xf32> to vector<2x32xf32>
    %623 = vector.extract_strided_slice %618 {offsets = [0, 96], sizes = [2, 32], strides = [1, 1]} : vector<2x128xf32> to vector<2x32xf32>
    %624 = arith.mulf %621, %588 : vector<2x32xf32>
    %625 = arith.mulf %620, %622 : vector<2x32xf32>
    %626 = arith.addf %624, %625 : vector<2x32xf32>
    %627 = math.tanh %626 : vector<2x32xf32>
    %628 = arith.mulf %623, %627 : vector<2x32xf32>
    %c6_148 = arith.constant 6 : index
    %c0_149 = arith.constant 0 : index
    %629 = vector.load %arg24[%c6_148, %c0_149] : memref<16x64xf32, #tpu.memory_space<vmem>>, vector<2x32xf32>
    tpu.vector_store %arg24[%c6_148, %c0_149], %610 {strides = array<i32>} : memref<16x64xf32, #tpu.memory_space<vmem>>, vector<2x32xf32>,
    %c8_150 = arith.constant 8 : index
    %c32_151 = arith.constant 32 : index
    %630 = vector.load %arg24[%c8_150, %c32_151] : memref<16x64xf32, #tpu.memory_space<vmem>>, vector<2x32xf32>
    tpu.vector_store %arg24[%c8_150, %c32_151], %628 {strides = array<i32>} : memref<16x64xf32, #tpu.memory_space<vmem>>, vector<2x32xf32>,
    %631 = vector.extract_strided_slice %470 {offsets = [8, 0], sizes = [2, 128], strides = [1, 1]} : vector<16x128xf32> to vector<2x128xf32>
    %cst_152 = arith.constant dense<0.000000e+00> : vector<2x128xf32>
    %632 = tpu.matmul %610, %476, %cst_152 {dimension_numbers = #tpu.dot_dimension_numbers<[1], [0], [0], [1], [0, 0, 1, 1], [], []>} : vector<2x32xf32>, vector<32x128xf32>, vector<2x128xf32> -> vector<2x128xf32>
    %633 = arith.addf %631, %632 : vector<2x128xf32>
    %634 = arith.negf %633 : vector<2x128xf32>
    %635 = math.exp %634 : vector<2x128xf32>
    %cst_153 = arith.constant 1.000000e+00 : f32
    %636 = vector.broadcast %cst_153 : f32 to vector<2x128xf32>
    %637 = arith.addf %636, %635 : vector<2x128xf32>
    %638 = arith.divf %636, %637 : vector<2x128xf32>
    %639 = math.tanh %633 : vector<2x128xf32>
    %640 = vector.extract_strided_slice %638 {offsets = [0, 0], sizes = [2, 32], strides = [1, 1]} : vector<2x128xf32> to vector<2x32xf32>
    %641 = vector.extract_strided_slice %638 {offsets = [0, 32], sizes = [2, 32], strides = [1, 1]} : vector<2x128xf32> to vector<2x32xf32>
    %642 = vector.extract_strided_slice %639 {offsets = [0, 64], sizes = [2, 32], strides = [1, 1]} : vector<2x128xf32> to vector<2x32xf32>
    %643 = vector.extract_strided_slice %638 {offsets = [0, 96], sizes = [2, 32], strides = [1, 1]} : vector<2x128xf32> to vector<2x32xf32>
    %644 = arith.mulf %641, %608 : vector<2x32xf32>
    %645 = arith.mulf %640, %642 : vector<2x32xf32>
    %646 = arith.addf %644, %645 : vector<2x32xf32>
    %647 = math.tanh %646 : vector<2x32xf32>
    %648 = arith.mulf %643, %647 : vector<2x32xf32>
    %649 = vector.extract_strided_slice %475 {offsets = [6, 0], sizes = [2, 128], strides = [1, 1]} : vector<16x128xf32> to vector<2x128xf32>
    %cst_154 = arith.constant dense<0.000000e+00> : vector<2x128xf32>
    %650 = tpu.matmul %628, %477, %cst_154 {dimension_numbers = #tpu.dot_dimension_numbers<[1], [0], [0], [1], [0, 0, 1, 1], [], []>} : vector<2x32xf32>, vector<32x128xf32>, vector<2x128xf32> -> vector<2x128xf32>
    %651 = arith.addf %649, %650 : vector<2x128xf32>
    %652 = arith.negf %651 : vector<2x128xf32>
    %653 = math.exp %652 : vector<2x128xf32>
    %cst_155 = arith.constant 1.000000e+00 : f32
    %654 = vector.broadcast %cst_155 : f32 to vector<2x128xf32>
    %655 = arith.addf %654, %653 : vector<2x128xf32>
    %656 = arith.divf %654, %655 : vector<2x128xf32>
    %657 = math.tanh %651 : vector<2x128xf32>
    %658 = vector.extract_strided_slice %656 {offsets = [0, 0], sizes = [2, 32], strides = [1, 1]} : vector<2x128xf32> to vector<2x32xf32>
    %659 = vector.extract_strided_slice %656 {offsets = [0, 32], sizes = [2, 32], strides = [1, 1]} : vector<2x128xf32> to vector<2x32xf32>
    %660 = vector.extract_strided_slice %657 {offsets = [0, 64], sizes = [2, 32], strides = [1, 1]} : vector<2x128xf32> to vector<2x32xf32>
    %661 = vector.extract_strided_slice %656 {offsets = [0, 96], sizes = [2, 32], strides = [1, 1]} : vector<2x128xf32> to vector<2x32xf32>
    %662 = arith.mulf %659, %626 : vector<2x32xf32>
    %663 = arith.mulf %658, %660 : vector<2x32xf32>
    %664 = arith.addf %662, %663 : vector<2x32xf32>
    %665 = math.tanh %664 : vector<2x32xf32>
    %666 = arith.mulf %661, %665 : vector<2x32xf32>
    %c8_156 = arith.constant 8 : index
    %c0_157 = arith.constant 0 : index
    %667 = vector.load %arg24[%c8_156, %c0_157] : memref<16x64xf32, #tpu.memory_space<vmem>>, vector<2x32xf32>
    tpu.vector_store %arg24[%c8_156, %c0_157], %648 {strides = array<i32>} : memref<16x64xf32, #tpu.memory_space<vmem>>, vector<2x32xf32>,
    %c6_158 = arith.constant 6 : index
    %c32_159 = arith.constant 32 : index
    %668 = vector.load %arg24[%c6_158, %c32_159] : memref<16x64xf32, #tpu.memory_space<vmem>>, vector<2x32xf32>
    tpu.vector_store %arg24[%c6_158, %c32_159], %666 {strides = array<i32>} : memref<16x64xf32, #tpu.memory_space<vmem>>, vector<2x32xf32>,
    %669 = vector.extract_strided_slice %470 {offsets = [10, 0], sizes = [2, 128], strides = [1, 1]} : vector<16x128xf32> to vector<2x128xf32>
    %cst_160 = arith.constant dense<0.000000e+00> : vector<2x128xf32>
    %670 = tpu.matmul %648, %476, %cst_160 {dimension_numbers = #tpu.dot_dimension_numbers<[1], [0], [0], [1], [0, 0, 1, 1], [], []>} : vector<2x32xf32>, vector<32x128xf32>, vector<2x128xf32> -> vector<2x128xf32>
    %671 = arith.addf %669, %670 : vector<2x128xf32>
    %672 = arith.negf %671 : vector<2x128xf32>
    %673 = math.exp %672 : vector<2x128xf32>
    %cst_161 = arith.constant 1.000000e+00 : f32
    %674 = vector.broadcast %cst_161 : f32 to vector<2x128xf32>
    %675 = arith.addf %674, %673 : vector<2x128xf32>
    %676 = arith.divf %674, %675 : vector<2x128xf32>
    %677 = math.tanh %671 : vector<2x128xf32>
    %678 = vector.extract_strided_slice %676 {offsets = [0, 0], sizes = [2, 32], strides = [1, 1]} : vector<2x128xf32> to vector<2x32xf32>
    %679 = vector.extract_strided_slice %676 {offsets = [0, 32], sizes = [2, 32], strides = [1, 1]} : vector<2x128xf32> to vector<2x32xf32>
    %680 = vector.extract_strided_slice %677 {offsets = [0, 64], sizes = [2, 32], strides = [1, 1]} : vector<2x128xf32> to vector<2x32xf32>
    %681 = vector.extract_strided_slice %676 {offsets = [0, 96], sizes = [2, 32], strides = [1, 1]} : vector<2x128xf32> to vector<2x32xf32>
    %682 = arith.mulf %679, %646 : vector<2x32xf32>
    %683 = arith.mulf %678, %680 : vector<2x32xf32>
    %684 = arith.addf %682, %683 : vector<2x32xf32>
    %685 = math.tanh %684 : vector<2x32xf32>
    %686 = arith.mulf %681, %685 : vector<2x32xf32>
    %687 = vector.extract_strided_slice %475 {offsets = [4, 0], sizes = [2, 128], strides = [1, 1]} : vector<16x128xf32> to vector<2x128xf32>
    %cst_162 = arith.constant dense<0.000000e+00> : vector<2x128xf32>
    %688 = tpu.matmul %666, %477, %cst_162 {dimension_numbers = #tpu.dot_dimension_numbers<[1], [0], [0], [1], [0, 0, 1, 1], [], []>} : vector<2x32xf32>, vector<32x128xf32>, vector<2x128xf32> -> vector<2x128xf32>
    %689 = arith.addf %687, %688 : vector<2x128xf32>
    %690 = arith.negf %689 : vector<2x128xf32>
    %691 = math.exp %690 : vector<2x128xf32>
    %cst_163 = arith.constant 1.000000e+00 : f32
    %692 = vector.broadcast %cst_163 : f32 to vector<2x128xf32>
    %693 = arith.addf %692, %691 : vector<2x128xf32>
    %694 = arith.divf %692, %693 : vector<2x128xf32>
    %695 = math.tanh %689 : vector<2x128xf32>
    %696 = vector.extract_strided_slice %694 {offsets = [0, 0], sizes = [2, 32], strides = [1, 1]} : vector<2x128xf32> to vector<2x32xf32>
    %697 = vector.extract_strided_slice %694 {offsets = [0, 32], sizes = [2, 32], strides = [1, 1]} : vector<2x128xf32> to vector<2x32xf32>
    %698 = vector.extract_strided_slice %695 {offsets = [0, 64], sizes = [2, 32], strides = [1, 1]} : vector<2x128xf32> to vector<2x32xf32>
    %699 = vector.extract_strided_slice %694 {offsets = [0, 96], sizes = [2, 32], strides = [1, 1]} : vector<2x128xf32> to vector<2x32xf32>
    %700 = arith.mulf %697, %664 : vector<2x32xf32>
    %701 = arith.mulf %696, %698 : vector<2x32xf32>
    %702 = arith.addf %700, %701 : vector<2x32xf32>
    %703 = math.tanh %702 : vector<2x32xf32>
    %704 = arith.mulf %699, %703 : vector<2x32xf32>
    %c10_164 = arith.constant 10 : index
    %c0_165 = arith.constant 0 : index
    %705 = vector.load %arg24[%c10_164, %c0_165] : memref<16x64xf32, #tpu.memory_space<vmem>>, vector<2x32xf32>
    tpu.vector_store %arg24[%c10_164, %c0_165], %686 {strides = array<i32>} : memref<16x64xf32, #tpu.memory_space<vmem>>, vector<2x32xf32>,
    %c4_166 = arith.constant 4 : index
    %c32_167 = arith.constant 32 : index
    %706 = vector.load %arg24[%c4_166, %c32_167] : memref<16x64xf32, #tpu.memory_space<vmem>>, vector<2x32xf32>
    tpu.vector_store %arg24[%c4_166, %c32_167], %704 {strides = array<i32>} : memref<16x64xf32, #tpu.memory_space<vmem>>, vector<2x32xf32>,
    %707 = vector.extract_strided_slice %470 {offsets = [12, 0], sizes = [2, 128], strides = [1, 1]} : vector<16x128xf32> to vector<2x128xf32>
    %cst_168 = arith.constant dense<0.000000e+00> : vector<2x128xf32>
    %708 = tpu.matmul %686, %476, %cst_168 {dimension_numbers = #tpu.dot_dimension_numbers<[1], [0], [0], [1], [0, 0, 1, 1], [], []>} : vector<2x32xf32>, vector<32x128xf32>, vector<2x128xf32> -> vector<2x128xf32>
    %709 = arith.addf %707, %708 : vector<2x128xf32>
    %710 = arith.negf %709 : vector<2x128xf32>
    %711 = math.exp %710 : vector<2x128xf32>
    %cst_169 = arith.constant 1.000000e+00 : f32
    %712 = vector.broadcast %cst_169 : f32 to vector<2x128xf32>
    %713 = arith.addf %712, %711 : vector<2x128xf32>
    %714 = arith.divf %712, %713 : vector<2x128xf32>
    %715 = math.tanh %709 : vector<2x128xf32>
    %716 = vector.extract_strided_slice %714 {offsets = [0, 0], sizes = [2, 32], strides = [1, 1]} : vector<2x128xf32> to vector<2x32xf32>
    %717 = vector.extract_strided_slice %714 {offsets = [0, 32], sizes = [2, 32], strides = [1, 1]} : vector<2x128xf32> to vector<2x32xf32>
    %718 = vector.extract_strided_slice %715 {offsets = [0, 64], sizes = [2, 32], strides = [1, 1]} : vector<2x128xf32> to vector<2x32xf32>
    %719 = vector.extract_strided_slice %714 {offsets = [0, 96], sizes = [2, 32], strides = [1, 1]} : vector<2x128xf32> to vector<2x32xf32>
    %720 = arith.mulf %717, %684 : vector<2x32xf32>
    %721 = arith.mulf %716, %718 : vector<2x32xf32>
    %722 = arith.addf %720, %721 : vector<2x32xf32>
    %723 = math.tanh %722 : vector<2x32xf32>
    %724 = arith.mulf %719, %723 : vector<2x32xf32>
    %725 = vector.extract_strided_slice %475 {offsets = [2, 0], sizes = [2, 128], strides = [1, 1]} : vector<16x128xf32> to vector<2x128xf32>
    %cst_170 = arith.constant dense<0.000000e+00> : vector<2x128xf32>
    %726 = tpu.matmul %704, %477, %cst_170 {dimension_numbers = #tpu.dot_dimension_numbers<[1], [0], [0], [1], [0, 0, 1, 1], [], []>} : vector<2x32xf32>, vector<32x128xf32>, vector<2x128xf32> -> vector<2x128xf32>
    %727 = arith.addf %725, %726 : vector<2x128xf32>
    %728 = arith.negf %727 : vector<2x128xf32>
    %729 = math.exp %728 : vector<2x128xf32>
    %cst_171 = arith.constant 1.000000e+00 : f32
    %730 = vector.broadcast %cst_171 : f32 to vector<2x128xf32>
    %731 = arith.addf %730, %729 : vector<2x128xf32>
    %732 = arith.divf %730, %731 : vector<2x128xf32>
    %733 = math.tanh %727 : vector<2x128xf32>
    %734 = vector.extract_strided_slice %732 {offsets = [0, 0], sizes = [2, 32], strides = [1, 1]} : vector<2x128xf32> to vector<2x32xf32>
    %735 = vector.extract_strided_slice %732 {offsets = [0, 32], sizes = [2, 32], strides = [1, 1]} : vector<2x128xf32> to vector<2x32xf32>
    %736 = vector.extract_strided_slice %733 {offsets = [0, 64], sizes = [2, 32], strides = [1, 1]} : vector<2x128xf32> to vector<2x32xf32>
    %737 = vector.extract_strided_slice %732 {offsets = [0, 96], sizes = [2, 32], strides = [1, 1]} : vector<2x128xf32> to vector<2x32xf32>
    %738 = arith.mulf %735, %702 : vector<2x32xf32>
    %739 = arith.mulf %734, %736 : vector<2x32xf32>
    %740 = arith.addf %738, %739 : vector<2x32xf32>
    %741 = math.tanh %740 : vector<2x32xf32>
    %742 = arith.mulf %737, %741 : vector<2x32xf32>
    %c12_172 = arith.constant 12 : index
    %c0_173 = arith.constant 0 : index
    %743 = vector.load %arg24[%c12_172, %c0_173] : memref<16x64xf32, #tpu.memory_space<vmem>>, vector<2x32xf32>
    tpu.vector_store %arg24[%c12_172, %c0_173], %724 {strides = array<i32>} : memref<16x64xf32, #tpu.memory_space<vmem>>, vector<2x32xf32>,
    %c2_174 = arith.constant 2 : index
    %c32_175 = arith.constant 32 : index
    %744 = vector.load %arg24[%c2_174, %c32_175] : memref<16x64xf32, #tpu.memory_space<vmem>>, vector<2x32xf32>
    tpu.vector_store %arg24[%c2_174, %c32_175], %742 {strides = array<i32>} : memref<16x64xf32, #tpu.memory_space<vmem>>, vector<2x32xf32>,
    %745 = vector.extract_strided_slice %470 {offsets = [14, 0], sizes = [2, 128], strides = [1, 1]} : vector<16x128xf32> to vector<2x128xf32>
    %cst_176 = arith.constant dense<0.000000e+00> : vector<2x128xf32>
    %746 = tpu.matmul %724, %476, %cst_176 {dimension_numbers = #tpu.dot_dimension_numbers<[1], [0], [0], [1], [0, 0, 1, 1], [], []>} : vector<2x32xf32>, vector<32x128xf32>, vector<2x128xf32> -> vector<2x128xf32>
    %747 = arith.addf %745, %746 : vector<2x128xf32>
    %748 = arith.negf %747 : vector<2x128xf32>
    %749 = math.exp %748 : vector<2x128xf32>
    %cst_177 = arith.constant 1.000000e+00 : f32
    %750 = vector.broadcast %cst_177 : f32 to vector<2x128xf32>
    %751 = arith.addf %750, %749 : vector<2x128xf32>
    %752 = arith.divf %750, %751 : vector<2x128xf32>
    %753 = math.tanh %747 : vector<2x128xf32>
    %754 = vector.extract_strided_slice %752 {offsets = [0, 0], sizes = [2, 32], strides = [1, 1]} : vector<2x128xf32> to vector<2x32xf32>
    %755 = vector.extract_strided_slice %752 {offsets = [0, 32], sizes = [2, 32], strides = [1, 1]} : vector<2x128xf32> to vector<2x32xf32>
    %756 = vector.extract_strided_slice %753 {offsets = [0, 64], sizes = [2, 32], strides = [1, 1]} : vector<2x128xf32> to vector<2x32xf32>
    %757 = vector.extract_strided_slice %752 {offsets = [0, 96], sizes = [2, 32], strides = [1, 1]} : vector<2x128xf32> to vector<2x32xf32>
    %758 = arith.mulf %755, %722 : vector<2x32xf32>
    %759 = arith.mulf %754, %756 : vector<2x32xf32>
    %760 = arith.addf %758, %759 : vector<2x32xf32>
    %761 = math.tanh %760 : vector<2x32xf32>
    %762 = arith.mulf %757, %761 : vector<2x32xf32>
    %763 = vector.extract_strided_slice %475 {offsets = [0, 0], sizes = [2, 128], strides = [1, 1]} : vector<16x128xf32> to vector<2x128xf32>
    %cst_178 = arith.constant dense<0.000000e+00> : vector<2x128xf32>
    %764 = tpu.matmul %742, %477, %cst_178 {dimension_numbers = #tpu.dot_dimension_numbers<[1], [0], [0], [1], [0, 0, 1, 1], [], []>} : vector<2x32xf32>, vector<32x128xf32>, vector<2x128xf32> -> vector<2x128xf32>
    %765 = arith.addf %763, %764 : vector<2x128xf32>
    %766 = arith.negf %765 : vector<2x128xf32>
    %767 = math.exp %766 : vector<2x128xf32>
    %cst_179 = arith.constant 1.000000e+00 : f32
    %768 = vector.broadcast %cst_179 : f32 to vector<2x128xf32>
    %769 = arith.addf %768, %767 : vector<2x128xf32>
    %770 = arith.divf %768, %769 : vector<2x128xf32>
    %771 = math.tanh %765 : vector<2x128xf32>
    %772 = vector.extract_strided_slice %770 {offsets = [0, 0], sizes = [2, 32], strides = [1, 1]} : vector<2x128xf32> to vector<2x32xf32>
    %773 = vector.extract_strided_slice %770 {offsets = [0, 32], sizes = [2, 32], strides = [1, 1]} : vector<2x128xf32> to vector<2x32xf32>
    %774 = vector.extract_strided_slice %771 {offsets = [0, 64], sizes = [2, 32], strides = [1, 1]} : vector<2x128xf32> to vector<2x32xf32>
    %775 = vector.extract_strided_slice %770 {offsets = [0, 96], sizes = [2, 32], strides = [1, 1]} : vector<2x128xf32> to vector<2x32xf32>
    %776 = arith.mulf %773, %740 : vector<2x32xf32>
    %777 = arith.mulf %772, %774 : vector<2x32xf32>
    %778 = arith.addf %776, %777 : vector<2x32xf32>
    %779 = math.tanh %778 : vector<2x32xf32>
    %780 = arith.mulf %775, %779 : vector<2x32xf32>
    %c14_180 = arith.constant 14 : index
    %c0_181 = arith.constant 0 : index
    %781 = vector.load %arg24[%c14_180, %c0_181] : memref<16x64xf32, #tpu.memory_space<vmem>>, vector<2x32xf32>
    tpu.vector_store %arg24[%c14_180, %c0_181], %762 {strides = array<i32>} : memref<16x64xf32, #tpu.memory_space<vmem>>, vector<2x32xf32>,
    %c0_182 = arith.constant 0 : index
    %c32_183 = arith.constant 32 : index
    %782 = vector.load %arg24[%c0_182, %c32_183] : memref<16x64xf32, #tpu.memory_space<vmem>>, vector<2x32xf32>
    tpu.vector_store %arg24[%c0_182, %c32_183], %780 {strides = array<i32>} : memref<16x64xf32, #tpu.memory_space<vmem>>, vector<2x32xf32>,
    %c0_184 = arith.constant 0 : index
    %c0_185 = arith.constant 0 : index
    %783 = vector.load %arg24[%c0_184, %c0_185] : memref<16x64xf32, #tpu.memory_space<vmem>>, vector<16x64xf32>
    %c0_186 = arith.constant 0 : index
    %c0_187 = arith.constant 0 : index
    %784 = vector.load %arg20[%c0_186, %c0_187] : memref<64x128xf32, #tpu.memory_space<vmem>>, vector<64x128xf32>
    %cst_188 = arith.constant dense<0.000000e+00> : vector<16x128xf32>
    %785 = tpu.matmul %783, %784, %cst_188 {dimension_numbers = #tpu.dot_dimension_numbers<[1], [0], [0], [1], [0, 0, 1, 1], [], []>} : vector<16x64xf32>, vector<64x128xf32>, vector<16x128xf32> -> vector<16x128xf32>
    %c0_189 = arith.constant 0 : index
    %c0_190 = arith.constant 0 : index
    %786 = vector.load %arg21[%c0_189, %c0_190] : memref<1x128xf32, #tpu.memory_space<vmem>>, vector<1x128xf32>
    %787 = vector.broadcast %786 : vector<1x128xf32> to vector<16x128xf32>
    %788 = arith.addf %785, %787 : vector<16x128xf32>
    %c0_191 = arith.constant 0 : index
    %c0_192 = arith.constant 0 : index
    %789 = vector.load %arg22[%c0_191, %c0_192] : memref<16x128xf32, #tpu.memory_space<vmem>>, vector<16x128xf32>
    tpu.vector_store %arg22[%c0_191, %c0_192], %788 {strides = array<i32>} : memref<16x128xf32, #tpu.memory_space<vmem>>, vector<16x128xf32>,
    return
  }
}

</mosaic_0001>

<llo_original>
// kernel: forward.1
$region0: #{forward.1}
  #allocation0 [shape = 'u32[]', space=smem, size = 0x4, offset = 0x4, fixed_abs, tag = 'smem constant byte address 0x4 - core index']
  #allocation1 [shape = 'u32[72,128]{1,0:T(1,128)}', space=vmem, size = 0x9000, scoped, tag = 'internal scratch']
  #allocation2 [shape = 'f32[16,64]{1,0:T(8,128)}', space=vmem, size = 0x2000, scoped, tag = 'scratch operand']
  #allocation3 [shape = 'f32[16,64]{1,0:T(8,128)}', space=vmem, size = 0x2000, scoped, tag = 'scratch operand']
  %s0 = inlined_call_operand.vmem [shape: s32[96,1], index: 0, kind: input, shape index: {}]
  %s1 = inlined_call_operand.vmem [shape: f32[50,16], index: 1, kind: input, shape index: {}]
  %s2 = inlined_call_operand.hbm [shape: f32[16,64], index: 2, kind: input, shape index: {}]
  %s3 = inlined_call_operand.hbm [shape: f32[16,64], index: 3, kind: input, shape index: {}]
  %s4 = inlined_call_operand.vmem [shape: f32[1,64], index: 4, kind: input, shape index: {}]
  %s5 = inlined_call_operand.hbm [shape: f32[16,64], index: 5, kind: input, shape index: {}]
  %s6 = inlined_call_operand.hbm [shape: f32[16,64], index: 6, kind: input, shape index: {}]
  %s7 = inlined_call_operand.vmem [shape: f32[1,64], index: 7, kind: input, shape index: {}]
  %s8 = inlined_call_operand.vmem [shape: f32[32,128], index: 8, kind: input, shape index: {}]
  %s9 = inlined_call_operand.hbm [shape: f32[32,128], index: 9, kind: input, shape index: {}]
  %s10 = inlined_call_operand.vmem [shape: f32[1,128], index: 10, kind: input, shape index: {}]
  %s11 = inlined_call_operand.hbm [shape: f32[32,128], index: 11, kind: input, shape index: {}]
  %s12 = inlined_call_operand.hbm [shape: f32[32,128], index: 12, kind: input, shape index: {}]
  %s13 = inlined_call_operand.vmem [shape: f32[1,128], index: 13, kind: input, shape index: {}]
  %s14 = inlined_call_operand.vmem [shape: f32[64,128], index: 14, kind: input, shape index: {}]
  %s15 = inlined_call_operand.hbm [shape: f32[32,128], index: 15, kind: input, shape index: {}]
  %s16 = inlined_call_operand.vmem [shape: f32[1,128], index: 16, kind: input, shape index: {}]
  %s17 = inlined_call_operand.vmem [shape: f32[64,128], index: 17, kind: input, shape index: {}]
  %s18 = inlined_call_operand.hbm [shape: f32[32,128], index: 18, kind: input, shape index: {}]
  %s19 = inlined_call_operand.vmem [shape: f32[1,128], index: 19, kind: input, shape index: {}]
  %s20 = inlined_call_operand.hbm [shape: f32[64,128], index: 20, kind: input, shape index: {}]
  %s21 = inlined_call_operand.vmem [shape: f32[1,128], index: 21, kind: input, shape index: {}]
  %s22 = inlined_call_operand.hbm [shape: f32[16,128], index: 22, kind: output, shape index: {}]
  %s23 = sld [smem:[#allocation0]]
  $region138: #{forward.1} parent=0
    _
  %s25 = ssub.s32 1, %s23
  %s26 = scalar_select 0, %s25, %s23
  $region1: #{forward.1} parent=0
    #allocation4 [shape = 'u8[8192]{0}', space=vmem, size = 0x2000, scoped, tag = 'input window, operand 2, single buffered']
    #allocation5 [shape = 's32[1]{0}', space=sflag, size = 0x4, scoped, tag = 'scoped memory for forward.1']
    #allocation6 [shape = 's32[1]{0}', space=sflag, size = 0x4, scoped, tag = 'scoped memory for forward.1']
    #allocation7 [shape = 'u8[8192]{0}', space=vmem, size = 0x2000, scoped, tag = 'input window, operand 3, single buffered']
    #allocation8 [shape = 's32[1]{0}', space=sflag, size = 0x4, scoped, tag = 'scoped memory for forward.1']
    #allocation9 [shape = 'u8[8192]{0}', space=vmem, size = 0x2000, scoped, tag = 'input window, operand 5, single buffered']
    #allocation10 [shape = 'u8[8192]{0}', space=vmem, size = 0x2000, scoped, tag = 'input window, operand 6, single buffered']
    #allocation11 [shape = 's32[1]{0}', space=sflag, size = 0x4, scoped, tag = 'scoped memory for forward.1']
    #allocation12 [shape = 'u8[16384]{0}', space=vmem, size = 0x4000, scoped, tag = 'input window, operand 9, single buffered']
    #allocation13 [shape = 'u8[16384]{0}', space=vmem, size = 0x4000, scoped, tag = 'input window, operand 11, single buffered']
    #allocation14 [shape = 's32[1]{0}', space=sflag, size = 0x4, scoped, tag = 'scoped memory for forward.1']
    #allocation15 [shape = 'u8[16384]{0}', space=vmem, size = 0x4000, scoped, tag = 'input window, operand 12, single buffered']
    #allocation16 [shape = 'u8[16384]{0}', space=vmem, size = 0x4000, scoped, tag = 'input window, operand 15, single buffered']
    #allocation17 [shape = 's32[1]{0}', space=sflag, size = 0x4, scoped, tag = 'scoped memory for forward.1']
    #allocation18 [shape = 'u8[16384]{0}', space=vmem, size = 0x4000, scoped, tag = 'input window, operand 18, single buffered']
    #allocation19 [shape = 'u8[32768]{0}', space=vmem, size = 0x8000, scoped, tag = 'input window, operand 20, single buffered']
    #allocation20 [shape = 's32[1]{0}', space=sflag, size = 0x4, scoped, tag = 'scoped memory for forward.1']
    #allocation21 [shape = 'u8[8192]{0}', space=vmem, size = 0x2000, scoped, tag = 'output window, operand 0, single buffered']
    %27 = vsyncpa [#allocation5], 0
    %28 = vsyncpa [#allocation8], 0
    %29 = vsyncpa [#allocation11], 0
    %30 = vsyncpa [#allocation14], 0
    %31 = vsyncpa [#allocation17], 0
    %32 = vsyncpa [#allocation20], 0
    %33 = vsyncpa [#allocation6], 0
    // Predicated region
    $region2: #{forward.1} parent=1 // pred_check
      _
    $region3: #{forward.1} parent=1 // pred_check_branch
      %35 = sbr.rel (0) target = $region5
    $region4: #{forward.1} parent=1 // pred_region
      _
    $region5: #{forward.1} parent=1 // pred_fallthru
      _
    // Predicated region
    $region6: #{forward.1} parent=1 // pred_check
      _
    $region7: #{forward.1} parent=1 // pred_check_branch
      %37 = sbr.rel (0) target = $region9
    $region8: #{forward.1} parent=1 // pred_region
      _
    $region9: #{forward.1} parent=1 // pred_fallthru
      _
    // Predicated region
    $region10: #{forward.1} parent=1 // pred_check
      _
    $region11: #{forward.1} parent=1 // pred_check_branch
      %39 = sbr.rel (0) target = $region13
    $region12: #{forward.1} parent=1 // pred_region
      %41 = vsyncadd [#allocation5], 0
      %s42 = sshll.u32 %s2, 4
      %s43 = int_to_ptr.hbm [resolvable:$true] %s42
      %s44 = sshll.u32 [#allocation4], 4
      %s45 = int_to_ptr.vmem [resolvable:$true] %s44
      %50 = dma.hbm_to_vmem [thread:$0]  %s43, 256, %s45, [#allocation5], 128, 128, 8
    $region13: #{forward.1} parent=1 // pred_fallthru
      _
    // Predicated region
    $region14: #{forward.1} parent=1 // pred_check
      _
    $region15: #{forward.1} parent=1 // pred_check_branch
      %52 = sbr.rel (0) target = $region17
    $region16: #{forward.1} parent=1 // pred_region
      %54 = vsyncadd [#allocation8], 0
      %s55 = sshll.u32 %s3, 4
      %s56 = int_to_ptr.hbm [resolvable:$true] %s55
      %s57 = sshll.u32 [#allocation7], 4
      %s58 = int_to_ptr.vmem [resolvable:$true] %s57
      %63 = dma.hbm_to_vmem [thread:$0]  %s56, 256, %s58, [#allocation8], 128, 128, 8
    $region17: #{forward.1} parent=1 // pred_fallthru
      _
    // Predicated region
    $region18: #{forward.1} parent=1 // pred_check
      _
    $region19: #{forward.1} parent=1 // pred_check_branch
      %65 = sbr.rel (0) target = $region21
    $region20: #{forward.1} parent=1 // pred_region
      _
    $region21: #{forward.1} parent=1 // pred_fallthru
      _
    // Predicated region
    $region22: #{forward.1} parent=1 // pred_check
      _
    $region23: #{forward.1} parent=1 // pred_check_branch
      %67 = sbr.rel (0) target = $region25
    $region24: #{forward.1} parent=1 // pred_region
      %69 = vsyncadd [#allocation8], 0
      %s70 = sshll.u32 %s5, 4
      %s71 = int_to_ptr.hbm [resolvable:$true] %s70
      %s72 = sshll.u32 [#allocation9], 4
      %s73 = int_to_ptr.vmem [resolvable:$true] %s72
      %78 = dma.hbm_to_vmem [thread:$0]  %s71, 256, %s73, [#allocation8], 128, 128, 8
    $region25: #{forward.1} parent=1 // pred_fallthru
      _
    // Predicated region
    $region26: #{forward.1} parent=1 // pred_check
      _
    $region27: #{forward.1} parent=1 // pred_check_branch
      %80 = sbr.rel (0) target = $region29
    $region28: #{forward.1} parent=1 // pred_region
      %82 = vsyncadd [#allocation11], 0
      %s83 = sshll.u32 %s6, 4
      %s84 = int_to_ptr.hbm [resolvable:$true] %s83
      %s85 = sshll.u32 [#allocation10], 4
      %s86 = int_to_ptr.vmem [resolvable:$true] %s85
      %91 = dma.hbm_to_vmem [thread:$0]  %s84, 256, %s86, [#allocation11], 128, 128, 8
    $region29: #{forward.1} parent=1 // pred_fallthru
      _
    // Predicated region
    $region30: #{forward.1} parent=1 // pred_check
      _
    $region31: #{forward.1} parent=1 // pred_check_branch
      %93 = sbr.rel (0) target = $region33
    $region32: #{forward.1} parent=1 // pred_region
      _
    $region33: #{forward.1} parent=1 // pred_fallthru
      _
    // Predicated region
    $region34: #{forward.1} parent=1 // pred_check
      _
    $region35: #{forward.1} parent=1 // pred_check_branch
      %95 = sbr.rel (0) target = $region37
    $region36: #{forward.1} parent=1 // pred_region
      _
    $region37: #{forward.1} parent=1 // pred_fallthru
      _
    // Predicated region
    $region38: #{forward.1} parent=1 // pred_check
      _
    $region39: #{forward.1} parent=1 // pred_check_branch
      %97 = sbr.rel (0) target = $region41
    $region40: #{forward.1} parent=1 // pred_region
      %99 = vsyncadd [#allocation11], 0
      %s100 = sshll.u32 %s9, 4
      %s101 = int_to_ptr.hbm [resolvable:$true] %s100
      %s102 = sshll.u32 [#allocation12], 4
      %s103 = int_to_ptr.vmem [resolvable:$true] %s102
      %108 = dma.hbm_to_vmem [thread:$0]  %s101, 512, %s103, [#allocation11], 128, 128, 8
    $region41: #{forward.1} parent=1 // pred_fallthru
      _
    // Predicated region
    $region42: #{forward.1} parent=1 // pred_check
      _
    $region43: #{forward.1} parent=1 // pred_check_branch
      %110 = sbr.rel (0) target = $region45
    $region44: #{forward.1} parent=1 // pred_region
      _
    $region45: #{forward.1} parent=1 // pred_fallthru
      _
    // Predicated region
    $region46: #{forward.1} parent=1 // pred_check
      _
    $region47: #{forward.1} parent=1 // pred_check_branch
      %112 = sbr.rel (0) target = $region49
    $region48: #{forward.1} parent=1 // pred_region
      %114 = vsyncadd [#allocation14], 0
      %s115 = sshll.u32 %s11, 4
      %s116 = int_to_ptr.hbm [resolvable:$true] %s115
      %s117 = sshll.u32 [#allocation13], 4
      %s118 = int_to_ptr.vmem [resolvable:$true] %s117
      %123 = dma.hbm_to_vmem [thread:$0]  %s116, 512, %s118, [#allocation14], 128, 128, 8
    $region49: #{forward.1} parent=1 // pred_fallthru
      _
    // Predicated region
    $region50: #{forward.1} parent=1 // pred_check
      _
    $region51: #{forward.1} parent=1 // pred_check_branch
      %125 = sbr.rel (0) target = $region53
    $region52: #{forward.1} parent=1 // pred_region
      %127 = vsyncadd [#allocation14], 0
      %s128 = sshll.u32 %s12, 4
      %s129 = int_to_ptr.hbm [resolvable:$true] %s128
      %s130 = sshll.u32 [#allocation15], 4
      %s131 = int_to_ptr.vmem [resolvable:$true] %s130
      %136 = dma.hbm_to_vmem [thread:$0]  %s129, 512, %s131, [#allocation14], 128, 128, 8
    $region53: #{forward.1} parent=1 // pred_fallthru
      _
    // Predicated region
    $region54: #{forward.1} parent=1 // pred_check
      _
    $region55: #{forward.1} parent=1 // pred_check_branch
      %138 = sbr.rel (0) target = $region57
    $region56: #{forward.1} parent=1 // pred_region
      _
    $region57: #{forward.1} parent=1 // pred_fallthru
      _
    // Predicated region
    $region58: #{forward.1} parent=1 // pred_check
      _
    $region59: #{forward.1} parent=1 // pred_check_branch
      %140 = sbr.rel (0) target = $region61
    $region60: #{forward.1} parent=1 // pred_region
      _
    $region61: #{forward.1} parent=1 // pred_fallthru
      _
    // Predicated region
    $region62: #{forward.1} parent=1 // pred_check
      _
    $region63: #{forward.1} parent=1 // pred_check_branch
      %142 = sbr.rel (0) target = $region65
    $region64: #{forward.1} parent=1 // pred_region
      %144 = vsyncadd [#allocation17], 0
      %s145 = sshll.u32 %s15, 4
      %s146 = int_to_ptr.hbm [resolvable:$true] %s145
      %s147 = sshll.u32 [#allocation16], 4
      %s148 = int_to_ptr.vmem [resolvable:$true] %s147
      %153 = dma.hbm_to_vmem [thread:$0]  %s146, 512, %s148, [#allocation17], 128, 128, 8
    $region65: #{forward.1} parent=1 // pred_fallthru
      _
    // Predicated region
    $region66: #{forward.1} parent=1 // pred_check
      _
    $region67: #{forward.1} parent=1 // pred_check_branch
      %155 = sbr.rel (0) target = $region69
    $region68: #{forward.1} parent=1 // pred_region
      _
    $region69: #{forward.1} parent=1 // pred_fallthru
      _
    // Predicated region
    $region70: #{forward.1} parent=1 // pred_check
      _
    $region71: #{forward.1} parent=1 // pred_check_branch
      %157 = sbr.rel (0) target = $region73
    $region72: #{forward.1} parent=1 // pred_region
      _
    $region73: #{forward.1} parent=1 // pred_fallthru
      _
    // Predicated region
    $region74: #{forward.1} parent=1 // pred_check
      _
    $region75: #{forward.1} parent=1 // pred_check_branch
      %159 = sbr.rel (0) target = $region77
    $region76: #{forward.1} parent=1 // pred_region
      %161 = vsyncadd [#allocation17], 0
      %s162 = sshll.u32 %s18, 4
      %s163 = int_to_ptr.hbm [resolvable:$true] %s162
      %s164 = sshll.u32 [#allocation18], 4
      %s165 = int_to_ptr.vmem [resolvable:$true] %s164
      %170 = dma.hbm_to_vmem [thread:$0]  %s163, 512, %s165, [#allocation17], 128, 128, 8
    $region77: #{forward.1} parent=1 // pred_fallthru
      _
    // Predicated region
    $region78: #{forward.1} parent=1 // pred_check
      _
    $region79: #{forward.1} parent=1 // pred_check_branch
      %172 = sbr.rel (0) target = $region81
    $region80: #{forward.1} parent=1 // pred_region
      _
    $region81: #{forward.1} parent=1 // pred_fallthru
      _
    // Predicated region
    $region82: #{forward.1} parent=1 // pred_check
      _
    $region83: #{forward.1} parent=1 // pred_check_branch
      %174 = sbr.rel (0) target = $region85
    $region84: #{forward.1} parent=1 // pred_region
      %176 = vsyncadd [#allocation20], 0
      %s177 = sshll.u32 %s20, 4
      %s178 = int_to_ptr.hbm [resolvable:$true] %s177
      %s179 = sshll.u32 [#allocation19], 4
      %s180 = int_to_ptr.vmem [resolvable:$true] %s179
      %185 = dma.hbm_to_vmem [thread:$0]  %s178, 1024, %s180, [#allocation20], 128, 128, 8
    $region85: #{forward.1} parent=1 // pred_fallthru
      _
    // Predicated region
    $region86: #{forward.1} parent=1 // pred_check
      _
    $region87: #{forward.1} parent=1 // pred_check_branch
      %187 = sbr.rel (0) target = $region89
    $region88: #{forward.1} parent=1 // pred_region
      _
    $region89: #{forward.1} parent=1 // pred_fallthru
      _
    // Predicated region
    $region90: #{forward.1} parent=1 // pred_check
      _
    $region91: #{forward.1} parent=1 // pred_check_branch
      %189 = sbr.rel (0) target = $region93
    $region92: #{forward.1} parent=1 // pred_region
      %191 = dma.done [#allocation5], 256
    $region93: #{forward.1} parent=1 // pred_fallthru
      _
    // Predicated region
    $region94: #{forward.1} parent=1 // pred_check
      _
    $region95: #{forward.1} parent=1 // pred_check_branch
      %193 = sbr.rel (0) target = $region97
    $region96: #{forward.1} parent=1 // pred_region
      %195 = dma.done [#allocation8], 256
    $region97: #{forward.1} parent=1 // pred_fallthru
      _
    // Predicated region
    $region98: #{forward.1} parent=1 // pred_check
      _
    $region99: #{forward.1} parent=1 // pred_check_branch
      %197 = sbr.rel (0) target = $region101
    $region100: #{forward.1} parent=1 // pred_region
      %199 = dma.done [#allocation8], 256
    $region101: #{forward.1} parent=1 // pred_fallthru
      _
    // Predicated region
    $region102: #{forward.1} parent=1 // pred_check
      _
    $region103: #{forward.1} parent=1 // pred_check_branch
      %201 = sbr.rel (0) target = $region105
    $region104: #{forward.1} parent=1 // pred_region
      %203 = dma.done [#allocation11], 256
    $region105: #{forward.1} parent=1 // pred_fallthru
      _
    // Predicated region
    $region106: #{forward.1} parent=1 // pred_check
      _
    $region107: #{forward.1} parent=1 // pred_check_branch
      %205 = sbr.rel (0) target = $region109
    $region108: #{forward.1} parent=1 // pred_region
      %207 = dma.done [#allocation11], 512
    $region109: #{forward.1} parent=1 // pred_fallthru
      _
    // Predicated region
    $region110: #{forward.1} parent=1 // pred_check
      _
    $region111: #{forward.1} parent=1 // pred_check_branch
      %209 = sbr.rel (0) target = $region113
    $region112: #{forward.1} parent=1 // pred_region
      %211 = dma.done [#allocation14], 512
    $region113: #{forward.1} parent=1 // pred_fallthru
      _
    // Predicated region
    $region114: #{forward.1} parent=1 // pred_check
      _
    $region115: #{forward.1} parent=1 // pred_check_branch
      %213 = sbr.rel (0) target = $region117
    $region116: #{forward.1} parent=1 // pred_region
      %215 = dma.done [#allocation14], 512
    $region117: #{forward.1} parent=1 // pred_fallthru
      _
    // Predicated region
    $region118: #{forward.1} parent=1 // pred_check
      _
    $region119: #{forward.1} parent=1 // pred_check_branch
      %217 = sbr.rel (0) target = $region121
    $region120: #{forward.1} parent=1 // pred_region
      %219 = dma.done [#allocation17], 512
    $region121: #{forward.1} parent=1 // pred_fallthru
      _
    // Predicated region
    $region122: #{forward.1} parent=1 // pred_check
      _
    $region123: #{forward.1} parent=1 // pred_check_branch
      %221 = sbr.rel (0) target = $region125
    $region124: #{forward.1} parent=1 // pred_region
      %223 = dma.done [#allocation17], 512
    $region125: #{forward.1} parent=1 // pred_fallthru
      _
    // Predicated region
    $region126: #{forward.1} parent=1 // pred_check
      _
    $region127: #{forward.1} parent=1 // pred_check_branch
      %225 = sbr.rel (0) target = $region129
    $region128: #{forward.1} parent=1 // pred_region
      %227 = dma.done [#allocation20], 1024
    $region129: #{forward.1} parent=1 // pred_fallthru
      _
    %v228 = vld [vmem:[%s0] sm:$0xff]
    %v229 = vld [vmem:[%s0 + $0x8] sm:$0xff]
    %v230 = vld [vmem:[%s0 + $0x10] sm:$0xff]
    %v231 = vld [vmem:[%s0 + $0x18] sm:$0xff]
    %v232 = vld [vmem:[%s0 + $0x20] sm:$0xff]
    %v233 = vld [vmem:[%s0 + $0x28] sm:$0xff]
    %v234 = vld [vmem:[%s0 + $0x30] sm:$0xff]
    %v235 = vld [vmem:[%s0 + $0x38] sm:$0xff]
    %v236 = vld [vmem:[%s0 + $0x40] sm:$0xff]
    %v237 = vld [vmem:[%s0 + $0x48] sm:$0xff]
    %v238 = vld [vmem:[%s0 + $0x50] sm:$0xff]
    %v239 = vld [vmem:[%s0 + $0x58] sm:$0xff]
    %v240 = vlaneseq
    %v241 = vand.u32 %v240, 127
    %242 = vset.pattern.permute.xlu0 0
    %243 = vperm.xlu0 %242, %v228
    %v244 = vpop.permute.xlu0 %243
    %245 = vset.pattern.permute.xlu0 0
    %246 = vperm.xlu0 %245, %v229
    %v247 = vpop.permute.xlu0 %246
    %248 = vset.pattern.permute.xlu0 0
    %249 = vperm.xlu0 %248, %v230
    %v250 = vpop.permute.xlu0 %249
    %251 = vset.pattern.permute.xlu0 0
    %252 = vperm.xlu0 %251, %v231
    %v253 = vpop.permute.xlu0 %252
    %254 = vset.pattern.permute.xlu0 0
    %255 = vperm.xlu0 %254, %v232
    %v256 = vpop.permute.xlu0 %255
    %257 = vset.pattern.permute.xlu0 0
    %258 = vperm.xlu0 %257, %v233
    %v259 = vpop.permute.xlu0 %258
    %260 = vset.pattern.permute.xlu0 0
    %261 = vperm.xlu0 %260, %v234
    %v262 = vpop.permute.xlu0 %261
    %263 = vset.pattern.permute.xlu0 0
    %264 = vperm.xlu0 %263, %v235
    %v265 = vpop.permute.xlu0 %264
    %266 = vset.pattern.permute.xlu0 0
    %267 = vperm.xlu0 %266, %v236
    %v268 = vpop.permute.xlu0 %267
    %269 = vset.pattern.permute.xlu0 0
    %270 = vperm.xlu0 %269, %v237
    %v271 = vpop.permute.xlu0 %270
    %272 = vset.pattern.permute.xlu0 0
    %273 = vperm.xlu0 %272, %v238
    %v274 = vpop.permute.xlu0 %273
    %275 = vset.pattern.permute.xlu0 0
    %276 = vperm.xlu0 %275, %v239
    %v277 = vpop.permute.xlu0 %276
    %vm278 = vcmp.eq.s32.totalorder %v244, %v241
    %vm279 = vcmp.eq.s32.totalorder %v247, %v241
    %vm280 = vcmp.eq.s32.totalorder %v250, %v241
    %vm281 = vcmp.eq.s32.totalorder %v253, %v241
    %vm282 = vcmp.eq.s32.totalorder %v256, %v241
    %vm283 = vcmp.eq.s32.totalorder %v259, %v241
    %vm284 = vcmp.eq.s32.totalorder %v262, %v241
    %vm285 = vcmp.eq.s32.totalorder %v265, %v241
    %vm286 = vcmp.eq.s32.totalorder %v268, %v241
    %vm287 = vcmp.eq.s32.totalorder %v271, %v241
    %vm288 = vcmp.eq.s32.totalorder %v274, %v241
    %vm289 = vcmp.eq.s32.totalorder %v277, %v241
    %v290 = vsel %vm278, 1, 0
    %v291 = vsel %vm279, 1, 0
    %v292 = vsel %vm280, 1, 0
    %v293 = vsel %vm281, 1, 0
    %v294 = vsel %vm282, 1, 0
    %v295 = vsel %vm283, 1, 0
    %v296 = vsel %vm284, 1, 0
    %v297 = vsel %vm285, 1, 0
    %v298 = vsel %vm286, 1, 0
    %v299 = vsel %vm287, 1, 0
    %v300 = vsel %vm288, 1, 0
    %v301 = vsel %vm289, 1, 0
    %v302 = vcvt.s32.f32 %v290
    %v303 = vcvt.s32.f32 %v291
    %v304 = vcvt.s32.f32 %v292
    %v305 = vcvt.s32.f32 %v293
    %v306 = vcvt.s32.f32 %v294
    %v307 = vcvt.s32.f32 %v295
    %v308 = vcvt.s32.f32 %v296
    %v309 = vcvt.s32.f32 %v297
    %v310 = vcvt.s32.f32 %v298
    %v311 = vcvt.s32.f32 %v299
    %v312 = vcvt.s32.f32 %v300
    %v313 = vcvt.s32.f32 %v301
    %v314 = vld [vmem:[%s1] sm:$0xff]
    %v315 = vld [vmem:[%s1 + $0x8] sm:$0xff]
    %v316 = vld [vmem:[%s1 + $0x10] sm:$0xff]
    %v317 = vld [vmem:[%s1 + $0x18] sm:$0xff]
    %v318 = vld [vmem:[%s1 + $0x20] sm:$0xff]
    %v319 = vld [vmem:[%s1 + $0x28] sm:$0xff]
    %v320 = vld [vmem:[%s1 + $0x30] sm:$0x3]
    %vm321 = vcmask 408576
    %v323 = vsel %vm321, %v302, 0
    %v326 = vsel %vm321, %v303, 0
    %v329 = vsel %vm321, %v304, 0
    %v332 = vsel %vm321, %v305, 0
    %v335 = vsel %vm321, %v306, 0
    %v338 = vsel %vm321, %v307, 0
    %v341 = vsel %vm321, %v308, 0
    %v344 = vsel %vm321, %v309, 0
    %v347 = vsel %vm321, %v310, 0
    %v350 = vsel %vm321, %v311, 0
    %v353 = vsel %vm321, %v312, 0
    %v356 = vsel %vm321, %v313, 0
    %vm358 = vcmask 1041408
    %v360 = vsel %vm358, %v320, 0
    %362 = vmatpush.msra.mxu0 0.0
    %363 = vmatpush.msra.mxu0 0.0
    %364 = vmatpush.msra.mxu0 0.0
    %365 = vmatpush.msra.mxu0 0.0
    %366 = vmatpush.msra.mxu0 0.0
    %367 = vmatpush.msra.mxu0 0.0
    %368 = vmatpush.msra.mxu0 0.0
    %369 = vmatpush.msra.mxu0 0.0
    %370 = vmatpush.msra.mxu0 0.0
    %371 = vmatpush.msra.mxu0 %v360
    %372 = vmatpush.msra.mxu0 %v319
    %373 = vmatpush.msra.mxu0 %v318
    %374 = vmatpush.msra.mxu0 %v317
    %375 = vmatpush.msra.mxu0 %v316
    %376 = vmatpush.msra.mxu0 %v315
    %377 = vmatpush.msra.mxu0 %v314
    %378 = vmatmul.f32.gmra.mxu0 %v323
    %v379 = vpop.f32.mrf.mxu0
    %v380 = vadd.f32 0.0, %v379
    %381 = vmatmul.f32.gmra.mxu0 %v326
    %v382 = vpop.f32.mrf.mxu0
    %v383 = vadd.f32 0.0, %v382
    %384 = vmatmul.f32.gmra.mxu0 %v329
    %v385 = vpop.f32.mrf.mxu0
    %v386 = vadd.f32 0.0, %v385
    %387 = vmatmul.f32.gmra.mxu0 %v332
    %v388 = vpop.f32.mrf.mxu0
    %v389 = vadd.f32 0.0, %v388
    %390 = vmatmul.f32.gmra.mxu0 %v335
    %v391 = vpop.f32.mrf.mxu0
    %v392 = vadd.f32 0.0, %v391
    %393 = vmatmul.f32.gmra.mxu0 %v338
    %v394 = vpop.f32.mrf.mxu0
    %v395 = vadd.f32 0.0, %v394
    %396 = vmatmul.f32.gmra.mxu0 %v341
    %v397 = vpop.f32.mrf.mxu0
    %v398 = vadd.f32 0.0, %v397
    %399 = vmatmul.f32.gmra.mxu0 %v344
    %v400 = vpop.f32.mrf.mxu0
    %v401 = vadd.f32 0.0, %v400
    %402 = vmatmul.f32.gmra.mxu0 %v347
    %v403 = vpop.f32.mrf.mxu0
    %v404 = vadd.f32 0.0, %v403
    %405 = vmatmul.f32.gmra.mxu0 %v350
    %v406 = vpop.f32.mrf.mxu0
    %v407 = vadd.f32 0.0, %v406
    %408 = vmatmul.f32.gmra.mxu0 %v353
    %v409 = vpop.f32.mrf.mxu0
    %v410 = vadd.f32 0.0, %v409
    %411 = vmatmul.f32.gmra.mxu0 %v356
    %v412 = vpop.f32.mrf.mxu0
    %v413 = vadd.f32 0.0, %v412
    %414 = vdwg.mxu0
    %v415 = vld [vmem:[#allocation4] sm:$0xff]
    %v416 = vld [vmem:[#allocation4 + $0x8] sm:$0xff]
    %v417 = vld [vmem:[%s4] sm:$0x1]
    %v419 = vperm.slane %v417, 0
    %vm421 = vcmask 130048
    %v423 = vsel %vm421, %v380, 0
    %v426 = vsel %vm421, %v383, 0
    %428 = vmatpush.msra.mxu0 0.0
    %429 = vmatpush.msra.mxu0 0.0
    %430 = vmatpush.msra.mxu0 0.0
    %431 = vmatpush.msra.mxu0 0.0
    %432 = vmatpush.msra.mxu0 0.0
    %433 = vmatpush.msra.mxu0 0.0
    %434 = vmatpush.msra.mxu0 0.0
    %435 = vmatpush.msra.mxu0 0.0
    %436 = vmatpush.msra.mxu0 0.0
    %437 = vmatpush.msra.mxu0 0.0
    %438 = vmatpush.msra.mxu0 0.0
    %439 = vmatpush.msra.mxu0 0.0
    %440 = vmatpush.msra.mxu0 0.0
    %441 = vmatpush.msra.mxu0 0.0
    %442 = vmatpush.msra.mxu0 %v416
    %443 = vmatpush.msra.mxu0 %v415
    %444 = vmatmul.f32.gmra.mxu0 %v423
    %v445 = vpop.f32.mrf.mxu0
    %v446 = vadd.f32 %v419, %v445
    %447 = vmatmul.f32.gmra.mxu0 %v426
    %v448 = vpop.f32.mrf.mxu0
    %v449 = vadd.f32 %v419, %v448
    %450 = vdwg.mxu0
    %v451 = vld [vmem:[#allocation7] sm:$0xff]
    %v452 = vld [vmem:[#allocation7 + $0x8] sm:$0xff]
    %v454 = vsel %vm421, 0.0, 0
    %456 = vmatpush.msra.mxu0 0.0
    %457 = vmatpush.msra.mxu0 0.0
    %458 = vmatpush.msra.mxu0 0.0
    %459 = vmatpush.msra.mxu0 0.0
    %460 = vmatpush.msra.mxu0 0.0
    %461 = vmatpush.msra.mxu0 0.0
    %462 = vmatpush.msra.mxu0 0.0
    %463 = vmatpush.msra.mxu0 0.0
    %464 = vmatpush.msra.mxu0 0.0
    %465 = vmatpush.msra.mxu0 0.0
    %466 = vmatpush.msra.mxu0 0.0
    %467 = vmatpush.msra.mxu0 0.0
    %468 = vmatpush.msra.mxu0 0.0
    %469 = vmatpush.msra.mxu0 0.0
    %470 = vmatpush.msra.mxu0 %v452
    %471 = vmatpush.msra.mxu0 %v451
    %472 = vmatmul.f32.gmra.mxu0 %v454
    %v473 = vpop.f32.mrf.mxu0
    %v474 = vadd.f32 0.0, %v473
    %475 = vmatmul.f32.gmra.mxu0 %v454
    %v476 = vpop.f32.mrf.mxu0
    %v477 = vadd.f32 0.0, %v476
    %478 = vdwg.mxu0
    %v479 = vadd.f32 %v446, %v474
    %v480 = vadd.f32 %v449, %v477
    %v481 = vxor.u32 %v479, 2147483648
    %v482 = vxor.u32 %v480, 2147483648
    %v483 = vmul.f32 %v481, 1.442695
    %v484 = vpow.pop %v483
    %v485 = vmul.f32 %v482, 1.442695
    %v486 = vpow.pop %v485
    %v487 = vadd.f32 %v484, 1.0
    %v488 = vadd.f32 %v486, 1.0
    %v489 = vrcp.pop %v487
    %v490 = vmul.f32 %v487, %v489
    %v491 = vsub.f32 1.0, %v490
    %v492 = vmul.f32 %v489, %v491
    %v493 = vadd.f32 %v489, %v492
    %vm494 = vweird.f32 %v487
    %vm495 = vweird.f32 %v489
    %vm496 = vmor %vm494, %vm495
    %v497 = vsel %vm496, %v489, %v493
    %v498 = vand.u32 2147483647, %v487
    %vm499 = vcmp.eq.f32.partialorder %v498, 8.507059e+37
    %v500 = vand.u32 %v487, 2147483648
    %v501 = vor.u32 1.1754944e-38, %v500
    %v502 = vsel %vm499, %v501, %v497
    %v503 = vmul.f32 1.0, %v502
    %v504 = vrcp.pop %v488
    %v505 = vmul.f32 %v488, %v504
    %v506 = vsub.f32 1.0, %v505
    %v507 = vmul.f32 %v504, %v506
    %v508 = vadd.f32 %v504, %v507
    %vm509 = vweird.f32 %v488
    %vm510 = vweird.f32 %v504
    %vm511 = vmor %vm509, %vm510
    %v512 = vsel %vm511, %v504, %v508
    %v513 = vand.u32 2147483647, %v488
    %vm514 = vcmp.eq.f32.partialorder %v513, 8.507059e+37
    %v515 = vand.u32 %v488, 2147483648
    %v516 = vor.u32 1.1754944e-38, %v515
    %v517 = vsel %vm514, %v516, %v512
    %v518 = vmul.f32 1.0, %v517
    %v519 = vtanh.pop %v479
    %v520 = vtanh.pop %v480
    %v521 = vmul.f32 %v503, 0.0
    %v522 = vmul.f32 %v518, 0.0
    %525 = vrot.lane.b32.xlu0 %v519, 96
    %v526 = vpop.permute.xlu0 %525
    %527 = vrot.lane.b32.xlu0 %v520, 96
    %v528 = vpop.permute.xlu0 %527
    %v531 = vmul.f32 %v503, %v526
    %v532 = vmul.f32 %v518, %v528
    %535 = vrot.lane.b32.xlu0 %v531, 16
    %v536 = vpop.permute.xlu0 %535
    %537 = vrot.lane.b32.xlu0 %v532, 16
    %v538 = vpop.permute.xlu0 %537
    %v541 = vadd.f32 %v521, %v536
    %v542 = vadd.f32 %v522, %v538
    %v543 = vtanh.pop %v541
    %v544 = vtanh.pop %v542
    %547 = vrot.lane.b32.xlu0 %v543, 32
    %v548 = vpop.permute.xlu0 %547
    %549 = vrot.lane.b32.xlu0 %v544, 32
    %v550 = vpop.permute.xlu0 %549
    %v553 = vmul.f32 %v503, %v548
    %v554 = vmul.f32 %v518, %v550
    %v555 = vld [vmem:[#allocation9] sm:$0xff]
    %v556 = vld [vmem:[#allocation9 + $0x8] sm:$0xff]
    %v557 = vld [vmem:[%s7] sm:$0x1]
    %v559 = vperm.slane %v557, 0
    %v562 = vsel %vm421, %v386, 0
    %v565 = vsel %vm421, %v389, 0
    %v568 = vsel %vm421, %v392, 0
    %v571 = vsel %vm421, %v395, 0
    %v574 = vsel %vm421, %v398, 0
    %v577 = vsel %vm421, %v401, 0
    %v580 = vsel %vm421, %v404, 0
    %v583 = vsel %vm421, %v407, 0
    %v586 = vsel %vm421, %v410, 0
    %v589 = vsel %vm421, %v413, 0
    %591 = vmatpush.msra.mxu0 0.0
    %592 = vmatpush.msra.mxu0 0.0
    %593 = vmatpush.msra.mxu0 0.0
    %594 = vmatpush.msra.mxu0 0.0
    %595 = vmatpush.msra.mxu0 0.0
    %596 = vmatpush.msra.mxu0 0.0
    %597 = vmatpush.msra.mxu0 0.0
    %598 = vmatpush.msra.mxu0 0.0
    %599 = vmatpush.msra.mxu0 0.0
    %600 = vmatpush.msra.mxu0 0.0
    %601 = vmatpush.msra.mxu0 0.0
    %602 = vmatpush.msra.mxu0 0.0
    %603 = vmatpush.msra.mxu0 0.0
    %604 = vmatpush.msra.mxu0 0.0
    %605 = vmatpush.msra.mxu0 %v556
    %606 = vmatpush.msra.mxu0 %v555
    %607 = vmatmul.f32.gmra.mxu0 %v423
    %v608 = vpop.f32.mrf.mxu0
    %v609 = vadd.f32 %v559, %v608
    %610 = vmatmul.f32.gmra.mxu0 %v426
    %v611 = vpop.f32.mrf.mxu0
    %v612 = vadd.f32 %v559, %v611
    %613 = vmatmul.f32.gmra.mxu0 %v562
    %v614 = vpop.f32.mrf.mxu0
    %v615 = vadd.f32 %v559, %v614
    %616 = vmatmul.f32.gmra.mxu0 %v565
    %v617 = vpop.f32.mrf.mxu0
    %v618 = vadd.f32 %v559, %v617
    %619 = vmatmul.f32.gmra.mxu0 %v568
    %v620 = vpop.f32.mrf.mxu0
    %v621 = vadd.f32 %v559, %v620
    %622 = vmatmul.f32.gmra.mxu0 %v571
    %v623 = vpop.f32.mrf.mxu0
    %v624 = vadd.f32 %v559, %v623
    %625 = vmatmul.f32.gmra.mxu0 %v574
    %v626 = vpop.f32.mrf.mxu0
    %v627 = vadd.f32 %v559, %v626
    %628 = vmatmul.f32.gmra.mxu0 %v577
    %v629 = vpop.f32.mrf.mxu0
    %v630 = vadd.f32 %v559, %v629
    %631 = vmatmul.f32.gmra.mxu0 %v580
    %v632 = vpop.f32.mrf.mxu0
    %v633 = vadd.f32 %v559, %v632
    %634 = vmatmul.f32.gmra.mxu0 %v583
    %v635 = vpop.f32.mrf.mxu0
    %v636 = vadd.f32 %v559, %v635
    %637 = vmatmul.f32.gmra.mxu0 %v586
    %v638 = vpop.f32.mrf.mxu0
    %v639 = vadd.f32 %v559, %v638
    %640 = vmatmul.f32.gmra.mxu0 %v589
    %v641 = vpop.f32.mrf.mxu0
    %v642 = vadd.f32 %v559, %v641
    %643 = vdwg.mxu0
    %v644 = vld [vmem:[#allocation10] sm:$0xff]
    %v645 = vld [vmem:[#allocation10 + $0x8] sm:$0xff]
    %646 = vmatpush.msra.mxu0 0.0
    %647 = vmatpush.msra.mxu0 0.0
    %648 = vmatpush.msra.mxu0 0.0
    %649 = vmatpush.msra.mxu0 0.0
    %650 = vmatpush.msra.mxu0 0.0
    %651 = vmatpush.msra.mxu0 0.0
    %652 = vmatpush.msra.mxu0 0.0
    %653 = vmatpush.msra.mxu0 0.0
    %654 = vmatpush.msra.mxu0 0.0
    %655 = vmatpush.msra.mxu0 0.0
    %656 = vmatpush.msra.mxu0 0.0
    %657 = vmatpush.msra.mxu0 0.0
    %658 = vmatpush.msra.mxu0 0.0
    %659 = vmatpush.msra.mxu0 0.0
    %660 = vmatpush.msra.mxu0 %v645
    %661 = vmatpush.msra.mxu0 %v644
    %662 = vmatmul.f32.gmra.mxu0 %v454
    %v663 = vpop.f32.mrf.mxu0
    %v664 = vadd.f32 0.0, %v663
    %665 = vmatmul.f32.gmra.mxu0 %v454
    %v666 = vpop.f32.mrf.mxu0
    %v667 = vadd.f32 0.0, %v666
    %668 = vdwg.mxu0
    %v669 = vadd.f32 %v639, %v664
    %v670 = vadd.f32 %v642, %v667
    %v671 = vxor.u32 %v669, 2147483648
    %v672 = vxor.u32 %v670, 2147483648
    %v673 = vmul.f32 %v671, 1.442695
    %v674 = vpow.pop %v673
    %v675 = vmul.f32 %v672, 1.442695
    %v676 = vpow.pop %v675
    %v677 = vadd.f32 %v674, 1.0
    %v678 = vadd.f32 %v676, 1.0
    %v679 = vrcp.pop %v677
    %v680 = vmul.f32 %v677, %v679
    %v681 = vsub.f32 1.0, %v680
    %v682 = vmul.f32 %v679, %v681
    %v683 = vadd.f32 %v679, %v682
    %vm684 = vweird.f32 %v677
    %vm685 = vweird.f32 %v679
    %vm686 = vmor %vm684, %vm685
    %v687 = vsel %vm686, %v679, %v683
    %v688 = vand.u32 2147483647, %v677
    %vm689 = vcmp.eq.f32.partialorder %v688, 8.507059e+37
    %v690 = vand.u32 %v677, 2147483648
    %v691 = vor.u32 1.1754944e-38, %v690
    %v692 = vsel %vm689, %v691, %v687
    %v693 = vmul.f32 1.0, %v692
    %v694 = vrcp.pop %v678
    %v695 = vmul.f32 %v678, %v694
    %v696 = vsub.f32 1.0, %v695
    %v697 = vmul.f32 %v694, %v696
    %v698 = vadd.f32 %v694, %v697
    %vm699 = vweird.f32 %v678
    %vm700 = vweird.f32 %v694
    %vm701 = vmor %vm699, %vm700
    %v702 = vsel %vm701, %v694, %v698
    %v703 = vand.u32 2147483647, %v678
    %vm704 = vcmp.eq.f32.partialorder %v703, 8.507059e+37
    %v705 = vand.u32 %v678, 2147483648
    %v706 = vor.u32 1.1754944e-38, %v705
    %v707 = vsel %vm704, %v706, %v702
    %v708 = vmul.f32 1.0, %v707
    %v709 = vtanh.pop %v669
    %v710 = vtanh.pop %v670
    %v711 = vmul.f32 %v693, 0.0
    %v712 = vmul.f32 %v708, 0.0
    %715 = vrot.lane.b32.xlu0 %v709, 96
    %v716 = vpop.permute.xlu0 %715
    %717 = vrot.lane.b32.xlu0 %v710, 96
    %v718 = vpop.permute.xlu0 %717
    %v721 = vmul.f32 %v693, %v716
    %v722 = vmul.f32 %v708, %v718
    %725 = vrot.lane.b32.xlu0 %v721, 16
    %v726 = vpop.permute.xlu0 %725
    %727 = vrot.lane.b32.xlu0 %v722, 16
    %v728 = vpop.permute.xlu0 %727
    %v731 = vadd.f32 %v711, %v726
    %v732 = vadd.f32 %v712, %v728
    %v733 = vtanh.pop %v731
    %v734 = vtanh.pop %v732
    %737 = vrot.lane.b32.xlu0 %v733, 32
    %v738 = vpop.permute.xlu0 %737
    %739 = vrot.lane.b32.xlu0 %v734, 32
    %v740 = vpop.permute.xlu0 %739
    %v743 = vmul.f32 %v693, %v738
    %v744 = vmul.f32 %v708, %v740
    %747 = vrot.lane.b32.xlu0 %v743, 80
    %v748 = vpop.permute.xlu0 %747
    %749 = vrot.lane.b32.xlu0 %v744, 80
    %v750 = vpop.permute.xlu0 %749
    %v751 = vsel %vm421, %v748, 0
    %v753 = vsel %vm421, %v750, 0
    %755 = vmatpush.msra.mxu0 0.0
    %756 = vmatpush.msra.mxu0 0.0
    %757 = vmatpush.msra.mxu0 0.0
    %758 = vmatpush.msra.mxu0 0.0
    %759 = vmatpush.msra.mxu0 0.0
    %760 = vmatpush.msra.mxu0 0.0
    %761 = vmatpush.msra.mxu0 0.0
    %762 = vmatpush.msra.mxu0 0.0
    %763 = vmatpush.msra.mxu0 0.0
    %764 = vmatpush.msra.mxu0 0.0
    %765 = vmatpush.msra.mxu0 0.0
    %766 = vmatpush.msra.mxu0 0.0
    %767 = vmatpush.msra.mxu0 0.0
    %768 = vmatpush.msra.mxu0 0.0
    %769 = vmatpush.msra.mxu0 %v645
    %770 = vmatpush.msra.mxu0 %v644
    %771 = vmatmul.f32.gmra.mxu0 %v751
    %v772 = vpop.f32.mrf.mxu0
    %v773 = vadd.f32 0.0, %v772
    %774 = vmatmul.f32.gmra.mxu0 %v753
    %v775 = vpop.f32.mrf.mxu0
    %v776 = vadd.f32 0.0, %v775
    %777 = vdwg.mxu0
    %v778 = vadd.f32 %v633, %v773
    %v779 = vadd.f32 %v636, %v776
    %v780 = vxor.u32 %v778, 2147483648
    %v781 = vxor.u32 %v779, 2147483648
    %v782 = vmul.f32 %v780, 1.442695
    %v783 = vpow.pop %v782
    %v784 = vmul.f32 %v781, 1.442695
    %v785 = vpow.pop %v784
    %v786 = vadd.f32 %v783, 1.0
    %v787 = vadd.f32 %v785, 1.0
    %v788 = vrcp.pop %v786
    %v789 = vmul.f32 %v786, %v788
    %v790 = vsub.f32 1.0, %v789
    %v791 = vmul.f32 %v788, %v790
    %v792 = vadd.f32 %v788, %v791
    %vm793 = vweird.f32 %v786
    %vm794 = vweird.f32 %v788
    %vm795 = vmor %vm793, %vm794
    %v796 = vsel %vm795, %v788, %v792
    %v797 = vand.u32 2147483647, %v786
    %vm798 = vcmp.eq.f32.partialorder %v797, 8.507059e+37
    %v799 = vand.u32 %v786, 2147483648
    %v800 = vor.u32 1.1754944e-38, %v799
    %v801 = vsel %vm798, %v800, %v796
    %v802 = vmul.f32 1.0, %v801
    %v803 = vrcp.pop %v787
    %v804 = vmul.f32 %v787, %v803
    %v805 = vsub.f32 1.0, %v804
    %v806 = vmul.f32 %v803, %v805
    %v807 = vadd.f32 %v803, %v806
    %vm808 = vweird.f32 %v787
    %vm809 = vweird.f32 %v803
    %vm810 = vmor %vm808, %vm809
    %v811 = vsel %vm810, %v803, %v807
    %v812 = vand.u32 2147483647, %v787
    %vm813 = vcmp.eq.f32.partialorder %v812, 8.507059e+37
    %v814 = vand.u32 %v787, 2147483648
    %v815 = vor.u32 1.1754944e-38, %v814
    %v816 = vsel %vm813, %v815, %v811
    %v817 = vmul.f32 1.0, %v816
    %v818 = vtanh.pop %v778
    %v819 = vtanh.pop %v779
    %v820 = vmul.f32 %v802, %v731
    %v821 = vmul.f32 %v817, %v732
    %824 = vrot.lane.b32.xlu0 %v818, 96
    %v825 = vpop.permute.xlu0 %824
    %826 = vrot.lane.b32.xlu0 %v819, 96
    %v827 = vpop.permute.xlu0 %826
    %v830 = vmul.f32 %v802, %v825
    %v831 = vmul.f32 %v817, %v827
    %834 = vrot.lane.b32.xlu0 %v830, 16
    %v835 = vpop.permute.xlu0 %834
    %836 = vrot.lane.b32.xlu0 %v831, 16
    %v837 = vpop.permute.xlu0 %836
    %v840 = vadd.f32 %v820, %v835
    %v841 = vadd.f32 %v821, %v837
    %v842 = vtanh.pop %v840
    %v843 = vtanh.pop %v841
    %846 = vrot.lane.b32.xlu0 %v842, 32
    %v847 = vpop.permute.xlu0 %846
    %848 = vrot.lane.b32.xlu0 %v843, 32
    %v849 = vpop.permute.xlu0 %848
    %v852 = vmul.f32 %v802, %v847
    %v853 = vmul.f32 %v817, %v849
    %856 = vrot.lane.b32.xlu0 %v852, 80
    %v857 = vpop.permute.xlu0 %856
    %858 = vrot.lane.b32.xlu0 %v853, 80
    %v859 = vpop.permute.xlu0 %858
    %v860 = vsel %vm421, %v857, 0
    %v862 = vsel %vm421, %v859, 0
    %864 = vmatpush.msra.mxu0 0.0
    %865 = vmatpush.msra.mxu0 0.0
    %866 = vmatpush.msra.mxu0 0.0
    %867 = vmatpush.msra.mxu0 0.0
    %868 = vmatpush.msra.mxu0 0.0
    %869 = vmatpush.msra.mxu0 0.0
    %870 = vmatpush.msra.mxu0 0.0
    %871 = vmatpush.msra.mxu0 0.0
    %872 = vmatpush.msra.mxu0 0.0
    %873 = vmatpush.msra.mxu0 0.0
    %874 = vmatpush.msra.mxu0 0.0
    %875 = vmatpush.msra.mxu0 0.0
    %876 = vmatpush.msra.mxu0 0.0
    %877 = vmatpush.msra.mxu0 0.0
    %878 = vmatpush.msra.mxu0 %v645
    %879 = vmatpush.msra.mxu0 %v644
    %880 = vmatmul.f32.gmra.mxu0 %v860
    %v881 = vpop.f32.mrf.mxu0
    %v882 = vadd.f32 0.0, %v881
    %883 = vmatmul.f32.gmra.mxu0 %v862
    %v884 = vpop.f32.mrf.mxu0
    %v885 = vadd.f32 0.0, %v884
    %886 = vdwg.mxu0
    %v887 = vadd.f32 %v627, %v882
    %v888 = vadd.f32 %v630, %v885
    %v889 = vxor.u32 %v887, 2147483648
    %v890 = vxor.u32 %v888, 2147483648
    %v891 = vmul.f32 %v889, 1.442695
    %v892 = vpow.pop %v891
    %v893 = vmul.f32 %v890, 1.442695
    %v894 = vpow.pop %v893
    %v895 = vadd.f32 %v892, 1.0
    %v896 = vadd.f32 %v894, 1.0
    %v897 = vrcp.pop %v895
    %v898 = vmul.f32 %v895, %v897
    %v899 = vsub.f32 1.0, %v898
    %v900 = vmul.f32 %v897, %v899
    %v901 = vadd.f32 %v897, %v900
    %vm902 = vweird.f32 %v895
    %vm903 = vweird.f32 %v897
    %vm904 = vmor %vm902, %vm903
    %v905 = vsel %vm904, %v897, %v901
    %v906 = vand.u32 2147483647, %v895
    %vm907 = vcmp.eq.f32.partialorder %v906, 8.507059e+37
    %v908 = vand.u32 %v895, 2147483648
    %v909 = vor.u32 1.1754944e-38, %v908
    %v910 = vsel %vm907, %v909, %v905
    %v911 = vmul.f32 1.0, %v910
    %v912 = vrcp.pop %v896
    %v913 = vmul.f32 %v896, %v912
    %v914 = vsub.f32 1.0, %v913
    %v915 = vmul.f32 %v912, %v914
    %v916 = vadd.f32 %v912, %v915
    %vm917 = vweird.f32 %v896
    %vm918 = vweird.f32 %v912
    %vm919 = vmor %vm917, %vm918
    %v920 = vsel %vm919, %v912, %v916
    %v921 = vand.u32 2147483647, %v896
    %vm922 = vcmp.eq.f32.partialorder %v921, 8.507059e+37
    %v923 = vand.u32 %v896, 2147483648
    %v924 = vor.u32 1.1754944e-38, %v923
    %v925 = vsel %vm922, %v924, %v920
    %v926 = vmul.f32 1.0, %v925
    %v927 = vtanh.pop %v887
    %v928 = vtanh.pop %v888
    %v929 = vmul.f32 %v911, %v840
    %v930 = vmul.f32 %v926, %v841
    %933 = vrot.lane.b32.xlu0 %v927, 96
    %v934 = vpop.permute.xlu0 %933
    %935 = vrot.lane.b32.xlu0 %v928, 96
    %v936 = vpop.permute.xlu0 %935
    %v939 = vmul.f32 %v911, %v934
    %v940 = vmul.f32 %v926, %v936
    %943 = vrot.lane.b32.xlu0 %v939, 16
    %v944 = vpop.permute.xlu0 %943
    %945 = vrot.lane.b32.xlu0 %v940, 16
    %v946 = vpop.permute.xlu0 %945
    %v949 = vadd.f32 %v929, %v944
    %v950 = vadd.f32 %v930, %v946
    %v951 = vtanh.pop %v949
    %v952 = vtanh.pop %v950
    %955 = vrot.lane.b32.xlu0 %v951, 32
    %v956 = vpop.permute.xlu0 %955
    %957 = vrot.lane.b32.xlu0 %v952, 32
    %v958 = vpop.permute.xlu0 %957
    %v961 = vmul.f32 %v911, %v956
    %v962 = vmul.f32 %v926, %v958
    %965 = vrot.lane.b32.xlu0 %v961, 80
    %v966 = vpop.permute.xlu0 %965
    %967 = vrot.lane.b32.xlu0 %v962, 80
    %v968 = vpop.permute.xlu0 %967
    %v969 = vsel %vm421, %v966, 0
    %v971 = vsel %vm421, %v968, 0
    %973 = vmatpush.msra.mxu0 0.0
    %974 = vmatpush.msra.mxu0 0.0
    %975 = vmatpush.msra.mxu0 0.0
    %976 = vmatpush.msra.mxu0 0.0
    %977 = vmatpush.msra.mxu0 0.0
    %978 = vmatpush.msra.mxu0 0.0
    %979 = vmatpush.msra.mxu0 0.0
    %980 = vmatpush.msra.mxu0 0.0
    %981 = vmatpush.msra.mxu0 0.0
    %982 = vmatpush.msra.mxu0 0.0
    %983 = vmatpush.msra.mxu0 0.0
    %984 = vmatpush.msra.mxu0 0.0
    %985 = vmatpush.msra.mxu0 0.0
    %986 = vmatpush.msra.mxu0 0.0
    %987 = vmatpush.msra.mxu0 %v645
    %988 = vmatpush.msra.mxu0 %v644
    %989 = vmatmul.f32.gmra.mxu0 %v969
    %v990 = vpop.f32.mrf.mxu0
    %v991 = vadd.f32 0.0, %v990
    %992 = vmatmul.f32.gmra.mxu0 %v971
    %v993 = vpop.f32.mrf.mxu0
    %v994 = vadd.f32 0.0, %v993
    %995 = vdwg.mxu0
    %v996 = vadd.f32 %v621, %v991
    %v997 = vadd.f32 %v624, %v994
    %v998 = vxor.u32 %v996, 2147483648
    %v999 = vxor.u32 %v997, 2147483648
    %v1000 = vmul.f32 %v998, 1.442695
    %v1001 = vpow.pop %v1000
    %v1002 = vmul.f32 %v999, 1.442695
    %v1003 = vpow.pop %v1002
    %v1004 = vadd.f32 %v1001, 1.0
    %v1005 = vadd.f32 %v1003, 1.0
    %v1006 = vrcp.pop %v1004
    %v1007 = vmul.f32 %v1004, %v1006
    %v1008 = vsub.f32 1.0, %v1007
    %v1009 = vmul.f32 %v1006, %v1008
    %v1010 = vadd.f32 %v1006, %v1009
    %vm1011 = vweird.f32 %v1004
    %vm1012 = vweird.f32 %v1006
    %vm1013 = vmor %vm1011, %vm1012
    %v1014 = vsel %vm1013, %v1006, %v1010
    %v1015 = vand.u32 2147483647, %v1004
    %vm1016 = vcmp.eq.f32.partialorder %v1015, 8.507059e+37
    %v1017 = vand.u32 %v1004, 2147483648
    %v1018 = vor.u32 1.1754944e-38, %v1017
    %v1019 = vsel %vm1016, %v1018, %v1014
    %v1020 = vmul.f32 1.0, %v1019
    %v1021 = vrcp.pop %v1005
    %v1022 = vmul.f32 %v1005, %v1021
    %v1023 = vsub.f32 1.0, %v1022
    %v1024 = vmul.f32 %v1021, %v1023
    %v1025 = vadd.f32 %v1021, %v1024
    %vm1026 = vweird.f32 %v1005
    %vm1027 = vweird.f32 %v1021
    %vm1028 = vmor %vm1026, %vm1027
    %v1029 = vsel %vm1028, %v1021, %v1025
    %v1030 = vand.u32 2147483647, %v1005
    %vm1031 = vcmp.eq.f32.partialorder %v1030, 8.507059e+37
    %v1032 = vand.u32 %v1005, 2147483648
    %v1033 = vor.u32 1.1754944e-38, %v1032
    %v1034 = vsel %vm1031, %v1033, %v1029
    %v1035 = vmul.f32 1.0, %v1034
    %v1036 = vtanh.pop %v996
    %v1037 = vtanh.pop %v997
    %v1038 = vmul.f32 %v1020, %v949
    %v1039 = vmul.f32 %v1035, %v950
    %1042 = vrot.lane.b32.xlu0 %v1036, 96
    %v1043 = vpop.permute.xlu0 %1042
    %1044 = vrot.lane.b32.xlu0 %v1037, 96
    %v1045 = vpop.permute.xlu0 %1044
    %v1048 = vmul.f32 %v1020, %v1043
    %v1049 = vmul.f32 %v1035, %v1045
    %1052 = vrot.lane.b32.xlu0 %v1048, 16
    %v1053 = vpop.permute.xlu0 %1052
    %1054 = vrot.lane.b32.xlu0 %v1049, 16
    %v1055 = vpop.permute.xlu0 %1054
    %v1058 = vadd.f32 %v1038, %v1053
    %v1059 = vadd.f32 %v1039, %v1055
    %v1060 = vtanh.pop %v1058
    %v1061 = vtanh.pop %v1059
    %1064 = vrot.lane.b32.xlu0 %v1060, 32
    %v1065 = vpop.permute.xlu0 %1064
    %1066 = vrot.lane.b32.xlu0 %v1061, 32
    %v1067 = vpop.permute.xlu0 %1066
    %v1070 = vmul.f32 %v1020, %v1065
    %v1071 = vmul.f32 %v1035, %v1067
    %1074 = vrot.lane.b32.xlu0 %v1070, 80
    %v1075 = vpop.permute.xlu0 %1074
    %1076 = vrot.lane.b32.xlu0 %v1071, 80
    %v1077 = vpop.permute.xlu0 %1076
    %v1078 = vsel %vm421, %v1075, 0
    %v1080 = vsel %vm421, %v1077, 0
    %1082 = vmatpush.msra.mxu0 0.0
    %1083 = vmatpush.msra.mxu0 0.0
    %1084 = vmatpush.msra.mxu0 0.0
    %1085 = vmatpush.msra.mxu0 0.0
    %1086 = vmatpush.msra.mxu0 0.0
    %1087 = vmatpush.msra.mxu0 0.0
    %1088 = vmatpush.msra.mxu0 0.0
    %1089 = vmatpush.msra.mxu0 0.0
    %1090 = vmatpush.msra.mxu0 0.0
    %1091 = vmatpush.msra.mxu0 0.0
    %1092 = vmatpush.msra.mxu0 0.0
    %1093 = vmatpush.msra.mxu0 0.0
    %1094 = vmatpush.msra.mxu0 0.0
    %1095 = vmatpush.msra.mxu0 0.0
    %1096 = vmatpush.msra.mxu0 %v645
    %1097 = vmatpush.msra.mxu0 %v644
    %1098 = vmatmul.f32.gmra.mxu0 %v1078
    %v1099 = vpop.f32.mrf.mxu0
    %v1100 = vadd.f32 0.0, %v1099
    %1101 = vmatmul.f32.gmra.mxu0 %v1080
    %v1102 = vpop.f32.mrf.mxu0
    %v1103 = vadd.f32 0.0, %v1102
    %1104 = vdwg.mxu0
    %v1105 = vadd.f32 %v615, %v1100
    %v1106 = vadd.f32 %v618, %v1103
    %v1107 = vxor.u32 %v1105, 2147483648
    %v1108 = vxor.u32 %v1106, 2147483648
    %v1109 = vmul.f32 %v1107, 1.442695
    %v1110 = vpow.pop %v1109
    %v1111 = vmul.f32 %v1108, 1.442695
    %v1112 = vpow.pop %v1111
    %v1113 = vadd.f32 %v1110, 1.0
    %v1114 = vadd.f32 %v1112, 1.0
    %v1115 = vrcp.pop %v1113
    %v1116 = vmul.f32 %v1113, %v1115
    %v1117 = vsub.f32 1.0, %v1116
    %v1118 = vmul.f32 %v1115, %v1117
    %v1119 = vadd.f32 %v1115, %v1118
    %vm1120 = vweird.f32 %v1113
    %vm1121 = vweird.f32 %v1115
    %vm1122 = vmor %vm1120, %vm1121
    %v1123 = vsel %vm1122, %v1115, %v1119
    %v1124 = vand.u32 2147483647, %v1113
    %vm1125 = vcmp.eq.f32.partialorder %v1124, 8.507059e+37
    %v1126 = vand.u32 %v1113, 2147483648
    %v1127 = vor.u32 1.1754944e-38, %v1126
    %v1128 = vsel %vm1125, %v1127, %v1123
    %v1129 = vmul.f32 1.0, %v1128
    %v1130 = vrcp.pop %v1114
    %v1131 = vmul.f32 %v1114, %v1130
    %v1132 = vsub.f32 1.0, %v1131
    %v1133 = vmul.f32 %v1130, %v1132
    %v1134 = vadd.f32 %v1130, %v1133
    %vm1135 = vweird.f32 %v1114
    %vm1136 = vweird.f32 %v1130
    %vm1137 = vmor %vm1135, %vm1136
    %v1138 = vsel %vm1137, %v1130, %v1134
    %v1139 = vand.u32 2147483647, %v1114
    %vm1140 = vcmp.eq.f32.partialorder %v1139, 8.507059e+37
    %v1141 = vand.u32 %v1114, 2147483648
    %v1142 = vor.u32 1.1754944e-38, %v1141
    %v1143 = vsel %vm1140, %v1142, %v1138
    %v1144 = vmul.f32 1.0, %v1143
    %v1145 = vtanh.pop %v1105
    %v1146 = vtanh.pop %v1106
    %v1147 = vmul.f32 %v1129, %v1058
    %v1148 = vmul.f32 %v1144, %v1059
    %1151 = vrot.lane.b32.xlu0 %v1145, 96
    %v1152 = vpop.permute.xlu0 %1151
    %1153 = vrot.lane.b32.xlu0 %v1146, 96
    %v1154 = vpop.permute.xlu0 %1153
    %v1157 = vmul.f32 %v1129, %v1152
    %v1158 = vmul.f32 %v1144, %v1154
    %1161 = vrot.lane.b32.xlu0 %v1157, 16
    %v1162 = vpop.permute.xlu0 %1161
    %1163 = vrot.lane.b32.xlu0 %v1158, 16
    %v1164 = vpop.permute.xlu0 %1163
    %v1167 = vadd.f32 %v1147, %v1162
    %v1168 = vadd.f32 %v1148, %v1164
    %v1169 = vtanh.pop %v1167
    %v1170 = vtanh.pop %v1168
    %1173 = vrot.lane.b32.xlu0 %v1169, 32
    %v1174 = vpop.permute.xlu0 %1173
    %1175 = vrot.lane.b32.xlu0 %v1170, 32
    %v1176 = vpop.permute.xlu0 %1175
    %v1179 = vmul.f32 %v1129, %v1174
    %v1180 = vmul.f32 %v1144, %v1176
    %1183 = vrot.lane.b32.xlu0 %v1179, 80
    %v1184 = vpop.permute.xlu0 %1183
    %1185 = vrot.lane.b32.xlu0 %v1180, 80
    %v1186 = vpop.permute.xlu0 %1185
    %v1187 = vsel %vm421, %v1184, 0
    %v1189 = vsel %vm421, %v1186, 0
    %1191 = vmatpush.msra.mxu0 0.0
    %1192 = vmatpush.msra.mxu0 0.0
    %1193 = vmatpush.msra.mxu0 0.0
    %1194 = vmatpush.msra.mxu0 0.0
    %1195 = vmatpush.msra.mxu0 0.0
    %1196 = vmatpush.msra.mxu0 0.0
    %1197 = vmatpush.msra.mxu0 0.0
    %1198 = vmatpush.msra.mxu0 0.0
    %1199 = vmatpush.msra.mxu0 0.0
    %1200 = vmatpush.msra.mxu0 0.0
    %1201 = vmatpush.msra.mxu0 0.0
    %1202 = vmatpush.msra.mxu0 0.0
    %1203 = vmatpush.msra.mxu0 0.0
    %1204 = vmatpush.msra.mxu0 0.0
    %1205 = vmatpush.msra.mxu0 %v645
    %1206 = vmatpush.msra.mxu0 %v644
    %1207 = vmatmul.f32.gmra.mxu0 %v1187
    %v1208 = vpop.f32.mrf.mxu0
    %v1209 = vadd.f32 0.0, %v1208
    %1210 = vmatmul.f32.gmra.mxu0 %v1189
    %v1211 = vpop.f32.mrf.mxu0
    %v1212 = vadd.f32 0.0, %v1211
    %1213 = vdwg.mxu0
    %v1214 = vadd.f32 %v609, %v1209
    %v1215 = vadd.f32 %v612, %v1212
    %v1216 = vxor.u32 %v1214, 2147483648
    %v1217 = vxor.u32 %v1215, 2147483648
    %v1218 = vmul.f32 %v1216, 1.442695
    %v1219 = vpow.pop %v1218
    %v1220 = vmul.f32 %v1217, 1.442695
    %v1221 = vpow.pop %v1220
    %v1222 = vadd.f32 %v1219, 1.0
    %v1223 = vadd.f32 %v1221, 1.0
    %v1224 = vrcp.pop %v1222
    %v1225 = vmul.f32 %v1222, %v1224
    %v1226 = vsub.f32 1.0, %v1225
    %v1227 = vmul.f32 %v1224, %v1226
    %v1228 = vadd.f32 %v1224, %v1227
    %vm1229 = vweird.f32 %v1222
    %vm1230 = vweird.f32 %v1224
    %vm1231 = vmor %vm1229, %vm1230
    %v1232 = vsel %vm1231, %v1224, %v1228
    %v1233 = vand.u32 2147483647, %v1222
    %vm1234 = vcmp.eq.f32.partialorder %v1233, 8.507059e+37
    %v1235 = vand.u32 %v1222, 2147483648
    %v1236 = vor.u32 1.1754944e-38, %v1235
    %v1237 = vsel %vm1234, %v1236, %v1232
    %v1238 = vmul.f32 1.0, %v1237
    %v1239 = vrcp.pop %v1223
    %v1240 = vmul.f32 %v1223, %v1239
    %v1241 = vsub.f32 1.0, %v1240
    %v1242 = vmul.f32 %v1239, %v1241
    %v1243 = vadd.f32 %v1239, %v1242
    %vm1244 = vweird.f32 %v1223
    %vm1245 = vweird.f32 %v1239
    %vm1246 = vmor %vm1244, %vm1245
    %v1247 = vsel %vm1246, %v1239, %v1243
    %v1248 = vand.u32 2147483647, %v1223
    %vm1249 = vcmp.eq.f32.partialorder %v1248, 8.507059e+37
    %v1250 = vand.u32 %v1223, 2147483648
    %v1251 = vor.u32 1.1754944e-38, %v1250
    %v1252 = vsel %vm1249, %v1251, %v1247
    %v1253 = vmul.f32 1.0, %v1252
    %v1254 = vtanh.pop %v1214
    %v1255 = vtanh.pop %v1215
    %v1256 = vmul.f32 %v1238, %v1167
    %v1257 = vmul.f32 %v1253, %v1168
    %1260 = vrot.lane.b32.xlu0 %v1254, 96
    %v1261 = vpop.permute.xlu0 %1260
    %1262 = vrot.lane.b32.xlu0 %v1255, 96
    %v1263 = vpop.permute.xlu0 %1262
    %v1266 = vmul.f32 %v1238, %v1261
    %v1267 = vmul.f32 %v1253, %v1263
    %1270 = vrot.lane.b32.xlu0 %v1266, 16
    %v1271 = vpop.permute.xlu0 %1270
    %1272 = vrot.lane.b32.xlu0 %v1267, 16
    %v1273 = vpop.permute.xlu0 %1272
    %v1276 = vadd.f32 %v1256, %v1271
    %v1277 = vadd.f32 %v1257, %v1273
    %v1278 = vtanh.pop %v1276
    %v1279 = vtanh.pop %v1277
    %1282 = vrot.lane.b32.xlu0 %v1278, 32
    %v1283 = vpop.permute.xlu0 %1282
    %1284 = vrot.lane.b32.xlu0 %v1279, 32
    %v1285 = vpop.permute.xlu0 %1284
    %v1288 = vmul.f32 %v1238, %v1283
    %v1289 = vmul.f32 %v1253, %v1285
    %1292 = vrot.lane.b32.xlu0 %v553, 80
    %v1293 = vpop.permute.xlu0 %1292
    %1294 = vrot.lane.b32.xlu0 %v554, 80
    %v1295 = vpop.permute.xlu0 %1294
    %1300 = vrot.lane.b32.xlu0 %v1288, 96
    %v1301 = vpop.permute.xlu0 %1300
    %1302 = vrot.lane.b32.xlu0 %v1289, 96
    %v1303 = vpop.permute.xlu0 %1302
    %v1306 = vsel %vm421, %v1293, %v1301
    %v1307 = vsel %vm421, %v1295, %v1303
    %v1308 = vld [vmem:[%s8] sm:$0xff]
    %v1309 = vld [vmem:[%s8 + $0x8] sm:$0xff]
    %v1310 = vld [vmem:[%s8 + $0x10] sm:$0xff]
    %v1311 = vld [vmem:[%s8 + $0x18] sm:$0xff]
    %v1312 = vld [vmem:[%s10] sm:$0x1]
    %v1314 = vperm.slane %v1312, 0
    %vm1316 = vcmask 261120
    %v1318 = vsel %vm1316, %v1306, 0
    %v1321 = vsel %vm1316, %v1307, 0
    %1323 = vmatpush.msra.mxu0 0.0
    %1324 = vmatpush.msra.mxu0 0.0
    %1325 = vmatpush.msra.mxu0 0.0
    %1326 = vmatpush.msra.mxu0 0.0
    %1327 = vmatpush.msra.mxu0 0.0
    %1328 = vmatpush.msra.mxu0 0.0
    %1329 = vmatpush.msra.mxu0 0.0
    %1330 = vmatpush.msra.mxu0 0.0
    %1331 = vmatpush.msra.mxu0 0.0
    %1332 = vmatpush.msra.mxu0 0.0
    %1333 = vmatpush.msra.mxu0 0.0
    %1334 = vmatpush.msra.mxu0 0.0
    %1335 = vmatpush.msra.mxu0 %v1311
    %1336 = vmatpush.msra.mxu0 %v1310
    %1337 = vmatpush.msra.mxu0 %v1309
    %1338 = vmatpush.msra.mxu0 %v1308
    %1339 = vmatmul.f32.gmra.mxu0 %v1318
    %v1340 = vpop.f32.mrf.mxu0
    %v1341 = vadd.f32 %v1314, %v1340
    %1342 = vmatmul.f32.gmra.mxu0 %v1321
    %v1343 = vpop.f32.mrf.mxu0
    %v1344 = vadd.f32 %v1314, %v1343
    %1345 = vdwg.mxu0
    %v1346 = vld [vmem:[#allocation13] sm:$0xff]
    %v1347 = vld [vmem:[#allocation13 + $0x8] sm:$0xff]
    %v1348 = vld [vmem:[#allocation13 + $0x10] sm:$0xff]
    %v1349 = vld [vmem:[#allocation13 + $0x18] sm:$0xff]
    %v1350 = vld [vmem:[%s13] sm:$0x1]
    %v1352 = vperm.slane %v1350, 0
    %1354 = vmatpush.msra.mxu0 0.0
    %1355 = vmatpush.msra.mxu0 0.0
    %1356 = vmatpush.msra.mxu0 0.0
    %1357 = vmatpush.msra.mxu0 0.0
    %1358 = vmatpush.msra.mxu0 0.0
    %1359 = vmatpush.msra.mxu0 0.0
    %1360 = vmatpush.msra.mxu0 0.0
    %1361 = vmatpush.msra.mxu0 0.0
    %1362 = vmatpush.msra.mxu0 0.0
    %1363 = vmatpush.msra.mxu0 0.0
    %1364 = vmatpush.msra.mxu0 0.0
    %1365 = vmatpush.msra.mxu0 0.0
    %1366 = vmatpush.msra.mxu0 %v1349
    %1367 = vmatpush.msra.mxu0 %v1348
    %1368 = vmatpush.msra.mxu0 %v1347
    %1369 = vmatpush.msra.mxu0 %v1346
    %1370 = vmatmul.f32.gmra.mxu0 %v1318
    %v1371 = vpop.f32.mrf.mxu0
    %v1372 = vadd.f32 %v1352, %v1371
    %1373 = vmatmul.f32.gmra.mxu0 %v1321
    %v1374 = vpop.f32.mrf.mxu0
    %v1375 = vadd.f32 %v1352, %v1374
    %1376 = vdwg.mxu0
    %v1377 = vld [vmem:[#allocation12] sm:$0xff]
    %v1378 = vld [vmem:[#allocation12 + $0x8] sm:$0xff]
    %v1379 = vld [vmem:[#allocation12 + $0x10] sm:$0xff]
    %v1380 = vld [vmem:[#allocation12 + $0x18] sm:$0xff]
    %v1381 = vld [vmem:[#allocation15] sm:$0xff]
    %v1382 = vld [vmem:[#allocation15 + $0x8] sm:$0xff]
    %v1383 = vld [vmem:[#allocation15 + $0x10] sm:$0xff]
    %v1384 = vld [vmem:[#allocation15 + $0x18] sm:$0xff]
    %v1385 = vsel %vm1316, 0.0, 0
    %1387 = vmatpush.msra.mxu0 0.0
    %1388 = vmatpush.msra.mxu0 0.0
    %1389 = vmatpush.msra.mxu0 0.0
    %1390 = vmatpush.msra.mxu0 0.0
    %1391 = vmatpush.msra.mxu0 0.0
    %1392 = vmatpush.msra.mxu0 0.0
    %1393 = vmatpush.msra.mxu0 0.0
    %1394 = vmatpush.msra.mxu0 0.0
    %1395 = vmatpush.msra.mxu0 0.0
    %1396 = vmatpush.msra.mxu0 0.0
    %1397 = vmatpush.msra.mxu0 0.0
    %1398 = vmatpush.msra.mxu0 0.0
    %1399 = vmatpush.msra.mxu0 %v1380
    %1400 = vmatpush.msra.mxu0 %v1379
    %1401 = vmatpush.msra.mxu0 %v1378
    %1402 = vmatpush.msra.mxu0 %v1377
    %1403 = vmatmul.f32.gmra.mxu0 %v1385
    %v1404 = vpop.f32.mrf.mxu0
    %v1405 = vadd.f32 0.0, %v1404
    %1406 = vdwg.mxu0
    %v1407 = vadd.f32 %v1341, %v1405
    %v1408 = vxor.u32 %v1407, 2147483648
    %v1409 = vmul.f32 %v1408, 1.442695
    %v1410 = vpow.pop %v1409
    %v1411 = vadd.f32 %v1410, 1.0
    %v1412 = vrcp.pop %v1411
    %v1413 = vmul.f32 %v1411, %v1412
    %v1414 = vsub.f32 1.0, %v1413
    %v1415 = vmul.f32 %v1412, %v1414
    %v1416 = vadd.f32 %v1412, %v1415
    %vm1417 = vweird.f32 %v1411
    %vm1418 = vweird.f32 %v1412
    %vm1419 = vmor %vm1417, %vm1418
    %v1420 = vsel %vm1419, %v1412, %v1416
    %v1421 = vand.u32 2147483647, %v1411
    %vm1422 = vcmp.eq.f32.partialorder %v1421, 8.507059e+37
    %v1423 = vand.u32 %v1411, 2147483648
    %v1424 = vor.u32 1.1754944e-38, %v1423
    %v1425 = vsel %vm1422, %v1424, %v1420
    %v1426 = vmul.f32 1.0, %v1425
    %v1427 = vtanh.pop %v1407
    %v1428 = vmul.f32 %v1426, 0.0
    %1430 = vrot.lane.b32.xlu0 %v1427, 64
    %v1431 = vpop.permute.xlu0 %1430
    %v1433 = vmul.f32 %v1426, %v1431
    %1435 = vrot.lane.b32.xlu0 %v1433, 32
    %v1436 = vpop.permute.xlu0 %1435
    %v1438 = vadd.f32 %v1428, %v1436
    %v1439 = vtanh.pop %v1438
    %1441 = vrot.lane.b32.xlu0 %v1439, 64
    %v1442 = vpop.permute.xlu0 %1441
    %v1444 = vmul.f32 %v1426, %v1442
    %1445 = vmatpush.msra.mxu0 0.0
    %1446 = vmatpush.msra.mxu0 0.0
    %1447 = vmatpush.msra.mxu0 0.0
    %1448 = vmatpush.msra.mxu0 0.0
    %1449 = vmatpush.msra.mxu0 0.0
    %1450 = vmatpush.msra.mxu0 0.0
    %1451 = vmatpush.msra.mxu0 0.0
    %1452 = vmatpush.msra.mxu0 0.0
    %1453 = vmatpush.msra.mxu0 0.0
    %1454 = vmatpush.msra.mxu0 0.0
    %1455 = vmatpush.msra.mxu0 0.0
    %1456 = vmatpush.msra.mxu0 0.0
    %1457 = vmatpush.msra.mxu0 %v1384
    %1458 = vmatpush.msra.mxu0 %v1383
    %1459 = vmatpush.msra.mxu0 %v1382
    %1460 = vmatpush.msra.mxu0 %v1381
    %1461 = vmatmul.f32.gmra.mxu0 %v1385
    %v1462 = vpop.f32.mrf.mxu0
    %v1463 = vadd.f32 0.0, %v1462
    %1464 = vdwg.mxu0
    %v1466 = vrot.slane %v1463, 2
    %v1468 = vadd.f32 %v1375, %v1466
    %v1469 = vxor.u32 %v1468, 2147483648
    %v1470 = vmul.f32 %v1469, 1.442695
    %v1471 = vpow.pop %v1470
    %v1472 = vadd.f32 %v1471, 1.0
    %v1473 = vrcp.pop %v1472
    %v1474 = vmul.f32 %v1472, %v1473
    %v1475 = vsub.f32 1.0, %v1474
    %v1476 = vmul.f32 %v1473, %v1475
    %v1477 = vadd.f32 %v1473, %v1476
    %vm1478 = vweird.f32 %v1472
    %vm1479 = vweird.f32 %v1473
    %vm1480 = vmor %vm1478, %vm1479
    %v1481 = vsel %vm1480, %v1473, %v1477
    %v1482 = vand.u32 2147483647, %v1472
    %vm1483 = vcmp.eq.f32.partialorder %v1482, 8.507059e+37
    %v1484 = vand.u32 %v1472, 2147483648
    %v1485 = vor.u32 1.1754944e-38, %v1484
    %v1486 = vsel %vm1483, %v1485, %v1481
    %v1487 = vmul.f32 1.0, %v1486
    %v1488 = vtanh.pop %v1468
    %v1489 = vmul.f32 %v1487, 0.0
    %1491 = vrot.lane.b32.xlu0 %v1488, 64
    %v1492 = vpop.permute.xlu0 %1491
    %v1494 = vmul.f32 %v1487, %v1492
    %1496 = vrot.lane.b32.xlu0 %v1494, 32
    %v1497 = vpop.permute.xlu0 %1496
    %v1499 = vadd.f32 %v1489, %v1497
    %v1500 = vtanh.pop %v1499
    %1502 = vrot.lane.b32.xlu0 %v1500, 64
    %v1503 = vpop.permute.xlu0 %1502
    %v1505 = vmul.f32 %v1487, %v1503
    %1507 = vrot.lane.b32.xlu0 %v1444, 32
    %v1508 = vpop.permute.xlu0 %1507
    %vm1510 = vcmask 254976
    %1511 = vst.msk [vmem:[#allocation2] sm:$0x3] %vm1510, %v1508
    %1513 = vrot.lane.b32.xlu0 %v1505, 64
    %v1514 = vpop.permute.xlu0 %1513
    %vm1516 = vcmask 523526
    %1517 = vst.msk [vmem:[#allocation2 + $0x8] sm:$0xc0] %vm1516, %v1514
    %v1518 = vsel %vm1316, %v1508, 0
    %1520 = vmatpush.msra.mxu0 0.0
    %1521 = vmatpush.msra.mxu0 0.0
    %1522 = vmatpush.msra.mxu0 0.0
    %1523 = vmatpush.msra.mxu0 0.0
    %1524 = vmatpush.msra.mxu0 0.0
    %1525 = vmatpush.msra.mxu0 0.0
    %1526 = vmatpush.msra.mxu0 0.0
    %1527 = vmatpush.msra.mxu0 0.0
    %1528 = vmatpush.msra.mxu0 0.0
    %1529 = vmatpush.msra.mxu0 0.0
    %1530 = vmatpush.msra.mxu0 0.0
    %1531 = vmatpush.msra.mxu0 0.0
    %1532 = vmatpush.msra.mxu0 %v1380
    %1533 = vmatpush.msra.mxu0 %v1379
    %1534 = vmatpush.msra.mxu0 %v1378
    %1535 = vmatpush.msra.mxu0 %v1377
    %1536 = vmatmul.f32.gmra.mxu0 %v1518
    %v1537 = vpop.f32.mrf.mxu0
    %v1538 = vadd.f32 0.0, %v1537
    %1539 = vdwg.mxu0
    %v1541 = vrot.slane %v1538, 6
    %v1543 = vadd.f32 %v1341, %v1541
    %v1544 = vxor.u32 %v1543, 2147483648
    %v1545 = vmul.f32 %v1544, 1.442695
    %v1546 = vpow.pop %v1545
    %v1547 = vadd.f32 %v1546, 1.0
    %v1548 = vrcp.pop %v1547
    %v1549 = vmul.f32 %v1547, %v1548
    %v1550 = vsub.f32 1.0, %v1549
    %v1551 = vmul.f32 %v1548, %v1550
    %v1552 = vadd.f32 %v1548, %v1551
    %vm1553 = vweird.f32 %v1547
    %vm1554 = vweird.f32 %v1548
    %vm1555 = vmor %vm1553, %vm1554
    %v1556 = vsel %vm1555, %v1548, %v1552
    %v1557 = vand.u32 2147483647, %v1547
    %vm1558 = vcmp.eq.f32.partialorder %v1557, 8.507059e+37
    %v1559 = vand.u32 %v1547, 2147483648
    %v1560 = vor.u32 1.1754944e-38, %v1559
    %v1561 = vsel %vm1558, %v1560, %v1556
    %v1562 = vmul.f32 1.0, %v1561
    %v1563 = vtanh.pop %v1543
    %v1565 = vrot.slane %v1438, 6
    %v1567 = vmul.f32 %v1562, %v1565
    %1569 = vrot.lane.b32.xlu0 %v1563, 64
    %v1570 = vpop.permute.xlu0 %1569
    %v1572 = vmul.f32 %v1562, %v1570
    %1574 = vrot.lane.b32.xlu0 %v1572, 32
    %v1575 = vpop.permute.xlu0 %1574
    %v1577 = vadd.f32 %v1567, %v1575
    %v1578 = vtanh.pop %v1577
    %1580 = vrot.lane.b32.xlu0 %v1578, 64
    %v1581 = vpop.permute.xlu0 %1580
    %v1583 = vmul.f32 %v1562, %v1581
    %v1584 = vrot.slane %v1505, 6
    %1585 = vrot.lane.b32.xlu0 %v1584, 32
    %v1586 = vpop.permute.xlu0 %1585
    %v1587 = vsel %vm1316, %v1586, 0
    %1589 = vmatpush.msra.mxu0 0.0
    %1590 = vmatpush.msra.mxu0 0.0
    %1591 = vmatpush.msra.mxu0 0.0
    %1592 = vmatpush.msra.mxu0 0.0
    %1593 = vmatpush.msra.mxu0 0.0
    %1594 = vmatpush.msra.mxu0 0.0
    %1595 = vmatpush.msra.mxu0 0.0
    %1596 = vmatpush.msra.mxu0 0.0
    %1597 = vmatpush.msra.mxu0 0.0
    %1598 = vmatpush.msra.mxu0 0.0
    %1599 = vmatpush.msra.mxu0 0.0
    %1600 = vmatpush.msra.mxu0 0.0
    %1601 = vmatpush.msra.mxu0 %v1384
    %1602 = vmatpush.msra.mxu0 %v1383
    %1603 = vmatpush.msra.mxu0 %v1382
    %1604 = vmatpush.msra.mxu0 %v1381
    %1605 = vmatmul.f32.gmra.mxu0 %v1587
    %v1606 = vpop.f32.mrf.mxu0
    %v1607 = vadd.f32 0.0, %v1606
    %1608 = vdwg.mxu0
    %v1610 = vrot.slane %v1607, 4
    %v1612 = vadd.f32 %v1375, %v1610
    %v1613 = vxor.u32 %v1612, 2147483648
    %v1614 = vmul.f32 %v1613, 1.442695
    %v1615 = vpow.pop %v1614
    %v1616 = vadd.f32 %v1615, 1.0
    %v1617 = vrcp.pop %v1616
    %v1618 = vmul.f32 %v1616, %v1617
    %v1619 = vsub.f32 1.0, %v1618
    %v1620 = vmul.f32 %v1617, %v1619
    %v1621 = vadd.f32 %v1617, %v1620
    %vm1622 = vweird.f32 %v1616
    %vm1623 = vweird.f32 %v1617
    %vm1624 = vmor %vm1622, %vm1623
    %v1625 = vsel %vm1624, %v1617, %v1621
    %v1626 = vand.u32 2147483647, %v1616
    %vm1627 = vcmp.eq.f32.partialorder %v1626, 8.507059e+37
    %v1628 = vand.u32 %v1616, 2147483648
    %v1629 = vor.u32 1.1754944e-38, %v1628
    %v1630 = vsel %vm1627, %v1629, %v1625
    %v1631 = vmul.f32 1.0, %v1630
    %v1632 = vtanh.pop %v1612
    %v1634 = vrot.slane %v1499, 2
    %v1636 = vmul.f32 %v1631, %v1634
    %1638 = vrot.lane.b32.xlu0 %v1632, 64
    %v1639 = vpop.permute.xlu0 %1638
    %v1641 = vmul.f32 %v1631, %v1639
    %1643 = vrot.lane.b32.xlu0 %v1641, 32
    %v1644 = vpop.permute.xlu0 %1643
    %v1646 = vadd.f32 %v1636, %v1644
    %v1647 = vtanh.pop %v1646
    %1649 = vrot.lane.b32.xlu0 %v1647, 64
    %v1650 = vpop.permute.xlu0 %1649
    %v1652 = vmul.f32 %v1631, %v1650
    %1654 = vrot.lane.b32.xlu0 %v1583, 32
    %v1655 = vpop.permute.xlu0 %1654
    %vm1657 = vcmask 257026
    %1658 = vst.msk [vmem:[#allocation2] sm:$0xc] %vm1657, %v1655
    %1660 = vrot.lane.b32.xlu0 %v1652, 64
    %v1661 = vpop.permute.xlu0 %1660
    %vm1663 = vcmask 521476
    %1664 = vst.msk [vmem:[#allocation2 + $0x8] sm:$0x30] %vm1663, %v1661
    %v1665 = vrot.slane %v1583, 2
    %1666 = vrot.lane.b32.xlu0 %v1665, 32
    %v1667 = vpop.permute.xlu0 %1666
    %v1668 = vsel %vm1316, %v1667, 0
    %1670 = vmatpush.msra.mxu0 0.0
    %1671 = vmatpush.msra.mxu0 0.0
    %1672 = vmatpush.msra.mxu0 0.0
    %1673 = vmatpush.msra.mxu0 0.0
    %1674 = vmatpush.msra.mxu0 0.0
    %1675 = vmatpush.msra.mxu0 0.0
    %1676 = vmatpush.msra.mxu0 0.0
    %1677 = vmatpush.msra.mxu0 0.0
    %1678 = vmatpush.msra.mxu0 0.0
    %1679 = vmatpush.msra.mxu0 0.0
    %1680 = vmatpush.msra.mxu0 0.0
    %1681 = vmatpush.msra.mxu0 0.0
    %1682 = vmatpush.msra.mxu0 %v1380
    %1683 = vmatpush.msra.mxu0 %v1379
    %1684 = vmatpush.msra.mxu0 %v1378
    %1685 = vmatpush.msra.mxu0 %v1377
    %1686 = vmatmul.f32.gmra.mxu0 %v1668
    %v1687 = vpop.f32.mrf.mxu0
    %v1688 = vadd.f32 0.0, %v1687
    %1689 = vdwg.mxu0
    %v1691 = vrot.slane %v1688, 4
    %v1693 = vadd.f32 %v1341, %v1691
    %v1694 = vxor.u32 %v1693, 2147483648
    %v1695 = vmul.f32 %v1694, 1.442695
    %v1696 = vpow.pop %v1695
    %v1697 = vadd.f32 %v1696, 1.0
    %v1698 = vrcp.pop %v1697
    %v1699 = vmul.f32 %v1697, %v1698
    %v1700 = vsub.f32 1.0, %v1699
    %v1701 = vmul.f32 %v1698, %v1700
    %v1702 = vadd.f32 %v1698, %v1701
    %vm1703 = vweird.f32 %v1697
    %vm1704 = vweird.f32 %v1698
    %vm1705 = vmor %vm1703, %vm1704
    %v1706 = vsel %vm1705, %v1698, %v1702
    %v1707 = vand.u32 2147483647, %v1697
    %vm1708 = vcmp.eq.f32.partialorder %v1707, 8.507059e+37
    %v1709 = vand.u32 %v1697, 2147483648
    %v1710 = vor.u32 1.1754944e-38, %v1709
    %v1711 = vsel %vm1708, %v1710, %v1706
    %v1712 = vmul.f32 1.0, %v1711
    %v1713 = vtanh.pop %v1693
    %v1715 = vrot.slane %v1577, 6
    %v1717 = vmul.f32 %v1712, %v1715
    %1719 = vrot.lane.b32.xlu0 %v1713, 64
    %v1720 = vpop.permute.xlu0 %1719
    %v1722 = vmul.f32 %v1712, %v1720
    %1724 = vrot.lane.b32.xlu0 %v1722, 32
    %v1725 = vpop.permute.xlu0 %1724
    %v1727 = vadd.f32 %v1717, %v1725
    %v1728 = vtanh.pop %v1727
    %1730 = vrot.lane.b32.xlu0 %v1728, 64
    %v1731 = vpop.permute.xlu0 %1730
    %v1733 = vmul.f32 %v1712, %v1731
    %v1734 = vrot.slane %v1652, 4
    %1735 = vrot.lane.b32.xlu0 %v1734, 32
    %v1736 = vpop.permute.xlu0 %1735
    %v1737 = vsel %vm1316, %v1736, 0
    %1739 = vmatpush.msra.mxu0 0.0
    %1740 = vmatpush.msra.mxu0 0.0
    %1741 = vmatpush.msra.mxu0 0.0
    %1742 = vmatpush.msra.mxu0 0.0
    %1743 = vmatpush.msra.mxu0 0.0
    %1744 = vmatpush.msra.mxu0 0.0
    %1745 = vmatpush.msra.mxu0 0.0
    %1746 = vmatpush.msra.mxu0 0.0
    %1747 = vmatpush.msra.mxu0 0.0
    %1748 = vmatpush.msra.mxu0 0.0
    %1749 = vmatpush.msra.mxu0 0.0
    %1750 = vmatpush.msra.mxu0 0.0
    %1751 = vmatpush.msra.mxu0 %v1384
    %1752 = vmatpush.msra.mxu0 %v1383
    %1753 = vmatpush.msra.mxu0 %v1382
    %1754 = vmatpush.msra.mxu0 %v1381
    %1755 = vmatmul.f32.gmra.mxu0 %v1737
    %v1756 = vpop.f32.mrf.mxu0
    %v1757 = vadd.f32 0.0, %v1756
    %1758 = vdwg.mxu0
    %v1760 = vrot.slane %v1757, 6
    %v1762 = vadd.f32 %v1375, %v1760
    %v1763 = vxor.u32 %v1762, 2147483648
    %v1764 = vmul.f32 %v1763, 1.442695
    %v1765 = vpow.pop %v1764
    %v1766 = vadd.f32 %v1765, 1.0
    %v1767 = vrcp.pop %v1766
    %v1768 = vmul.f32 %v1766, %v1767
    %v1769 = vsub.f32 1.0, %v1768
    %v1770 = vmul.f32 %v1767, %v1769
    %v1771 = vadd.f32 %v1767, %v1770
    %vm1772 = vweird.f32 %v1766
    %vm1773 = vweird.f32 %v1767
    %vm1774 = vmor %vm1772, %vm1773
    %v1775 = vsel %vm1774, %v1767, %v1771
    %v1776 = vand.u32 2147483647, %v1766
    %vm1777 = vcmp.eq.f32.partialorder %v1776, 8.507059e+37
    %v1778 = vand.u32 %v1766, 2147483648
    %v1779 = vor.u32 1.1754944e-38, %v1778
    %v1780 = vsel %vm1777, %v1779, %v1775
    %v1781 = vmul.f32 1.0, %v1780
    %v1782 = vtanh.pop %v1762
    %v1784 = vrot.slane %v1646, 2
    %v1786 = vmul.f32 %v1781, %v1784
    %1788 = vrot.lane.b32.xlu0 %v1782, 64
    %v1789 = vpop.permute.xlu0 %1788
    %v1791 = vmul.f32 %v1781, %v1789
    %1793 = vrot.lane.b32.xlu0 %v1791, 32
    %v1794 = vpop.permute.xlu0 %1793
    %v1796 = vadd.f32 %v1786, %v1794
    %v1797 = vtanh.pop %v1796
    %1799 = vrot.lane.b32.xlu0 %v1797, 64
    %v1800 = vpop.permute.xlu0 %1799
    %v1802 = vmul.f32 %v1781, %v1800
    %1804 = vrot.lane.b32.xlu0 %v1733, 32
    %v1805 = vpop.permute.xlu0 %1804
    %vm1807 = vcmask 259076
    %1808 = vst.msk [vmem:[#allocation2] sm:$0x30] %vm1807, %v1805
    %1810 = vrot.lane.b32.xlu0 %v1802, 64
    %v1811 = vpop.permute.xlu0 %1810
    %vm1813 = vcmask 519426
    %1814 = vst.msk [vmem:[#allocation2 + $0x8] sm:$0xc] %vm1813, %v1811
    %v1815 = vrot.slane %v1733, 4
    %1816 = vrot.lane.b32.xlu0 %v1815, 32
    %v1817 = vpop.permute.xlu0 %1816
    %v1818 = vsel %vm1316, %v1817, 0
    %1820 = vmatpush.msra.mxu0 0.0
    %1821 = vmatpush.msra.mxu0 0.0
    %1822 = vmatpush.msra.mxu0 0.0
    %1823 = vmatpush.msra.mxu0 0.0
    %1824 = vmatpush.msra.mxu0 0.0
    %1825 = vmatpush.msra.mxu0 0.0
    %1826 = vmatpush.msra.mxu0 0.0
    %1827 = vmatpush.msra.mxu0 0.0
    %1828 = vmatpush.msra.mxu0 0.0
    %1829 = vmatpush.msra.mxu0 0.0
    %1830 = vmatpush.msra.mxu0 0.0
    %1831 = vmatpush.msra.mxu0 0.0
    %1832 = vmatpush.msra.mxu0 %v1380
    %1833 = vmatpush.msra.mxu0 %v1379
    %1834 = vmatpush.msra.mxu0 %v1378
    %1835 = vmatpush.msra.mxu0 %v1377
    %1836 = vmatmul.f32.gmra.mxu0 %v1818
    %v1837 = vpop.f32.mrf.mxu0
    %v1838 = vadd.f32 0.0, %v1837
    %1839 = vdwg.mxu0
    %v1841 = vrot.slane %v1838, 2
    %v1843 = vadd.f32 %v1341, %v1841
    %v1844 = vxor.u32 %v1843, 2147483648
    %v1845 = vmul.f32 %v1844, 1.442695
    %v1846 = vpow.pop %v1845
    %v1847 = vadd.f32 %v1846, 1.0
    %v1848 = vrcp.pop %v1847
    %v1849 = vmul.f32 %v1847, %v1848
    %v1850 = vsub.f32 1.0, %v1849
    %v1851 = vmul.f32 %v1848, %v1850
    %v1852 = vadd.f32 %v1848, %v1851
    %vm1853 = vweird.f32 %v1847
    %vm1854 = vweird.f32 %v1848
    %vm1855 = vmor %vm1853, %vm1854
    %v1856 = vsel %vm1855, %v1848, %v1852
    %v1857 = vand.u32 2147483647, %v1847
    %vm1858 = vcmp.eq.f32.partialorder %v1857, 8.507059e+37
    %v1859 = vand.u32 %v1847, 2147483648
    %v1860 = vor.u32 1.1754944e-38, %v1859
    %v1861 = vsel %vm1858, %v1860, %v1856
    %v1862 = vmul.f32 1.0, %v1861
    %v1863 = vtanh.pop %v1843
    %v1865 = vrot.slane %v1727, 6
    %v1867 = vmul.f32 %v1862, %v1865
    %1869 = vrot.lane.b32.xlu0 %v1863, 64
    %v1870 = vpop.permute.xlu0 %1869
    %v1872 = vmul.f32 %v1862, %v1870
    %1874 = vrot.lane.b32.xlu0 %v1872, 32
    %v1875 = vpop.permute.xlu0 %1874
    %v1877 = vadd.f32 %v1867, %v1875
    %v1878 = vtanh.pop %v1877
    %1880 = vrot.lane.b32.xlu0 %v1878, 64
    %v1881 = vpop.permute.xlu0 %1880
    %v1883 = vmul.f32 %v1862, %v1881
    %v1884 = vrot.slane %v1802, 2
    %1885 = vrot.lane.b32.xlu0 %v1884, 32
    %v1886 = vpop.permute.xlu0 %1885
    %v1887 = vsel %vm1316, %v1886, 0
    %1889 = vmatpush.msra.mxu0 0.0
    %1890 = vmatpush.msra.mxu0 0.0
    %1891 = vmatpush.msra.mxu0 0.0
    %1892 = vmatpush.msra.mxu0 0.0
    %1893 = vmatpush.msra.mxu0 0.0
    %1894 = vmatpush.msra.mxu0 0.0
    %1895 = vmatpush.msra.mxu0 0.0
    %1896 = vmatpush.msra.mxu0 0.0
    %1897 = vmatpush.msra.mxu0 0.0
    %1898 = vmatpush.msra.mxu0 0.0
    %1899 = vmatpush.msra.mxu0 0.0
    %1900 = vmatpush.msra.mxu0 0.0
    %1901 = vmatpush.msra.mxu0 %v1384
    %1902 = vmatpush.msra.mxu0 %v1383
    %1903 = vmatpush.msra.mxu0 %v1382
    %1904 = vmatpush.msra.mxu0 %v1381
    %1905 = vmatmul.f32.gmra.mxu0 %v1887
    %v1906 = vpop.f32.mrf.mxu0
    %v1907 = vadd.f32 0.0, %v1906
    %1908 = vdwg.mxu0
    %v1909 = vadd.f32 %v1375, %v1907
    %v1910 = vxor.u32 %v1909, 2147483648
    %v1911 = vmul.f32 %v1910, 1.442695
    %v1912 = vpow.pop %v1911
    %v1913 = vadd.f32 %v1912, 1.0
    %v1914 = vrcp.pop %v1913
    %v1915 = vmul.f32 %v1913, %v1914
    %v1916 = vsub.f32 1.0, %v1915
    %v1917 = vmul.f32 %v1914, %v1916
    %v1918 = vadd.f32 %v1914, %v1917
    %vm1919 = vweird.f32 %v1913
    %vm1920 = vweird.f32 %v1914
    %vm1921 = vmor %vm1919, %vm1920
    %v1922 = vsel %vm1921, %v1914, %v1918
    %v1923 = vand.u32 2147483647, %v1913
    %vm1924 = vcmp.eq.f32.partialorder %v1923, 8.507059e+37
    %v1925 = vand.u32 %v1913, 2147483648
    %v1926 = vor.u32 1.1754944e-38, %v1925
    %v1927 = vsel %vm1924, %v1926, %v1922
    %v1928 = vmul.f32 1.0, %v1927
    %v1929 = vtanh.pop %v1909
    %v1931 = vrot.slane %v1796, 2
    %v1933 = vmul.f32 %v1928, %v1931
    %1935 = vrot.lane.b32.xlu0 %v1929, 64
    %v1936 = vpop.permute.xlu0 %1935
    %v1938 = vmul.f32 %v1928, %v1936
    %1940 = vrot.lane.b32.xlu0 %v1938, 32
    %v1941 = vpop.permute.xlu0 %1940
    %v1943 = vadd.f32 %v1933, %v1941
    %v1944 = vtanh.pop %v1943
    %1946 = vrot.lane.b32.xlu0 %v1944, 64
    %v1947 = vpop.permute.xlu0 %1946
    %v1949 = vmul.f32 %v1928, %v1947
    %1951 = vrot.lane.b32.xlu0 %v1883, 32
    %v1952 = vpop.permute.xlu0 %1951
    %vm1954 = vcmask 261126
    %1955 = vst.msk [vmem:[#allocation2] sm:$0xc0] %vm1954, %v1952
    %1957 = vrot.lane.b32.xlu0 %v1949, 64
    %v1958 = vpop.permute.xlu0 %1957
    %vm1960 = vcmask 517376
    %1961 = vst.msk [vmem:[#allocation2 + $0x8] sm:$0x3] %vm1960, %v1958
    %v1962 = vrot.slane %v1883, 6
    %1963 = vrot.lane.b32.xlu0 %v1962, 32
    %v1964 = vpop.permute.xlu0 %1963
    %v1965 = vsel %vm1316, %v1964, 0
    %1967 = vmatpush.msra.mxu0 0.0
    %1968 = vmatpush.msra.mxu0 0.0
    %1969 = vmatpush.msra.mxu0 0.0
    %1970 = vmatpush.msra.mxu0 0.0
    %1971 = vmatpush.msra.mxu0 0.0
    %1972 = vmatpush.msra.mxu0 0.0
    %1973 = vmatpush.msra.mxu0 0.0
    %1974 = vmatpush.msra.mxu0 0.0
    %1975 = vmatpush.msra.mxu0 0.0
    %1976 = vmatpush.msra.mxu0 0.0
    %1977 = vmatpush.msra.mxu0 0.0
    %1978 = vmatpush.msra.mxu0 0.0
    %1979 = vmatpush.msra.mxu0 %v1380
    %1980 = vmatpush.msra.mxu0 %v1379
    %1981 = vmatpush.msra.mxu0 %v1378
    %1982 = vmatpush.msra.mxu0 %v1377
    %1983 = vmatmul.f32.gmra.mxu0 %v1965
    %v1984 = vpop.f32.mrf.mxu0
    %v1985 = vadd.f32 0.0, %v1984
    %1986 = vdwg.mxu0
    %v1987 = vadd.f32 %v1344, %v1985
    %v1988 = vxor.u32 %v1987, 2147483648
    %v1989 = vmul.f32 %v1988, 1.442695
    %v1990 = vpow.pop %v1989
    %v1991 = vadd.f32 %v1990, 1.0
    %v1992 = vrcp.pop %v1991
    %v1993 = vmul.f32 %v1991, %v1992
    %v1994 = vsub.f32 1.0, %v1993
    %v1995 = vmul.f32 %v1992, %v1994
    %v1996 = vadd.f32 %v1992, %v1995
    %vm1997 = vweird.f32 %v1991
    %vm1998 = vweird.f32 %v1992
    %vm1999 = vmor %vm1997, %vm1998
    %v2000 = vsel %vm1999, %v1992, %v1996
    %v2001 = vand.u32 2147483647, %v1991
    %vm2002 = vcmp.eq.f32.partialorder %v2001, 8.507059e+37
    %v2003 = vand.u32 %v1991, 2147483648
    %v2004 = vor.u32 1.1754944e-38, %v2003
    %v2005 = vsel %vm2002, %v2004, %v2000
    %v2006 = vmul.f32 1.0, %v2005
    %v2007 = vtanh.pop %v1987
    %v2009 = vrot.slane %v1877, 6
    %v2011 = vmul.f32 %v2006, %v2009
    %2013 = vrot.lane.b32.xlu0 %v2007, 64
    %v2014 = vpop.permute.xlu0 %2013
    %v2016 = vmul.f32 %v2006, %v2014
    %2018 = vrot.lane.b32.xlu0 %v2016, 32
    %v2019 = vpop.permute.xlu0 %2018
    %v2021 = vadd.f32 %v2011, %v2019
    %v2022 = vtanh.pop %v2021
    %2024 = vrot.lane.b32.xlu0 %v2022, 64
    %v2025 = vpop.permute.xlu0 %2024
    %v2027 = vmul.f32 %v2006, %v2025
    %2028 = vrot.lane.b32.xlu0 %v1949, 32
    %v2029 = vpop.permute.xlu0 %2028
    %v2030 = vsel %vm1316, %v2029, 0
    %2032 = vmatpush.msra.mxu0 0.0
    %2033 = vmatpush.msra.mxu0 0.0
    %2034 = vmatpush.msra.mxu0 0.0
    %2035 = vmatpush.msra.mxu0 0.0
    %2036 = vmatpush.msra.mxu0 0.0
    %2037 = vmatpush.msra.mxu0 0.0
    %2038 = vmatpush.msra.mxu0 0.0
    %2039 = vmatpush.msra.mxu0 0.0
    %2040 = vmatpush.msra.mxu0 0.0
    %2041 = vmatpush.msra.mxu0 0.0
    %2042 = vmatpush.msra.mxu0 0.0
    %2043 = vmatpush.msra.mxu0 0.0
    %2044 = vmatpush.msra.mxu0 %v1384
    %2045 = vmatpush.msra.mxu0 %v1383
    %2046 = vmatpush.msra.mxu0 %v1382
    %2047 = vmatpush.msra.mxu0 %v1381
    %2048 = vmatmul.f32.gmra.mxu0 %v2030
    %v2049 = vpop.f32.mrf.mxu0
    %v2050 = vadd.f32 0.0, %v2049
    %2051 = vdwg.mxu0
    %v2053 = vrot.slane %v2050, 2
    %v2055 = vadd.f32 %v1372, %v2053
    %v2056 = vxor.u32 %v2055, 2147483648
    %v2057 = vmul.f32 %v2056, 1.442695
    %v2058 = vpow.pop %v2057
    %v2059 = vadd.f32 %v2058, 1.0
    %v2060 = vrcp.pop %v2059
    %v2061 = vmul.f32 %v2059, %v2060
    %v2062 = vsub.f32 1.0, %v2061
    %v2063 = vmul.f32 %v2060, %v2062
    %v2064 = vadd.f32 %v2060, %v2063
    %vm2065 = vweird.f32 %v2059
    %vm2066 = vweird.f32 %v2060
    %vm2067 = vmor %vm2065, %vm2066
    %v2068 = vsel %vm2067, %v2060, %v2064
    %v2069 = vand.u32 2147483647, %v2059
    %vm2070 = vcmp.eq.f32.partialorder %v2069, 8.507059e+37
    %v2071 = vand.u32 %v2059, 2147483648
    %v2072 = vor.u32 1.1754944e-38, %v2071
    %v2073 = vsel %vm2070, %v2072, %v2068
    %v2074 = vmul.f32 1.0, %v2073
    %v2075 = vtanh.pop %v2055
    %v2077 = vrot.slane %v1943, 2
    %v2079 = vmul.f32 %v2074, %v2077
    %2081 = vrot.lane.b32.xlu0 %v2075, 64
    %v2082 = vpop.permute.xlu0 %2081
    %v2084 = vmul.f32 %v2074, %v2082
    %2086 = vrot.lane.b32.xlu0 %v2084, 32
    %v2087 = vpop.permute.xlu0 %2086
    %v2089 = vadd.f32 %v2079, %v2087
    %v2090 = vtanh.pop %v2089
    %2092 = vrot.lane.b32.xlu0 %v2090, 64
    %v2093 = vpop.permute.xlu0 %2092
    %v2095 = vmul.f32 %v2074, %v2093
    %2097 = vrot.lane.b32.xlu0 %v2027, 32
    %v2098 = vpop.permute.xlu0 %2097
    %2100 = vst.msk [vmem:[#allocation2 + $0x8] sm:$0x3] %vm1510, %v2098
    %2102 = vrot.lane.b32.xlu0 %v2095, 64
    %v2103 = vpop.permute.xlu0 %2102
    %2105 = vst.msk [vmem:[#allocation2] sm:$0xc0] %vm1516, %v2103
    %v2106 = vsel %vm1316, %v2098, 0
    %2108 = vmatpush.msra.mxu0 0.0
    %2109 = vmatpush.msra.mxu0 0.0
    %2110 = vmatpush.msra.mxu0 0.0
    %2111 = vmatpush.msra.mxu0 0.0
    %2112 = vmatpush.msra.mxu0 0.0
    %2113 = vmatpush.msra.mxu0 0.0
    %2114 = vmatpush.msra.mxu0 0.0
    %2115 = vmatpush.msra.mxu0 0.0
    %2116 = vmatpush.msra.mxu0 0.0
    %2117 = vmatpush.msra.mxu0 0.0
    %2118 = vmatpush.msra.mxu0 0.0
    %2119 = vmatpush.msra.mxu0 0.0
    %2120 = vmatpush.msra.mxu0 %v1380
    %2121 = vmatpush.msra.mxu0 %v1379
    %2122 = vmatpush.msra.mxu0 %v1378
    %2123 = vmatpush.msra.mxu0 %v1377
    %2124 = vmatmul.f32.gmra.mxu0 %v2106
    %v2125 = vpop.f32.mrf.mxu0
    %v2126 = vadd.f32 0.0, %v2125
    %2127 = vdwg.mxu0
    %v2129 = vrot.slane %v2126, 6
    %v2131 = vadd.f32 %v1344, %v2129
    %v2132 = vxor.u32 %v2131, 2147483648
    %v2133 = vmul.f32 %v2132, 1.442695
    %v2134 = vpow.pop %v2133
    %v2135 = vadd.f32 %v2134, 1.0
    %v2136 = vrcp.pop %v2135
    %v2137 = vmul.f32 %v2135, %v2136
    %v2138 = vsub.f32 1.0, %v2137
    %v2139 = vmul.f32 %v2136, %v2138
    %v2140 = vadd.f32 %v2136, %v2139
    %vm2141 = vweird.f32 %v2135
    %vm2142 = vweird.f32 %v2136
    %vm2143 = vmor %vm2141, %vm2142
    %v2144 = vsel %vm2143, %v2136, %v2140
    %v2145 = vand.u32 2147483647, %v2135
    %vm2146 = vcmp.eq.f32.partialorder %v2145, 8.507059e+37
    %v2147 = vand.u32 %v2135, 2147483648
    %v2148 = vor.u32 1.1754944e-38, %v2147
    %v2149 = vsel %vm2146, %v2148, %v2144
    %v2150 = vmul.f32 1.0, %v2149
    %v2151 = vtanh.pop %v2131
    %v2153 = vrot.slane %v2021, 6
    %v2155 = vmul.f32 %v2150, %v2153
    %2157 = vrot.lane.b32.xlu0 %v2151, 64
    %v2158 = vpop.permute.xlu0 %2157
    %v2160 = vmul.f32 %v2150, %v2158
    %2162 = vrot.lane.b32.xlu0 %v2160, 32
    %v2163 = vpop.permute.xlu0 %2162
    %v2165 = vadd.f32 %v2155, %v2163
    %v2166 = vtanh.pop %v2165
    %2168 = vrot.lane.b32.xlu0 %v2166, 64
    %v2169 = vpop.permute.xlu0 %2168
    %v2171 = vmul.f32 %v2150, %v2169
    %v2172 = vrot.slane %v2095, 6
    %2173 = vrot.lane.b32.xlu0 %v2172, 32
    %v2174 = vpop.permute.xlu0 %2173
    %v2175 = vsel %vm1316, %v2174, 0
    %2177 = vmatpush.msra.mxu0 0.0
    %2178 = vmatpush.msra.mxu0 0.0
    %2179 = vmatpush.msra.mxu0 0.0
    %2180 = vmatpush.msra.mxu0 0.0
    %2181 = vmatpush.msra.mxu0 0.0
    %2182 = vmatpush.msra.mxu0 0.0
    %2183 = vmatpush.msra.mxu0 0.0
    %2184 = vmatpush.msra.mxu0 0.0
    %2185 = vmatpush.msra.mxu0 0.0
    %2186 = vmatpush.msra.mxu0 0.0
    %2187 = vmatpush.msra.mxu0 0.0
    %2188 = vmatpush.msra.mxu0 0.0
    %2189 = vmatpush.msra.mxu0 %v1384
    %2190 = vmatpush.msra.mxu0 %v1383
    %2191 = vmatpush.msra.mxu0 %v1382
    %2192 = vmatpush.msra.mxu0 %v1381
    %2193 = vmatmul.f32.gmra.mxu0 %v2175
    %v2194 = vpop.f32.mrf.mxu0
    %v2195 = vadd.f32 0.0, %v2194
    %2196 = vdwg.mxu0
    %v2198 = vrot.slane %v2195, 4
    %v2200 = vadd.f32 %v1372, %v2198
    %v2201 = vxor.u32 %v2200, 2147483648
    %v2202 = vmul.f32 %v2201, 1.442695
    %v2203 = vpow.pop %v2202
    %v2204 = vadd.f32 %v2203, 1.0
    %v2205 = vrcp.pop %v2204
    %v2206 = vmul.f32 %v2204, %v2205
    %v2207 = vsub.f32 1.0, %v2206
    %v2208 = vmul.f32 %v2205, %v2207
    %v2209 = vadd.f32 %v2205, %v2208
    %vm2210 = vweird.f32 %v2204
    %vm2211 = vweird.f32 %v2205
    %vm2212 = vmor %vm2210, %vm2211
    %v2213 = vsel %vm2212, %v2205, %v2209
    %v2214 = vand.u32 2147483647, %v2204
    %vm2215 = vcmp.eq.f32.partialorder %v2214, 8.507059e+37
    %v2216 = vand.u32 %v2204, 2147483648
    %v2217 = vor.u32 1.1754944e-38, %v2216
    %v2218 = vsel %vm2215, %v2217, %v2213
    %v2219 = vmul.f32 1.0, %v2218
    %v2220 = vtanh.pop %v2200
    %v2222 = vrot.slane %v2089, 2
    %v2224 = vmul.f32 %v2219, %v2222
    %2226 = vrot.lane.b32.xlu0 %v2220, 64
    %v2227 = vpop.permute.xlu0 %2226
    %v2229 = vmul.f32 %v2219, %v2227
    %2231 = vrot.lane.b32.xlu0 %v2229, 32
    %v2232 = vpop.permute.xlu0 %2231
    %v2234 = vadd.f32 %v2224, %v2232
    %v2235 = vtanh.pop %v2234
    %2237 = vrot.lane.b32.xlu0 %v2235, 64
    %v2238 = vpop.permute.xlu0 %2237
    %v2240 = vmul.f32 %v2219, %v2238
    %2242 = vrot.lane.b32.xlu0 %v2171, 32
    %v2243 = vpop.permute.xlu0 %2242
    %2245 = vst.msk [vmem:[#allocation2 + $0x8] sm:$0xc] %vm1657, %v2243
    %2247 = vrot.lane.b32.xlu0 %v2240, 64
    %v2248 = vpop.permute.xlu0 %2247
    %2250 = vst.msk [vmem:[#allocation2] sm:$0x30] %vm1663, %v2248
    %v2251 = vrot.slane %v2171, 2
    %2252 = vrot.lane.b32.xlu0 %v2251, 32
    %v2253 = vpop.permute.xlu0 %2252
    %v2254 = vsel %vm1316, %v2253, 0
    %2256 = vmatpush.msra.mxu0 0.0
    %2257 = vmatpush.msra.mxu0 0.0
    %2258 = vmatpush.msra.mxu0 0.0
    %2259 = vmatpush.msra.mxu0 0.0
    %2260 = vmatpush.msra.mxu0 0.0
    %2261 = vmatpush.msra.mxu0 0.0
    %2262 = vmatpush.msra.mxu0 0.0
    %2263 = vmatpush.msra.mxu0 0.0
    %2264 = vmatpush.msra.mxu0 0.0
    %2265 = vmatpush.msra.mxu0 0.0
    %2266 = vmatpush.msra.mxu0 0.0
    %2267 = vmatpush.msra.mxu0 0.0
    %2268 = vmatpush.msra.mxu0 %v1380
    %2269 = vmatpush.msra.mxu0 %v1379
    %2270 = vmatpush.msra.mxu0 %v1378
    %2271 = vmatpush.msra.mxu0 %v1377
    %2272 = vmatmul.f32.gmra.mxu0 %v2254
    %v2273 = vpop.f32.mrf.mxu0
    %v2274 = vadd.f32 0.0, %v2273
    %2275 = vdwg.mxu0
    %v2277 = vrot.slane %v2274, 4
    %v2279 = vadd.f32 %v1344, %v2277
    %v2280 = vxor.u32 %v2279, 2147483648
    %v2281 = vmul.f32 %v2280, 1.442695
    %v2282 = vpow.pop %v2281
    %v2283 = vadd.f32 %v2282, 1.0
    %v2284 = vrcp.pop %v2283
    %v2285 = vmul.f32 %v2283, %v2284
    %v2286 = vsub.f32 1.0, %v2285
    %v2287 = vmul.f32 %v2284, %v2286
    %v2288 = vadd.f32 %v2284, %v2287
    %vm2289 = vweird.f32 %v2283
    %vm2290 = vweird.f32 %v2284
    %vm2291 = vmor %vm2289, %vm2290
    %v2292 = vsel %vm2291, %v2284, %v2288
    %v2293 = vand.u32 2147483647, %v2283
    %vm2294 = vcmp.eq.f32.partialorder %v2293, 8.507059e+37
    %v2295 = vand.u32 %v2283, 2147483648
    %v2296 = vor.u32 1.1754944e-38, %v2295
    %v2297 = vsel %vm2294, %v2296, %v2292
    %v2298 = vmul.f32 1.0, %v2297
    %v2299 = vtanh.pop %v2279
    %v2301 = vrot.slane %v2165, 6
    %v2303 = vmul.f32 %v2298, %v2301
    %2305 = vrot.lane.b32.xlu0 %v2299, 64
    %v2306 = vpop.permute.xlu0 %2305
    %v2308 = vmul.f32 %v2298, %v2306
    %2310 = vrot.lane.b32.xlu0 %v2308, 32
    %v2311 = vpop.permute.xlu0 %2310
    %v2313 = vadd.f32 %v2303, %v2311
    %v2314 = vtanh.pop %v2313
    %2316 = vrot.lane.b32.xlu0 %v2314, 64
    %v2317 = vpop.permute.xlu0 %2316
    %v2319 = vmul.f32 %v2298, %v2317
    %v2320 = vrot.slane %v2240, 4
    %2321 = vrot.lane.b32.xlu0 %v2320, 32
    %v2322 = vpop.permute.xlu0 %2321
    %v2323 = vsel %vm1316, %v2322, 0
    %2325 = vmatpush.msra.mxu0 0.0
    %2326 = vmatpush.msra.mxu0 0.0
    %2327 = vmatpush.msra.mxu0 0.0
    %2328 = vmatpush.msra.mxu0 0.0
    %2329 = vmatpush.msra.mxu0 0.0
    %2330 = vmatpush.msra.mxu0 0.0
    %2331 = vmatpush.msra.mxu0 0.0
    %2332 = vmatpush.msra.mxu0 0.0
    %2333 = vmatpush.msra.mxu0 0.0
    %2334 = vmatpush.msra.mxu0 0.0
    %2335 = vmatpush.msra.mxu0 0.0
    %2336 = vmatpush.msra.mxu0 0.0
    %2337 = vmatpush.msra.mxu0 %v1384
    %2338 = vmatpush.msra.mxu0 %v1383
    %2339 = vmatpush.msra.mxu0 %v1382
    %2340 = vmatpush.msra.mxu0 %v1381
    %2341 = vmatmul.f32.gmra.mxu0 %v2323
    %v2342 = vpop.f32.mrf.mxu0
    %v2343 = vadd.f32 0.0, %v2342
    %2344 = vdwg.mxu0
    %v2346 = vrot.slane %v2343, 6
    %v2348 = vadd.f32 %v1372, %v2346
    %v2349 = vxor.u32 %v2348, 2147483648
    %v2350 = vmul.f32 %v2349, 1.442695
    %v2351 = vpow.pop %v2350
    %v2352 = vadd.f32 %v2351, 1.0
    %v2353 = vrcp.pop %v2352
    %v2354 = vmul.f32 %v2352, %v2353
    %v2355 = vsub.f32 1.0, %v2354
    %v2356 = vmul.f32 %v2353, %v2355
    %v2357 = vadd.f32 %v2353, %v2356
    %vm2358 = vweird.f32 %v2352
    %vm2359 = vweird.f32 %v2353
    %vm2360 = vmor %vm2358, %vm2359
    %v2361 = vsel %vm2360, %v2353, %v2357
    %v2362 = vand.u32 2147483647, %v2352
    %vm2363 = vcmp.eq.f32.partialorder %v2362, 8.507059e+37
    %v2364 = vand.u32 %v2352, 2147483648
    %v2365 = vor.u32 1.1754944e-38, %v2364
    %v2366 = vsel %vm2363, %v2365, %v2361
    %v2367 = vmul.f32 1.0, %v2366
    %v2368 = vtanh.pop %v2348
    %v2370 = vrot.slane %v2234, 2
    %v2372 = vmul.f32 %v2367, %v2370
    %2374 = vrot.lane.b32.xlu0 %v2368, 64
    %v2375 = vpop.permute.xlu0 %2374
    %v2377 = vmul.f32 %v2367, %v2375
    %2379 = vrot.lane.b32.xlu0 %v2377, 32
    %v2380 = vpop.permute.xlu0 %2379
    %v2382 = vadd.f32 %v2372, %v2380
    %v2383 = vtanh.pop %v2382
    %2385 = vrot.lane.b32.xlu0 %v2383, 64
    %v2386 = vpop.permute.xlu0 %2385
    %v2388 = vmul.f32 %v2367, %v2386
    %2390 = vrot.lane.b32.xlu0 %v2319, 32
    %v2391 = vpop.permute.xlu0 %2390
    %2393 = vst.msk [vmem:[#allocation2 + $0x8] sm:$0x30] %vm1807, %v2391
    %2395 = vrot.lane.b32.xlu0 %v2388, 64
    %v2396 = vpop.permute.xlu0 %2395
    %2398 = vst.msk [vmem:[#allocation2] sm:$0xc] %vm1813, %v2396
    %v2399 = vrot.slane %v2319, 4
    %2400 = vrot.lane.b32.xlu0 %v2399, 32
    %v2401 = vpop.permute.xlu0 %2400
    %v2402 = vsel %vm1316, %v2401, 0
    %2404 = vmatpush.msra.mxu0 0.0
    %2405 = vmatpush.msra.mxu0 0.0
    %2406 = vmatpush.msra.mxu0 0.0
    %2407 = vmatpush.msra.mxu0 0.0
    %2408 = vmatpush.msra.mxu0 0.0
    %2409 = vmatpush.msra.mxu0 0.0
    %2410 = vmatpush.msra.mxu0 0.0
    %2411 = vmatpush.msra.mxu0 0.0
    %2412 = vmatpush.msra.mxu0 0.0
    %2413 = vmatpush.msra.mxu0 0.0
    %2414 = vmatpush.msra.mxu0 0.0
    %2415 = vmatpush.msra.mxu0 0.0
    %2416 = vmatpush.msra.mxu0 %v1380
    %2417 = vmatpush.msra.mxu0 %v1379
    %2418 = vmatpush.msra.mxu0 %v1378
    %2419 = vmatpush.msra.mxu0 %v1377
    %2420 = vmatmul.f32.gmra.mxu0 %v2402
    %v2421 = vpop.f32.mrf.mxu0
    %v2422 = vadd.f32 0.0, %v2421
    %2423 = vdwg.mxu0
    %v2425 = vrot.slane %v2422, 2
    %v2427 = vadd.f32 %v1344, %v2425
    %v2428 = vxor.u32 %v2427, 2147483648
    %v2429 = vmul.f32 %v2428, 1.442695
    %v2430 = vpow.pop %v2429
    %v2431 = vadd.f32 %v2430, 1.0
    %v2432 = vrcp.pop %v2431
    %v2433 = vmul.f32 %v2431, %v2432
    %v2434 = vsub.f32 1.0, %v2433
    %v2435 = vmul.f32 %v2432, %v2434
    %v2436 = vadd.f32 %v2432, %v2435
    %vm2437 = vweird.f32 %v2431
    %vm2438 = vweird.f32 %v2432
    %vm2439 = vmor %vm2437, %vm2438
    %v2440 = vsel %vm2439, %v2432, %v2436
    %v2441 = vand.u32 2147483647, %v2431
    %vm2442 = vcmp.eq.f32.partialorder %v2441, 8.507059e+37
    %v2443 = vand.u32 %v2431, 2147483648
    %v2444 = vor.u32 1.1754944e-38, %v2443
    %v2445 = vsel %vm2442, %v2444, %v2440
    %v2446 = vmul.f32 1.0, %v2445
    %v2447 = vtanh.pop %v2427
    %v2449 = vrot.slane %v2313, 6
    %v2451 = vmul.f32 %v2446, %v2449
    %2453 = vrot.lane.b32.xlu0 %v2447, 64
    %v2454 = vpop.permute.xlu0 %2453
    %v2456 = vmul.f32 %v2446, %v2454
    %2458 = vrot.lane.b32.xlu0 %v2456, 32
    %v2459 = vpop.permute.xlu0 %2458
    %v2461 = vadd.f32 %v2451, %v2459
    %v2462 = vtanh.pop %v2461
    %2464 = vrot.lane.b32.xlu0 %v2462, 64
    %v2465 = vpop.permute.xlu0 %2464
    %v2467 = vmul.f32 %v2446, %v2465
    %v2468 = vrot.slane %v2388, 2
    %2469 = vrot.lane.b32.xlu0 %v2468, 32
    %v2470 = vpop.permute.xlu0 %2469
    %v2471 = vsel %vm1316, %v2470, 0
    %2473 = vmatpush.msra.mxu0 0.0
    %2474 = vmatpush.msra.mxu0 0.0
    %2475 = vmatpush.msra.mxu0 0.0
    %2476 = vmatpush.msra.mxu0 0.0
    %2477 = vmatpush.msra.mxu0 0.0
    %2478 = vmatpush.msra.mxu0 0.0
    %2479 = vmatpush.msra.mxu0 0.0
    %2480 = vmatpush.msra.mxu0 0.0
    %2481 = vmatpush.msra.mxu0 0.0
    %2482 = vmatpush.msra.mxu0 0.0
    %2483 = vmatpush.msra.mxu0 0.0
    %2484 = vmatpush.msra.mxu0 0.0
    %2485 = vmatpush.msra.mxu0 %v1384
    %2486 = vmatpush.msra.mxu0 %v1383
    %2487 = vmatpush.msra.mxu0 %v1382
    %2488 = vmatpush.msra.mxu0 %v1381
    %2489 = vmatmul.f32.gmra.mxu0 %v2471
    %v2490 = vpop.f32.mrf.mxu0
    %v2491 = vadd.f32 0.0, %v2490
    %2492 = vdwg.mxu0
    %v2493 = vadd.f32 %v1372, %v2491
    %v2494 = vxor.u32 %v2493, 2147483648
    %v2495 = vmul.f32 %v2494, 1.442695
    %v2496 = vpow.pop %v2495
    %v2497 = vadd.f32 %v2496, 1.0
    %v2498 = vrcp.pop %v2497
    %v2499 = vmul.f32 %v2497, %v2498
    %v2500 = vsub.f32 1.0, %v2499
    %v2501 = vmul.f32 %v2498, %v2500
    %v2502 = vadd.f32 %v2498, %v2501
    %vm2503 = vweird.f32 %v2497
    %vm2504 = vweird.f32 %v2498
    %vm2505 = vmor %vm2503, %vm2504
    %v2506 = vsel %vm2505, %v2498, %v2502
    %v2507 = vand.u32 2147483647, %v2497
    %vm2508 = vcmp.eq.f32.partialorder %v2507, 8.507059e+37
    %v2509 = vand.u32 %v2497, 2147483648
    %v2510 = vor.u32 1.1754944e-38, %v2509
    %v2511 = vsel %vm2508, %v2510, %v2506
    %v2512 = vmul.f32 1.0, %v2511
    %v2513 = vtanh.pop %v2493
    %v2515 = vrot.slane %v2382, 2
    %v2517 = vmul.f32 %v2512, %v2515
    %2519 = vrot.lane.b32.xlu0 %v2513, 64
    %v2520 = vpop.permute.xlu0 %2519
    %v2522 = vmul.f32 %v2512, %v2520
    %2524 = vrot.lane.b32.xlu0 %v2522, 32
    %v2525 = vpop.permute.xlu0 %2524
    %v2527 = vadd.f32 %v2517, %v2525
    %v2528 = vtanh.pop %v2527
    %2530 = vrot.lane.b32.xlu0 %v2528, 64
    %v2531 = vpop.permute.xlu0 %2530
    %v2533 = vmul.f32 %v2512, %v2531
    %2535 = vrot.lane.b32.xlu0 %v2467, 32
    %v2536 = vpop.permute.xlu0 %2535
    %2538 = vst.msk [vmem:[#allocation2 + $0x8] sm:$0xc0] %vm1954, %v2536
    %2540 = vrot.lane.b32.xlu0 %v2533, 64
    %v2541 = vpop.permute.xlu0 %2540
    %2543 = vst.msk [vmem:[#allocation2] sm:$0x3] %vm1960, %v2541
    %v2544 = vld [vmem:[#allocation2] sm:$0xff]
    %v2545 = vld [vmem:[#allocation2 + $0x8] sm:$0xff]
    %v2546 = vld [vmem:[%s14] sm:$0xff]
    %v2547 = vld [vmem:[%s14 + $0x8] sm:$0xff]
    %v2548 = vld [vmem:[%s14 + $0x10] sm:$0xff]
    %v2549 = vld [vmem:[%s14 + $0x18] sm:$0xff]
    %v2550 = vld [vmem:[%s14 + $0x20] sm:$0xff]
    %v2551 = vld [vmem:[%s14 + $0x28] sm:$0xff]
    %v2552 = vld [vmem:[%s14 + $0x30] sm:$0xff]
    %v2553 = vld [vmem:[%s14 + $0x38] sm:$0xff]
    %v2554 = vld [vmem:[%s16] sm:$0x1]
    %v2556 = vperm.slane %v2554, 0
    %vm2558 = vcmask 523264
    %v2560 = vsel %vm2558, %v2544, 0
    %v2563 = vsel %vm2558, %v2545, 0
    %2565 = vmatpush.msra.mxu0 0.0
    %2566 = vmatpush.msra.mxu0 0.0
    %2567 = vmatpush.msra.mxu0 0.0
    %2568 = vmatpush.msra.mxu0 0.0
    %2569 = vmatpush.msra.mxu0 0.0
    %2570 = vmatpush.msra.mxu0 0.0
    %2571 = vmatpush.msra.mxu0 0.0
    %2572 = vmatpush.msra.mxu0 0.0
    %2573 = vmatpush.msra.mxu0 %v2553
    %2574 = vmatpush.msra.mxu0 %v2552
    %2575 = vmatpush.msra.mxu0 %v2551
    %2576 = vmatpush.msra.mxu0 %v2550
    %2577 = vmatpush.msra.mxu0 %v2549
    %2578 = vmatpush.msra.mxu0 %v2548
    %2579 = vmatpush.msra.mxu0 %v2547
    %2580 = vmatpush.msra.mxu0 %v2546
    %2581 = vmatmul.f32.gmra.mxu0 %v2560
    %v2582 = vpop.f32.mrf.mxu0
    %v2583 = vadd.f32 %v2556, %v2582
    %2584 = vmatmul.f32.gmra.mxu0 %v2563
    %v2585 = vpop.f32.mrf.mxu0
    %v2586 = vadd.f32 %v2556, %v2585
    %2587 = vdwg.mxu0
    %v2588 = vld [vmem:[%s17] sm:$0xff]
    %v2589 = vld [vmem:[%s17 + $0x8] sm:$0xff]
    %v2590 = vld [vmem:[%s17 + $0x10] sm:$0xff]
    %v2591 = vld [vmem:[%s17 + $0x18] sm:$0xff]
    %v2592 = vld [vmem:[%s17 + $0x20] sm:$0xff]
    %v2593 = vld [vmem:[%s17 + $0x28] sm:$0xff]
    %v2594 = vld [vmem:[%s17 + $0x30] sm:$0xff]
    %v2595 = vld [vmem:[%s17 + $0x38] sm:$0xff]
    %v2596 = vld [vmem:[%s19] sm:$0x1]
    %v2598 = vperm.slane %v2596, 0
    %2600 = vmatpush.msra.mxu0 0.0
    %2601 = vmatpush.msra.mxu0 0.0
    %2602 = vmatpush.msra.mxu0 0.0
    %2603 = vmatpush.msra.mxu0 0.0
    %2604 = vmatpush.msra.mxu0 0.0
    %2605 = vmatpush.msra.mxu0 0.0
    %2606 = vmatpush.msra.mxu0 0.0
    %2607 = vmatpush.msra.mxu0 0.0
    %2608 = vmatpush.msra.mxu0 %v2595
    %2609 = vmatpush.msra.mxu0 %v2594
    %2610 = vmatpush.msra.mxu0 %v2593
    %2611 = vmatpush.msra.mxu0 %v2592
    %2612 = vmatpush.msra.mxu0 %v2591
    %2613 = vmatpush.msra.mxu0 %v2590
    %2614 = vmatpush.msra.mxu0 %v2589
    %2615 = vmatpush.msra.mxu0 %v2588
    %2616 = vmatmul.f32.gmra.mxu0 %v2560
    %v2617 = vpop.f32.mrf.mxu0
    %v2618 = vadd.f32 %v2598, %v2617
    %2619 = vmatmul.f32.gmra.mxu0 %v2563
    %v2620 = vpop.f32.mrf.mxu0
    %v2621 = vadd.f32 %v2598, %v2620
    %2622 = vdwg.mxu0
    %v2623 = vld [vmem:[#allocation16] sm:$0xff]
    %v2624 = vld [vmem:[#allocation16 + $0x8] sm:$0xff]
    %v2625 = vld [vmem:[#allocation16 + $0x10] sm:$0xff]
    %v2626 = vld [vmem:[#allocation16 + $0x18] sm:$0xff]
    %v2627 = vld [vmem:[#allocation18] sm:$0xff]
    %v2628 = vld [vmem:[#allocation18 + $0x8] sm:$0xff]
    %v2629 = vld [vmem:[#allocation18 + $0x10] sm:$0xff]
    %v2630 = vld [vmem:[#allocation18 + $0x18] sm:$0xff]
    %2631 = vmatpush.msra.mxu0 0.0
    %2632 = vmatpush.msra.mxu0 0.0
    %2633 = vmatpush.msra.mxu0 0.0
    %2634 = vmatpush.msra.mxu0 0.0
    %2635 = vmatpush.msra.mxu0 0.0
    %2636 = vmatpush.msra.mxu0 0.0
    %2637 = vmatpush.msra.mxu0 0.0
    %2638 = vmatpush.msra.mxu0 0.0
    %2639 = vmatpush.msra.mxu0 0.0
    %2640 = vmatpush.msra.mxu0 0.0
    %2641 = vmatpush.msra.mxu0 0.0
    %2642 = vmatpush.msra.mxu0 0.0
    %2643 = vmatpush.msra.mxu0 %v2626
    %2644 = vmatpush.msra.mxu0 %v2625
    %2645 = vmatpush.msra.mxu0 %v2624
    %2646 = vmatpush.msra.mxu0 %v2623
    %2647 = vmatmul.f32.gmra.mxu0 %v1385
    %v2648 = vpop.f32.mrf.mxu0
    %v2649 = vadd.f32 0.0, %v2648
    %2650 = vdwg.mxu0
    %v2651 = vadd.f32 %v2583, %v2649
    %v2652 = vxor.u32 %v2651, 2147483648
    %v2653 = vmul.f32 %v2652, 1.442695
    %v2654 = vpow.pop %v2653
    %v2655 = vadd.f32 %v2654, 1.0
    %v2656 = vrcp.pop %v2655
    %v2657 = vmul.f32 %v2655, %v2656
    %v2658 = vsub.f32 1.0, %v2657
    %v2659 = vmul.f32 %v2656, %v2658
    %v2660 = vadd.f32 %v2656, %v2659
    %vm2661 = vweird.f32 %v2655
    %vm2662 = vweird.f32 %v2656
    %vm2663 = vmor %vm2661, %vm2662
    %v2664 = vsel %vm2663, %v2656, %v2660
    %v2665 = vand.u32 2147483647, %v2655
    %vm2666 = vcmp.eq.f32.partialorder %v2665, 8.507059e+37
    %v2667 = vand.u32 %v2655, 2147483648
    %v2668 = vor.u32 1.1754944e-38, %v2667
    %v2669 = vsel %vm2666, %v2668, %v2664
    %v2670 = vmul.f32 1.0, %v2669
    %v2671 = vtanh.pop %v2651
    %v2672 = vmul.f32 %v2670, 0.0
    %2674 = vrot.lane.b32.xlu0 %v2671, 64
    %v2675 = vpop.permute.xlu0 %2674
    %v2677 = vmul.f32 %v2670, %v2675
    %2679 = vrot.lane.b32.xlu0 %v2677, 32
    %v2680 = vpop.permute.xlu0 %2679
    %v2682 = vadd.f32 %v2672, %v2680
    %v2683 = vtanh.pop %v2682
    %2685 = vrot.lane.b32.xlu0 %v2683, 64
    %v2686 = vpop.permute.xlu0 %2685
    %v2688 = vmul.f32 %v2670, %v2686
    %2689 = vmatpush.msra.mxu0 0.0
    %2690 = vmatpush.msra.mxu0 0.0
    %2691 = vmatpush.msra.mxu0 0.0
    %2692 = vmatpush.msra.mxu0 0.0
    %2693 = vmatpush.msra.mxu0 0.0
    %2694 = vmatpush.msra.mxu0 0.0
    %2695 = vmatpush.msra.mxu0 0.0
    %2696 = vmatpush.msra.mxu0 0.0
    %2697 = vmatpush.msra.mxu0 0.0
    %2698 = vmatpush.msra.mxu0 0.0
    %2699 = vmatpush.msra.mxu0 0.0
    %2700 = vmatpush.msra.mxu0 0.0
    %2701 = vmatpush.msra.mxu0 %v2630
    %2702 = vmatpush.msra.mxu0 %v2629
    %2703 = vmatpush.msra.mxu0 %v2628
    %2704 = vmatpush.msra.mxu0 %v2627
    %2705 = vmatmul.f32.gmra.mxu0 %v1385
    %v2706 = vpop.f32.mrf.mxu0
    %v2707 = vadd.f32 0.0, %v2706
    %2708 = vdwg.mxu0
    %v2710 = vrot.slane %v2707, 2
    %v2712 = vadd.f32 %v2621, %v2710
    %v2713 = vxor.u32 %v2712, 2147483648
    %v2714 = vmul.f32 %v2713, 1.442695
    %v2715 = vpow.pop %v2714
    %v2716 = vadd.f32 %v2715, 1.0
    %v2717 = vrcp.pop %v2716
    %v2718 = vmul.f32 %v2716, %v2717
    %v2719 = vsub.f32 1.0, %v2718
    %v2720 = vmul.f32 %v2717, %v2719
    %v2721 = vadd.f32 %v2717, %v2720
    %vm2722 = vweird.f32 %v2716
    %vm2723 = vweird.f32 %v2717
    %vm2724 = vmor %vm2722, %vm2723
    %v2725 = vsel %vm2724, %v2717, %v2721
    %v2726 = vand.u32 2147483647, %v2716
    %vm2727 = vcmp.eq.f32.partialorder %v2726, 8.507059e+37
    %v2728 = vand.u32 %v2716, 2147483648
    %v2729 = vor.u32 1.1754944e-38, %v2728
    %v2730 = vsel %vm2727, %v2729, %v2725
    %v2731 = vmul.f32 1.0, %v2730
    %v2732 = vtanh.pop %v2712
    %v2733 = vmul.f32 %v2731, 0.0
    %2735 = vrot.lane.b32.xlu0 %v2732, 64
    %v2736 = vpop.permute.xlu0 %2735
    %v2738 = vmul.f32 %v2731, %v2736
    %2740 = vrot.lane.b32.xlu0 %v2738, 32
    %v2741 = vpop.permute.xlu0 %2740
    %v2743 = vadd.f32 %v2733, %v2741
    %v2744 = vtanh.pop %v2743
    %2746 = vrot.lane.b32.xlu0 %v2744, 64
    %v2747 = vpop.permute.xlu0 %2746
    %v2749 = vmul.f32 %v2731, %v2747
    %2751 = vrot.lane.b32.xlu0 %v2688, 32
    %v2752 = vpop.permute.xlu0 %2751
    %2754 = vst.msk [vmem:[#allocation3] sm:$0x3] %vm1510, %v2752
    %2756 = vrot.lane.b32.xlu0 %v2749, 64
    %v2757 = vpop.permute.xlu0 %2756
    %2759 = vst.msk [vmem:[#allocation3 + $0x8] sm:$0xc0] %vm1516, %v2757
    %v2760 = vsel %vm1316, %v2752, 0
    %2762 = vmatpush.msra.mxu0 0.0
    %2763 = vmatpush.msra.mxu0 0.0
    %2764 = vmatpush.msra.mxu0 0.0
    %2765 = vmatpush.msra.mxu0 0.0
    %2766 = vmatpush.msra.mxu0 0.0
    %2767 = vmatpush.msra.mxu0 0.0
    %2768 = vmatpush.msra.mxu0 0.0
    %2769 = vmatpush.msra.mxu0 0.0
    %2770 = vmatpush.msra.mxu0 0.0
    %2771 = vmatpush.msra.mxu0 0.0
    %2772 = vmatpush.msra.mxu0 0.0
    %2773 = vmatpush.msra.mxu0 0.0
    %2774 = vmatpush.msra.mxu0 %v2626
    %2775 = vmatpush.msra.mxu0 %v2625
    %2776 = vmatpush.msra.mxu0 %v2624
    %2777 = vmatpush.msra.mxu0 %v2623
    %2778 = vmatmul.f32.gmra.mxu0 %v2760
    %v2779 = vpop.f32.mrf.mxu0
    %v2780 = vadd.f32 0.0, %v2779
    %2781 = vdwg.mxu0
    %v2783 = vrot.slane %v2780, 6
    %v2785 = vadd.f32 %v2583, %v2783
    %v2786 = vxor.u32 %v2785, 2147483648
    %v2787 = vmul.f32 %v2786, 1.442695
    %v2788 = vpow.pop %v2787
    %v2789 = vadd.f32 %v2788, 1.0
    %v2790 = vrcp.pop %v2789
    %v2791 = vmul.f32 %v2789, %v2790
    %v2792 = vsub.f32 1.0, %v2791
    %v2793 = vmul.f32 %v2790, %v2792
    %v2794 = vadd.f32 %v2790, %v2793
    %vm2795 = vweird.f32 %v2789
    %vm2796 = vweird.f32 %v2790
    %vm2797 = vmor %vm2795, %vm2796
    %v2798 = vsel %vm2797, %v2790, %v2794
    %v2799 = vand.u32 2147483647, %v2789
    %vm2800 = vcmp.eq.f32.partialorder %v2799, 8.507059e+37
    %v2801 = vand.u32 %v2789, 2147483648
    %v2802 = vor.u32 1.1754944e-38, %v2801
    %v2803 = vsel %vm2800, %v2802, %v2798
    %v2804 = vmul.f32 1.0, %v2803
    %v2805 = vtanh.pop %v2785
    %v2807 = vrot.slane %v2682, 6
    %v2809 = vmul.f32 %v2804, %v2807
    %2811 = vrot.lane.b32.xlu0 %v2805, 64
    %v2812 = vpop.permute.xlu0 %2811
    %v2814 = vmul.f32 %v2804, %v2812
    %2816 = vrot.lane.b32.xlu0 %v2814, 32
    %v2817 = vpop.permute.xlu0 %2816
    %v2819 = vadd.f32 %v2809, %v2817
    %v2820 = vtanh.pop %v2819
    %2822 = vrot.lane.b32.xlu0 %v2820, 64
    %v2823 = vpop.permute.xlu0 %2822
    %v2825 = vmul.f32 %v2804, %v2823
    %v2826 = vrot.slane %v2749, 6
    %2827 = vrot.lane.b32.xlu0 %v2826, 32
    %v2828 = vpop.permute.xlu0 %2827
    %v2829 = vsel %vm1316, %v2828, 0
    %2831 = vmatpush.msra.mxu0 0.0
    %2832 = vmatpush.msra.mxu0 0.0
    %2833 = vmatpush.msra.mxu0 0.0
    %2834 = vmatpush.msra.mxu0 0.0
    %2835 = vmatpush.msra.mxu0 0.0
    %2836 = vmatpush.msra.mxu0 0.0
    %2837 = vmatpush.msra.mxu0 0.0
    %2838 = vmatpush.msra.mxu0 0.0
    %2839 = vmatpush.msra.mxu0 0.0
    %2840 = vmatpush.msra.mxu0 0.0
    %2841 = vmatpush.msra.mxu0 0.0
    %2842 = vmatpush.msra.mxu0 0.0
    %2843 = vmatpush.msra.mxu0 %v2630
    %2844 = vmatpush.msra.mxu0 %v2629
    %2845 = vmatpush.msra.mxu0 %v2628
    %2846 = vmatpush.msra.mxu0 %v2627
    %2847 = vmatmul.f32.gmra.mxu0 %v2829
    %v2848 = vpop.f32.mrf.mxu0
    %v2849 = vadd.f32 0.0, %v2848
    %2850 = vdwg.mxu0
    %v2852 = vrot.slane %v2849, 4
    %v2854 = vadd.f32 %v2621, %v2852
    %v2855 = vxor.u32 %v2854, 2147483648
    %v2856 = vmul.f32 %v2855, 1.442695
    %v2857 = vpow.pop %v2856
    %v2858 = vadd.f32 %v2857, 1.0
    %v2859 = vrcp.pop %v2858
    %v2860 = vmul.f32 %v2858, %v2859
    %v2861 = vsub.f32 1.0, %v2860
    %v2862 = vmul.f32 %v2859, %v2861
    %v2863 = vadd.f32 %v2859, %v2862
    %vm2864 = vweird.f32 %v2858
    %vm2865 = vweird.f32 %v2859
    %vm2866 = vmor %vm2864, %vm2865
    %v2867 = vsel %vm2866, %v2859, %v2863
    %v2868 = vand.u32 2147483647, %v2858
    %vm2869 = vcmp.eq.f32.partialorder %v2868, 8.507059e+37
    %v2870 = vand.u32 %v2858, 2147483648
    %v2871 = vor.u32 1.1754944e-38, %v2870
    %v2872 = vsel %vm2869, %v2871, %v2867
    %v2873 = vmul.f32 1.0, %v2872
    %v2874 = vtanh.pop %v2854
    %v2876 = vrot.slane %v2743, 2
    %v2878 = vmul.f32 %v2873, %v2876
    %2880 = vrot.lane.b32.xlu0 %v2874, 64
    %v2881 = vpop.permute.xlu0 %2880
    %v2883 = vmul.f32 %v2873, %v2881
    %2885 = vrot.lane.b32.xlu0 %v2883, 32
    %v2886 = vpop.permute.xlu0 %2885
    %v2888 = vadd.f32 %v2878, %v2886
    %v2889 = vtanh.pop %v2888
    %2891 = vrot.lane.b32.xlu0 %v2889, 64
    %v2892 = vpop.permute.xlu0 %2891
    %v2894 = vmul.f32 %v2873, %v2892
    %2896 = vrot.lane.b32.xlu0 %v2825, 32
    %v2897 = vpop.permute.xlu0 %2896
    %2899 = vst.msk [vmem:[#allocation3] sm:$0xc] %vm1657, %v2897
    %2901 = vrot.lane.b32.xlu0 %v2894, 64
    %v2902 = vpop.permute.xlu0 %2901
    %2904 = vst.msk [vmem:[#allocation3 + $0x8] sm:$0x30] %vm1663, %v2902
    %v2905 = vrot.slane %v2825, 2
    %2906 = vrot.lane.b32.xlu0 %v2905, 32
    %v2907 = vpop.permute.xlu0 %2906
    %v2908 = vsel %vm1316, %v2907, 0
    %2910 = vmatpush.msra.mxu0 0.0
    %2911 = vmatpush.msra.mxu0 0.0
    %2912 = vmatpush.msra.mxu0 0.0
    %2913 = vmatpush.msra.mxu0 0.0
    %2914 = vmatpush.msra.mxu0 0.0
    %2915 = vmatpush.msra.mxu0 0.0
    %2916 = vmatpush.msra.mxu0 0.0
    %2917 = vmatpush.msra.mxu0 0.0
    %2918 = vmatpush.msra.mxu0 0.0
    %2919 = vmatpush.msra.mxu0 0.0
    %2920 = vmatpush.msra.mxu0 0.0
    %2921 = vmatpush.msra.mxu0 0.0
    %2922 = vmatpush.msra.mxu0 %v2626
    %2923 = vmatpush.msra.mxu0 %v2625
    %2924 = vmatpush.msra.mxu0 %v2624
    %2925 = vmatpush.msra.mxu0 %v2623
    %2926 = vmatmul.f32.gmra.mxu0 %v2908
    %v2927 = vpop.f32.mrf.mxu0
    %v2928 = vadd.f32 0.0, %v2927
    %2929 = vdwg.mxu0
    %v2931 = vrot.slane %v2928, 4
    %v2933 = vadd.f32 %v2583, %v2931
    %v2934 = vxor.u32 %v2933, 2147483648
    %v2935 = vmul.f32 %v2934, 1.442695
    %v2936 = vpow.pop %v2935
    %v2937 = vadd.f32 %v2936, 1.0
    %v2938 = vrcp.pop %v2937
    %v2939 = vmul.f32 %v2937, %v2938
    %v2940 = vsub.f32 1.0, %v2939
    %v2941 = vmul.f32 %v2938, %v2940
    %v2942 = vadd.f32 %v2938, %v2941
    %vm2943 = vweird.f32 %v2937
    %vm2944 = vweird.f32 %v2938
    %vm2945 = vmor %vm2943, %vm2944
    %v2946 = vsel %vm2945, %v2938, %v2942
    %v2947 = vand.u32 2147483647, %v2937
    %vm2948 = vcmp.eq.f32.partialorder %v2947, 8.507059e+37
    %v2949 = vand.u32 %v2937, 2147483648
    %v2950 = vor.u32 1.1754944e-38, %v2949
    %v2951 = vsel %vm2948, %v2950, %v2946
    %v2952 = vmul.f32 1.0, %v2951
    %v2953 = vtanh.pop %v2933
    %v2955 = vrot.slane %v2819, 6
    %v2957 = vmul.f32 %v2952, %v2955
    %2959 = vrot.lane.b32.xlu0 %v2953, 64
    %v2960 = vpop.permute.xlu0 %2959
    %v2962 = vmul.f32 %v2952, %v2960
    %2964 = vrot.lane.b32.xlu0 %v2962, 32
    %v2965 = vpop.permute.xlu0 %2964
    %v2967 = vadd.f32 %v2957, %v2965
    %v2968 = vtanh.pop %v2967
    %2970 = vrot.lane.b32.xlu0 %v2968, 64
    %v2971 = vpop.permute.xlu0 %2970
    %v2973 = vmul.f32 %v2952, %v2971
    %v2974 = vrot.slane %v2894, 4
    %2975 = vrot.lane.b32.xlu0 %v2974, 32
    %v2976 = vpop.permute.xlu0 %2975
    %v2977 = vsel %vm1316, %v2976, 0
    %2979 = vmatpush.msra.mxu0 0.0
    %2980 = vmatpush.msra.mxu0 0.0
    %2981 = vmatpush.msra.mxu0 0.0
    %2982 = vmatpush.msra.mxu0 0.0
    %2983 = vmatpush.msra.mxu0 0.0
    %2984 = vmatpush.msra.mxu0 0.0
    %2985 = vmatpush.msra.mxu0 0.0
    %2986 = vmatpush.msra.mxu0 0.0
    %2987 = vmatpush.msra.mxu0 0.0
    %2988 = vmatpush.msra.mxu0 0.0
    %2989 = vmatpush.msra.mxu0 0.0
    %2990 = vmatpush.msra.mxu0 0.0
    %2991 = vmatpush.msra.mxu0 %v2630
    %2992 = vmatpush.msra.mxu0 %v2629
    %2993 = vmatpush.msra.mxu0 %v2628
    %2994 = vmatpush.msra.mxu0 %v2627
    %2995 = vmatmul.f32.gmra.mxu0 %v2977
    %v2996 = vpop.f32.mrf.mxu0
    %v2997 = vadd.f32 0.0, %v2996
    %2998 = vdwg.mxu0
    %v3000 = vrot.slane %v2997, 6
    %v3002 = vadd.f32 %v2621, %v3000
    %v3003 = vxor.u32 %v3002, 2147483648
    %v3004 = vmul.f32 %v3003, 1.442695
    %v3005 = vpow.pop %v3004
    %v3006 = vadd.f32 %v3005, 1.0
    %v3007 = vrcp.pop %v3006
    %v3008 = vmul.f32 %v3006, %v3007
    %v3009 = vsub.f32 1.0, %v3008
    %v3010 = vmul.f32 %v3007, %v3009
    %v3011 = vadd.f32 %v3007, %v3010
    %vm3012 = vweird.f32 %v3006
    %vm3013 = vweird.f32 %v3007
    %vm3014 = vmor %vm3012, %vm3013
    %v3015 = vsel %vm3014, %v3007, %v3011
    %v3016 = vand.u32 2147483647, %v3006
    %vm3017 = vcmp.eq.f32.partialorder %v3016, 8.507059e+37
    %v3018 = vand.u32 %v3006, 2147483648
    %v3019 = vor.u32 1.1754944e-38, %v3018
    %v3020 = vsel %vm3017, %v3019, %v3015
    %v3021 = vmul.f32 1.0, %v3020
    %v3022 = vtanh.pop %v3002
    %v3024 = vrot.slane %v2888, 2
    %v3026 = vmul.f32 %v3021, %v3024
    %3028 = vrot.lane.b32.xlu0 %v3022, 64
    %v3029 = vpop.permute.xlu0 %3028
    %v3031 = vmul.f32 %v3021, %v3029
    %3033 = vrot.lane.b32.xlu0 %v3031, 32
    %v3034 = vpop.permute.xlu0 %3033
    %v3036 = vadd.f32 %v3026, %v3034
    %v3037 = vtanh.pop %v3036
    %3039 = vrot.lane.b32.xlu0 %v3037, 64
    %v3040 = vpop.permute.xlu0 %3039
    %v3042 = vmul.f32 %v3021, %v3040
    %3044 = vrot.lane.b32.xlu0 %v2973, 32
    %v3045 = vpop.permute.xlu0 %3044
    %3047 = vst.msk [vmem:[#allocation3] sm:$0x30] %vm1807, %v3045
    %3049 = vrot.lane.b32.xlu0 %v3042, 64
    %v3050 = vpop.permute.xlu0 %3049
    %3052 = vst.msk [vmem:[#allocation3 + $0x8] sm:$0xc] %vm1813, %v3050
    %v3053 = vrot.slane %v2973, 4
    %3054 = vrot.lane.b32.xlu0 %v3053, 32
    %v3055 = vpop.permute.xlu0 %3054
    %v3056 = vsel %vm1316, %v3055, 0
    %3058 = vmatpush.msra.mxu0 0.0
    %3059 = vmatpush.msra.mxu0 0.0
    %3060 = vmatpush.msra.mxu0 0.0
    %3061 = vmatpush.msra.mxu0 0.0
    %3062 = vmatpush.msra.mxu0 0.0
    %3063 = vmatpush.msra.mxu0 0.0
    %3064 = vmatpush.msra.mxu0 0.0
    %3065 = vmatpush.msra.mxu0 0.0
    %3066 = vmatpush.msra.mxu0 0.0
    %3067 = vmatpush.msra.mxu0 0.0
    %3068 = vmatpush.msra.mxu0 0.0
    %3069 = vmatpush.msra.mxu0 0.0
    %3070 = vmatpush.msra.mxu0 %v2626
    %3071 = vmatpush.msra.mxu0 %v2625
    %3072 = vmatpush.msra.mxu0 %v2624
    %3073 = vmatpush.msra.mxu0 %v2623
    %3074 = vmatmul.f32.gmra.mxu0 %v3056
    %v3075 = vpop.f32.mrf.mxu0
    %v3076 = vadd.f32 0.0, %v3075
    %3077 = vdwg.mxu0
    %v3079 = vrot.slane %v3076, 2
    %v3081 = vadd.f32 %v2583, %v3079
    %v3082 = vxor.u32 %v3081, 2147483648
    %v3083 = vmul.f32 %v3082, 1.442695
    %v3084 = vpow.pop %v3083
    %v3085 = vadd.f32 %v3084, 1.0
    %v3086 = vrcp.pop %v3085
    %v3087 = vmul.f32 %v3085, %v3086
    %v3088 = vsub.f32 1.0, %v3087
    %v3089 = vmul.f32 %v3086, %v3088
    %v3090 = vadd.f32 %v3086, %v3089
    %vm3091 = vweird.f32 %v3085
    %vm3092 = vweird.f32 %v3086
    %vm3093 = vmor %vm3091, %vm3092
    %v3094 = vsel %vm3093, %v3086, %v3090
    %v3095 = vand.u32 2147483647, %v3085
    %vm3096 = vcmp.eq.f32.partialorder %v3095, 8.507059e+37
    %v3097 = vand.u32 %v3085, 2147483648
    %v3098 = vor.u32 1.1754944e-38, %v3097
    %v3099 = vsel %vm3096, %v3098, %v3094
    %v3100 = vmul.f32 1.0, %v3099
    %v3101 = vtanh.pop %v3081
    %v3103 = vrot.slane %v2967, 6
    %v3105 = vmul.f32 %v3100, %v3103
    %3107 = vrot.lane.b32.xlu0 %v3101, 64
    %v3108 = vpop.permute.xlu0 %3107
    %v3110 = vmul.f32 %v3100, %v3108
    %3112 = vrot.lane.b32.xlu0 %v3110, 32
    %v3113 = vpop.permute.xlu0 %3112
    %v3115 = vadd.f32 %v3105, %v3113
    %v3116 = vtanh.pop %v3115
    %3118 = vrot.lane.b32.xlu0 %v3116, 64
    %v3119 = vpop.permute.xlu0 %3118
    %v3121 = vmul.f32 %v3100, %v3119
    %v3122 = vrot.slane %v3042, 2
    %3123 = vrot.lane.b32.xlu0 %v3122, 32
    %v3124 = vpop.permute.xlu0 %3123
    %v3125 = vsel %vm1316, %v3124, 0
    %3127 = vmatpush.msra.mxu0 0.0
    %3128 = vmatpush.msra.mxu0 0.0
    %3129 = vmatpush.msra.mxu0 0.0
    %3130 = vmatpush.msra.mxu0 0.0
    %3131 = vmatpush.msra.mxu0 0.0
    %3132 = vmatpush.msra.mxu0 0.0
    %3133 = vmatpush.msra.mxu0 0.0
    %3134 = vmatpush.msra.mxu0 0.0
    %3135 = vmatpush.msra.mxu0 0.0
    %3136 = vmatpush.msra.mxu0 0.0
    %3137 = vmatpush.msra.mxu0 0.0
    %3138 = vmatpush.msra.mxu0 0.0
    %3139 = vmatpush.msra.mxu0 %v2630
    %3140 = vmatpush.msra.mxu0 %v2629
    %3141 = vmatpush.msra.mxu0 %v2628
    %3142 = vmatpush.msra.mxu0 %v2627
    %3143 = vmatmul.f32.gmra.mxu0 %v3125
    %v3144 = vpop.f32.mrf.mxu0
    %v3145 = vadd.f32 0.0, %v3144
    %3146 = vdwg.mxu0
    %v3147 = vadd.f32 %v2621, %v3145
    %v3148 = vxor.u32 %v3147, 2147483648
    %v3149 = vmul.f32 %v3148, 1.442695
    %v3150 = vpow.pop %v3149
    %v3151 = vadd.f32 %v3150, 1.0
    %v3152 = vrcp.pop %v3151
    %v3153 = vmul.f32 %v3151, %v3152
    %v3154 = vsub.f32 1.0, %v3153
    %v3155 = vmul.f32 %v3152, %v3154
    %v3156 = vadd.f32 %v3152, %v3155
    %vm3157 = vweird.f32 %v3151
    %vm3158 = vweird.f32 %v3152
    %vm3159 = vmor %vm3157, %vm3158
    %v3160 = vsel %vm3159, %v3152, %v3156
    %v3161 = vand.u32 2147483647, %v3151
    %vm3162 = vcmp.eq.f32.partialorder %v3161, 8.507059e+37
    %v3163 = vand.u32 %v3151, 2147483648
    %v3164 = vor.u32 1.1754944e-38, %v3163
    %v3165 = vsel %vm3162, %v3164, %v3160
    %v3166 = vmul.f32 1.0, %v3165
    %v3167 = vtanh.pop %v3147
    %v3169 = vrot.slane %v3036, 2
    %v3171 = vmul.f32 %v3166, %v3169
    %3173 = vrot.lane.b32.xlu0 %v3167, 64
    %v3174 = vpop.permute.xlu0 %3173
    %v3176 = vmul.f32 %v3166, %v3174
    %3178 = vrot.lane.b32.xlu0 %v3176, 32
    %v3179 = vpop.permute.xlu0 %3178
    %v3181 = vadd.f32 %v3171, %v3179
    %v3182 = vtanh.pop %v3181
    %3184 = vrot.lane.b32.xlu0 %v3182, 64
    %v3185 = vpop.permute.xlu0 %3184
    %v3187 = vmul.f32 %v3166, %v3185
    %3189 = vrot.lane.b32.xlu0 %v3121, 32
    %v3190 = vpop.permute.xlu0 %3189
    %3192 = vst.msk [vmem:[#allocation3] sm:$0xc0] %vm1954, %v3190
    %3194 = vrot.lane.b32.xlu0 %v3187, 64
    %v3195 = vpop.permute.xlu0 %3194
    %3197 = vst.msk [vmem:[#allocation3 + $0x8] sm:$0x3] %vm1960, %v3195
    %v3198 = vrot.slane %v3121, 6
    %3199 = vrot.lane.b32.xlu0 %v3198, 32
    %v3200 = vpop.permute.xlu0 %3199
    %v3201 = vsel %vm1316, %v3200, 0
    %3203 = vmatpush.msra.mxu0 0.0
    %3204 = vmatpush.msra.mxu0 0.0
    %3205 = vmatpush.msra.mxu0 0.0
    %3206 = vmatpush.msra.mxu0 0.0
    %3207 = vmatpush.msra.mxu0 0.0
    %3208 = vmatpush.msra.mxu0 0.0
    %3209 = vmatpush.msra.mxu0 0.0
    %3210 = vmatpush.msra.mxu0 0.0
    %3211 = vmatpush.msra.mxu0 0.0
    %3212 = vmatpush.msra.mxu0 0.0
    %3213 = vmatpush.msra.mxu0 0.0
    %3214 = vmatpush.msra.mxu0 0.0
    %3215 = vmatpush.msra.mxu0 %v2626
    %3216 = vmatpush.msra.mxu0 %v2625
    %3217 = vmatpush.msra.mxu0 %v2624
    %3218 = vmatpush.msra.mxu0 %v2623
    %3219 = vmatmul.f32.gmra.mxu0 %v3201
    %v3220 = vpop.f32.mrf.mxu0
    %v3221 = vadd.f32 0.0, %v3220
    %3222 = vdwg.mxu0
    %v3223 = vadd.f32 %v2586, %v3221
    %v3224 = vxor.u32 %v3223, 2147483648
    %v3225 = vmul.f32 %v3224, 1.442695
    %v3226 = vpow.pop %v3225
    %v3227 = vadd.f32 %v3226, 1.0
    %v3228 = vrcp.pop %v3227
    %v3229 = vmul.f32 %v3227, %v3228
    %v3230 = vsub.f32 1.0, %v3229
    %v3231 = vmul.f32 %v3228, %v3230
    %v3232 = vadd.f32 %v3228, %v3231
    %vm3233 = vweird.f32 %v3227
    %vm3234 = vweird.f32 %v3228
    %vm3235 = vmor %vm3233, %vm3234
    %v3236 = vsel %vm3235, %v3228, %v3232
    %v3237 = vand.u32 2147483647, %v3227
    %vm3238 = vcmp.eq.f32.partialorder %v3237, 8.507059e+37
    %v3239 = vand.u32 %v3227, 2147483648
    %v3240 = vor.u32 1.1754944e-38, %v3239
    %v3241 = vsel %vm3238, %v3240, %v3236
    %v3242 = vmul.f32 1.0, %v3241
    %v3243 = vtanh.pop %v3223
    %v3245 = vrot.slane %v3115, 6
    %v3247 = vmul.f32 %v3242, %v3245
    %3249 = vrot.lane.b32.xlu0 %v3243, 64
    %v3250 = vpop.permute.xlu0 %3249
    %v3252 = vmul.f32 %v3242, %v3250
    %3254 = vrot.lane.b32.xlu0 %v3252, 32
    %v3255 = vpop.permute.xlu0 %3254
    %v3257 = vadd.f32 %v3247, %v3255
    %v3258 = vtanh.pop %v3257
    %3260 = vrot.lane.b32.xlu0 %v3258, 64
    %v3261 = vpop.permute.xlu0 %3260
    %v3263 = vmul.f32 %v3242, %v3261
    %3264 = vrot.lane.b32.xlu0 %v3187, 32
    %v3265 = vpop.permute.xlu0 %3264
    %v3266 = vsel %vm1316, %v3265, 0
    %3268 = vmatpush.msra.mxu0 0.0
    %3269 = vmatpush.msra.mxu0 0.0
    %3270 = vmatpush.msra.mxu0 0.0
    %3271 = vmatpush.msra.mxu0 0.0
    %3272 = vmatpush.msra.mxu0 0.0
    %3273 = vmatpush.msra.mxu0 0.0
    %3274 = vmatpush.msra.mxu0 0.0
    %3275 = vmatpush.msra.mxu0 0.0
    %3276 = vmatpush.msra.mxu0 0.0
    %3277 = vmatpush.msra.mxu0 0.0
    %3278 = vmatpush.msra.mxu0 0.0
    %3279 = vmatpush.msra.mxu0 0.0
    %3280 = vmatpush.msra.mxu0 %v2630
    %3281 = vmatpush.msra.mxu0 %v2629
    %3282 = vmatpush.msra.mxu0 %v2628
    %3283 = vmatpush.msra.mxu0 %v2627
    %3284 = vmatmul.f32.gmra.mxu0 %v3266
    %v3285 = vpop.f32.mrf.mxu0
    %v3286 = vadd.f32 0.0, %v3285
    %3287 = vdwg.mxu0
    %v3289 = vrot.slane %v3286, 2
    %v3291 = vadd.f32 %v2618, %v3289
    %v3292 = vxor.u32 %v3291, 2147483648
    %v3293 = vmul.f32 %v3292, 1.442695
    %v3294 = vpow.pop %v3293
    %v3295 = vadd.f32 %v3294, 1.0
    %v3296 = vrcp.pop %v3295
    %v3297 = vmul.f32 %v3295, %v3296
    %v3298 = vsub.f32 1.0, %v3297
    %v3299 = vmul.f32 %v3296, %v3298
    %v3300 = vadd.f32 %v3296, %v3299
    %vm3301 = vweird.f32 %v3295
    %vm3302 = vweird.f32 %v3296
    %vm3303 = vmor %vm3301, %vm3302
    %v3304 = vsel %vm3303, %v3296, %v3300
    %v3305 = vand.u32 2147483647, %v3295
    %vm3306 = vcmp.eq.f32.partialorder %v3305, 8.507059e+37
    %v3307 = vand.u32 %v3295, 2147483648
    %v3308 = vor.u32 1.1754944e-38, %v3307
    %v3309 = vsel %vm3306, %v3308, %v3304
    %v3310 = vmul.f32 1.0, %v3309
    %v3311 = vtanh.pop %v3291
    %v3313 = vrot.slane %v3181, 2
    %v3315 = vmul.f32 %v3310, %v3313
    %3317 = vrot.lane.b32.xlu0 %v3311, 64
    %v3318 = vpop.permute.xlu0 %3317
    %v3320 = vmul.f32 %v3310, %v3318
    %3322 = vrot.lane.b32.xlu0 %v3320, 32
    %v3323 = vpop.permute.xlu0 %3322
    %v3325 = vadd.f32 %v3315, %v3323
    %v3326 = vtanh.pop %v3325
    %3328 = vrot.lane.b32.xlu0 %v3326, 64
    %v3329 = vpop.permute.xlu0 %3328
    %v3331 = vmul.f32 %v3310, %v3329
    %3333 = vrot.lane.b32.xlu0 %v3263, 32
    %v3334 = vpop.permute.xlu0 %3333
    %3336 = vst.msk [vmem:[#allocation3 + $0x8] sm:$0x3] %vm1510, %v3334
    %3338 = vrot.lane.b32.xlu0 %v3331, 64
    %v3339 = vpop.permute.xlu0 %3338
    %3341 = vst.msk [vmem:[#allocation3] sm:$0xc0] %vm1516, %v3339
    %v3342 = vsel %vm1316, %v3334, 0
    %3344 = vmatpush.msra.mxu0 0.0
    %3345 = vmatpush.msra.mxu0 0.0
    %3346 = vmatpush.msra.mxu0 0.0
    %3347 = vmatpush.msra.mxu0 0.0
    %3348 = vmatpush.msra.mxu0 0.0
    %3349 = vmatpush.msra.mxu0 0.0
    %3350 = vmatpush.msra.mxu0 0.0
    %3351 = vmatpush.msra.mxu0 0.0
    %3352 = vmatpush.msra.mxu0 0.0
    %3353 = vmatpush.msra.mxu0 0.0
    %3354 = vmatpush.msra.mxu0 0.0
    %3355 = vmatpush.msra.mxu0 0.0
    %3356 = vmatpush.msra.mxu0 %v2626
    %3357 = vmatpush.msra.mxu0 %v2625
    %3358 = vmatpush.msra.mxu0 %v2624
    %3359 = vmatpush.msra.mxu0 %v2623
    %3360 = vmatmul.f32.gmra.mxu0 %v3342
    %v3361 = vpop.f32.mrf.mxu0
    %v3362 = vadd.f32 0.0, %v3361
    %3363 = vdwg.mxu0
    %v3365 = vrot.slane %v3362, 6
    %v3367 = vadd.f32 %v2586, %v3365
    %v3368 = vxor.u32 %v3367, 2147483648
    %v3369 = vmul.f32 %v3368, 1.442695
    %v3370 = vpow.pop %v3369
    %v3371 = vadd.f32 %v3370, 1.0
    %v3372 = vrcp.pop %v3371
    %v3373 = vmul.f32 %v3371, %v3372
    %v3374 = vsub.f32 1.0, %v3373
    %v3375 = vmul.f32 %v3372, %v3374
    %v3376 = vadd.f32 %v3372, %v3375
    %vm3377 = vweird.f32 %v3371
    %vm3378 = vweird.f32 %v3372
    %vm3379 = vmor %vm3377, %vm3378
    %v3380 = vsel %vm3379, %v3372, %v3376
    %v3381 = vand.u32 2147483647, %v3371
    %vm3382 = vcmp.eq.f32.partialorder %v3381, 8.507059e+37
    %v3383 = vand.u32 %v3371, 2147483648
    %v3384 = vor.u32 1.1754944e-38, %v3383
    %v3385 = vsel %vm3382, %v3384, %v3380
    %v3386 = vmul.f32 1.0, %v3385
    %v3387 = vtanh.pop %v3367
    %v3389 = vrot.slane %v3257, 6
    %v3391 = vmul.f32 %v3386, %v3389
    %3393 = vrot.lane.b32.xlu0 %v3387, 64
    %v3394 = vpop.permute.xlu0 %3393
    %v3396 = vmul.f32 %v3386, %v3394
    %3398 = vrot.lane.b32.xlu0 %v3396, 32
    %v3399 = vpop.permute.xlu0 %3398
    %v3401 = vadd.f32 %v3391, %v3399
    %v3402 = vtanh.pop %v3401
    %3404 = vrot.lane.b32.xlu0 %v3402, 64
    %v3405 = vpop.permute.xlu0 %3404
    %v3407 = vmul.f32 %v3386, %v3405
    %v3408 = vrot.slane %v3331, 6
    %3409 = vrot.lane.b32.xlu0 %v3408, 32
    %v3410 = vpop.permute.xlu0 %3409
    %v3411 = vsel %vm1316, %v3410, 0
    %3413 = vmatpush.msra.mxu0 0.0
    %3414 = vmatpush.msra.mxu0 0.0
    %3415 = vmatpush.msra.mxu0 0.0
    %3416 = vmatpush.msra.mxu0 0.0
    %3417 = vmatpush.msra.mxu0 0.0
    %3418 = vmatpush.msra.mxu0 0.0
    %3419 = vmatpush.msra.mxu0 0.0
    %3420 = vmatpush.msra.mxu0 0.0
    %3421 = vmatpush.msra.mxu0 0.0
    %3422 = vmatpush.msra.mxu0 0.0
    %3423 = vmatpush.msra.mxu0 0.0
    %3424 = vmatpush.msra.mxu0 0.0
    %3425 = vmatpush.msra.mxu0 %v2630
    %3426 = vmatpush.msra.mxu0 %v2629
    %3427 = vmatpush.msra.mxu0 %v2628
    %3428 = vmatpush.msra.mxu0 %v2627
    %3429 = vmatmul.f32.gmra.mxu0 %v3411
    %v3430 = vpop.f32.mrf.mxu0
    %v3431 = vadd.f32 0.0, %v3430
    %3432 = vdwg.mxu0
    %v3434 = vrot.slane %v3431, 4
    %v3436 = vadd.f32 %v2618, %v3434
    %v3437 = vxor.u32 %v3436, 2147483648
    %v3438 = vmul.f32 %v3437, 1.442695
    %v3439 = vpow.pop %v3438
    %v3440 = vadd.f32 %v3439, 1.0
    %v3441 = vrcp.pop %v3440
    %v3442 = vmul.f32 %v3440, %v3441
    %v3443 = vsub.f32 1.0, %v3442
    %v3444 = vmul.f32 %v3441, %v3443
    %v3445 = vadd.f32 %v3441, %v3444
    %vm3446 = vweird.f32 %v3440
    %vm3447 = vweird.f32 %v3441
    %vm3448 = vmor %vm3446, %vm3447
    %v3449 = vsel %vm3448, %v3441, %v3445
    %v3450 = vand.u32 2147483647, %v3440
    %vm3451 = vcmp.eq.f32.partialorder %v3450, 8.507059e+37
    %v3452 = vand.u32 %v3440, 2147483648
    %v3453 = vor.u32 1.1754944e-38, %v3452
    %v3454 = vsel %vm3451, %v3453, %v3449
    %v3455 = vmul.f32 1.0, %v3454
    %v3456 = vtanh.pop %v3436
    %v3458 = vrot.slane %v3325, 2
    %v3460 = vmul.f32 %v3455, %v3458
    %3462 = vrot.lane.b32.xlu0 %v3456, 64
    %v3463 = vpop.permute.xlu0 %3462
    %v3465 = vmul.f32 %v3455, %v3463
    %3467 = vrot.lane.b32.xlu0 %v3465, 32
    %v3468 = vpop.permute.xlu0 %3467
    %v3470 = vadd.f32 %v3460, %v3468
    %v3471 = vtanh.pop %v3470
    %3473 = vrot.lane.b32.xlu0 %v3471, 64
    %v3474 = vpop.permute.xlu0 %3473
    %v3476 = vmul.f32 %v3455, %v3474
    %3478 = vrot.lane.b32.xlu0 %v3407, 32
    %v3479 = vpop.permute.xlu0 %3478
    %3481 = vst.msk [vmem:[#allocation3 + $0x8] sm:$0xc] %vm1657, %v3479
    %3483 = vrot.lane.b32.xlu0 %v3476, 64
    %v3484 = vpop.permute.xlu0 %3483
    %3486 = vst.msk [vmem:[#allocation3] sm:$0x30] %vm1663, %v3484
    %v3487 = vrot.slane %v3407, 2
    %3488 = vrot.lane.b32.xlu0 %v3487, 32
    %v3489 = vpop.permute.xlu0 %3488
    %v3490 = vsel %vm1316, %v3489, 0
    %3492 = vmatpush.msra.mxu0 0.0
    %3493 = vmatpush.msra.mxu0 0.0
    %3494 = vmatpush.msra.mxu0 0.0
    %3495 = vmatpush.msra.mxu0 0.0
    %3496 = vmatpush.msra.mxu0 0.0
    %3497 = vmatpush.msra.mxu0 0.0
    %3498 = vmatpush.msra.mxu0 0.0
    %3499 = vmatpush.msra.mxu0 0.0
    %3500 = vmatpush.msra.mxu0 0.0
    %3501 = vmatpush.msra.mxu0 0.0
    %3502 = vmatpush.msra.mxu0 0.0
    %3503 = vmatpush.msra.mxu0 0.0
    %3504 = vmatpush.msra.mxu0 %v2626
    %3505 = vmatpush.msra.mxu0 %v2625
    %3506 = vmatpush.msra.mxu0 %v2624
    %3507 = vmatpush.msra.mxu0 %v2623
    %3508 = vmatmul.f32.gmra.mxu0 %v3490
    %v3509 = vpop.f32.mrf.mxu0
    %v3510 = vadd.f32 0.0, %v3509
    %3511 = vdwg.mxu0
    %v3513 = vrot.slane %v3510, 4
    %v3515 = vadd.f32 %v2586, %v3513
    %v3516 = vxor.u32 %v3515, 2147483648
    %v3517 = vmul.f32 %v3516, 1.442695
    %v3518 = vpow.pop %v3517
    %v3519 = vadd.f32 %v3518, 1.0
    %v3520 = vrcp.pop %v3519
    %v3521 = vmul.f32 %v3519, %v3520
    %v3522 = vsub.f32 1.0, %v3521
    %v3523 = vmul.f32 %v3520, %v3522
    %v3524 = vadd.f32 %v3520, %v3523
    %vm3525 = vweird.f32 %v3519
    %vm3526 = vweird.f32 %v3520
    %vm3527 = vmor %vm3525, %vm3526
    %v3528 = vsel %vm3527, %v3520, %v3524
    %v3529 = vand.u32 2147483647, %v3519
    %vm3530 = vcmp.eq.f32.partialorder %v3529, 8.507059e+37
    %v3531 = vand.u32 %v3519, 2147483648
    %v3532 = vor.u32 1.1754944e-38, %v3531
    %v3533 = vsel %vm3530, %v3532, %v3528
    %v3534 = vmul.f32 1.0, %v3533
    %v3535 = vtanh.pop %v3515
    %v3537 = vrot.slane %v3401, 6
    %v3539 = vmul.f32 %v3534, %v3537
    %3541 = vrot.lane.b32.xlu0 %v3535, 64
    %v3542 = vpop.permute.xlu0 %3541
    %v3544 = vmul.f32 %v3534, %v3542
    %3546 = vrot.lane.b32.xlu0 %v3544, 32
    %v3547 = vpop.permute.xlu0 %3546
    %v3549 = vadd.f32 %v3539, %v3547
    %v3550 = vtanh.pop %v3549
    %3552 = vrot.lane.b32.xlu0 %v3550, 64
    %v3553 = vpop.permute.xlu0 %3552
    %v3555 = vmul.f32 %v3534, %v3553
    %v3556 = vrot.slane %v3476, 4
    %3557 = vrot.lane.b32.xlu0 %v3556, 32
    %v3558 = vpop.permute.xlu0 %3557
    %v3559 = vsel %vm1316, %v3558, 0
    %3561 = vmatpush.msra.mxu0 0.0
    %3562 = vmatpush.msra.mxu0 0.0
    %3563 = vmatpush.msra.mxu0 0.0
    %3564 = vmatpush.msra.mxu0 0.0
    %3565 = vmatpush.msra.mxu0 0.0
    %3566 = vmatpush.msra.mxu0 0.0
    %3567 = vmatpush.msra.mxu0 0.0
    %3568 = vmatpush.msra.mxu0 0.0
    %3569 = vmatpush.msra.mxu0 0.0
    %3570 = vmatpush.msra.mxu0 0.0
    %3571 = vmatpush.msra.mxu0 0.0
    %3572 = vmatpush.msra.mxu0 0.0
    %3573 = vmatpush.msra.mxu0 %v2630
    %3574 = vmatpush.msra.mxu0 %v2629
    %3575 = vmatpush.msra.mxu0 %v2628
    %3576 = vmatpush.msra.mxu0 %v2627
    %3577 = vmatmul.f32.gmra.mxu0 %v3559
    %v3578 = vpop.f32.mrf.mxu0
    %v3579 = vadd.f32 0.0, %v3578
    %3580 = vdwg.mxu0
    %v3582 = vrot.slane %v3579, 6
    %v3584 = vadd.f32 %v2618, %v3582
    %v3585 = vxor.u32 %v3584, 2147483648
    %v3586 = vmul.f32 %v3585, 1.442695
    %v3587 = vpow.pop %v3586
    %v3588 = vadd.f32 %v3587, 1.0
    %v3589 = vrcp.pop %v3588
    %v3590 = vmul.f32 %v3588, %v3589
    %v3591 = vsub.f32 1.0, %v3590
    %v3592 = vmul.f32 %v3589, %v3591
    %v3593 = vadd.f32 %v3589, %v3592
    %vm3594 = vweird.f32 %v3588
    %vm3595 = vweird.f32 %v3589
    %vm3596 = vmor %vm3594, %vm3595
    %v3597 = vsel %vm3596, %v3589, %v3593
    %v3598 = vand.u32 2147483647, %v3588
    %vm3599 = vcmp.eq.f32.partialorder %v3598, 8.507059e+37
    %v3600 = vand.u32 %v3588, 2147483648
    %v3601 = vor.u32 1.1754944e-38, %v3600
    %v3602 = vsel %vm3599, %v3601, %v3597
    %v3603 = vmul.f32 1.0, %v3602
    %v3604 = vtanh.pop %v3584
    %v3606 = vrot.slane %v3470, 2
    %v3608 = vmul.f32 %v3603, %v3606
    %3610 = vrot.lane.b32.xlu0 %v3604, 64
    %v3611 = vpop.permute.xlu0 %3610
    %v3613 = vmul.f32 %v3603, %v3611
    %3615 = vrot.lane.b32.xlu0 %v3613, 32
    %v3616 = vpop.permute.xlu0 %3615
    %v3618 = vadd.f32 %v3608, %v3616
    %v3619 = vtanh.pop %v3618
    %3621 = vrot.lane.b32.xlu0 %v3619, 64
    %v3622 = vpop.permute.xlu0 %3621
    %v3624 = vmul.f32 %v3603, %v3622
    %3626 = vrot.lane.b32.xlu0 %v3555, 32
    %v3627 = vpop.permute.xlu0 %3626
    %3629 = vst.msk [vmem:[#allocation3 + $0x8] sm:$0x30] %vm1807, %v3627
    %3631 = vrot.lane.b32.xlu0 %v3624, 64
    %v3632 = vpop.permute.xlu0 %3631
    %3634 = vst.msk [vmem:[#allocation3] sm:$0xc] %vm1813, %v3632
    %v3635 = vrot.slane %v3555, 4
    %3636 = vrot.lane.b32.xlu0 %v3635, 32
    %v3637 = vpop.permute.xlu0 %3636
    %v3638 = vsel %vm1316, %v3637, 0
    %3640 = vmatpush.msra.mxu0 0.0
    %3641 = vmatpush.msra.mxu0 0.0
    %3642 = vmatpush.msra.mxu0 0.0
    %3643 = vmatpush.msra.mxu0 0.0
    %3644 = vmatpush.msra.mxu0 0.0
    %3645 = vmatpush.msra.mxu0 0.0
    %3646 = vmatpush.msra.mxu0 0.0
    %3647 = vmatpush.msra.mxu0 0.0
    %3648 = vmatpush.msra.mxu0 0.0
    %3649 = vmatpush.msra.mxu0 0.0
    %3650 = vmatpush.msra.mxu0 0.0
    %3651 = vmatpush.msra.mxu0 0.0
    %3652 = vmatpush.msra.mxu0 %v2626
    %3653 = vmatpush.msra.mxu0 %v2625
    %3654 = vmatpush.msra.mxu0 %v2624
    %3655 = vmatpush.msra.mxu0 %v2623
    %3656 = vmatmul.f32.gmra.mxu0 %v3638
    %v3657 = vpop.f32.mrf.mxu0
    %v3658 = vadd.f32 0.0, %v3657
    %3659 = vdwg.mxu0
    %v3661 = vrot.slane %v3658, 2
    %v3663 = vadd.f32 %v2586, %v3661
    %v3664 = vxor.u32 %v3663, 2147483648
    %v3665 = vmul.f32 %v3664, 1.442695
    %v3666 = vpow.pop %v3665
    %v3667 = vadd.f32 %v3666, 1.0
    %v3668 = vrcp.pop %v3667
    %v3669 = vmul.f32 %v3667, %v3668
    %v3670 = vsub.f32 1.0, %v3669
    %v3671 = vmul.f32 %v3668, %v3670
    %v3672 = vadd.f32 %v3668, %v3671
    %vm3673 = vweird.f32 %v3667
    %vm3674 = vweird.f32 %v3668
    %vm3675 = vmor %vm3673, %vm3674
    %v3676 = vsel %vm3675, %v3668, %v3672
    %v3677 = vand.u32 2147483647, %v3667
    %vm3678 = vcmp.eq.f32.partialorder %v3677, 8.507059e+37
    %v3679 = vand.u32 %v3667, 2147483648
    %v3680 = vor.u32 1.1754944e-38, %v3679
    %v3681 = vsel %vm3678, %v3680, %v3676
    %v3682 = vmul.f32 1.0, %v3681
    %v3683 = vtanh.pop %v3663
    %v3685 = vrot.slane %v3549, 6
    %v3687 = vmul.f32 %v3682, %v3685
    %3689 = vrot.lane.b32.xlu0 %v3683, 64
    %v3690 = vpop.permute.xlu0 %3689
    %v3692 = vmul.f32 %v3682, %v3690
    %3694 = vrot.lane.b32.xlu0 %v3692, 32
    %v3695 = vpop.permute.xlu0 %3694
    %v3697 = vadd.f32 %v3687, %v3695
    %v3698 = vtanh.pop %v3697
    %3700 = vrot.lane.b32.xlu0 %v3698, 64
    %v3701 = vpop.permute.xlu0 %3700
    %v3703 = vmul.f32 %v3682, %v3701
    %v3704 = vrot.slane %v3624, 2
    %3705 = vrot.lane.b32.xlu0 %v3704, 32
    %v3706 = vpop.permute.xlu0 %3705
    %v3707 = vsel %vm1316, %v3706, 0
    %3709 = vmatpush.msra.mxu0 0.0
    %3710 = vmatpush.msra.mxu0 0.0
    %3711 = vmatpush.msra.mxu0 0.0
    %3712 = vmatpush.msra.mxu0 0.0
    %3713 = vmatpush.msra.mxu0 0.0
    %3714 = vmatpush.msra.mxu0 0.0
    %3715 = vmatpush.msra.mxu0 0.0
    %3716 = vmatpush.msra.mxu0 0.0
    %3717 = vmatpush.msra.mxu0 0.0
    %3718 = vmatpush.msra.mxu0 0.0
    %3719 = vmatpush.msra.mxu0 0.0
    %3720 = vmatpush.msra.mxu0 0.0
    %3721 = vmatpush.msra.mxu0 %v2630
    %3722 = vmatpush.msra.mxu0 %v2629
    %3723 = vmatpush.msra.mxu0 %v2628
    %3724 = vmatpush.msra.mxu0 %v2627
    %3725 = vmatmul.f32.gmra.mxu0 %v3707
    %v3726 = vpop.f32.mrf.mxu0
    %v3727 = vadd.f32 0.0, %v3726
    %3728 = vdwg.mxu0
    %v3729 = vadd.f32 %v2618, %v3727
    %v3730 = vxor.u32 %v3729, 2147483648
    %v3731 = vmul.f32 %v3730, 1.442695
    %v3732 = vpow.pop %v3731
    %v3733 = vadd.f32 %v3732, 1.0
    %v3734 = vrcp.pop %v3733
    %v3735 = vmul.f32 %v3733, %v3734
    %v3736 = vsub.f32 1.0, %v3735
    %v3737 = vmul.f32 %v3734, %v3736
    %v3738 = vadd.f32 %v3734, %v3737
    %vm3739 = vweird.f32 %v3733
    %vm3740 = vweird.f32 %v3734
    %vm3741 = vmor %vm3739, %vm3740
    %v3742 = vsel %vm3741, %v3734, %v3738
    %v3743 = vand.u32 2147483647, %v3733
    %vm3744 = vcmp.eq.f32.partialorder %v3743, 8.507059e+37
    %v3745 = vand.u32 %v3733, 2147483648
    %v3746 = vor.u32 1.1754944e-38, %v3745
    %v3747 = vsel %vm3744, %v3746, %v3742
    %v3748 = vmul.f32 1.0, %v3747
    %v3749 = vtanh.pop %v3729
    %v3751 = vrot.slane %v3618, 2
    %v3753 = vmul.f32 %v3748, %v3751
    %3755 = vrot.lane.b32.xlu0 %v3749, 64
    %v3756 = vpop.permute.xlu0 %3755
    %v3758 = vmul.f32 %v3748, %v3756
    %3760 = vrot.lane.b32.xlu0 %v3758, 32
    %v3761 = vpop.permute.xlu0 %3760
    %v3763 = vadd.f32 %v3753, %v3761
    %v3764 = vtanh.pop %v3763
    %3766 = vrot.lane.b32.xlu0 %v3764, 64
    %v3767 = vpop.permute.xlu0 %3766
    %v3769 = vmul.f32 %v3748, %v3767
    %3771 = vrot.lane.b32.xlu0 %v3703, 32
    %v3772 = vpop.permute.xlu0 %3771
    %3774 = vst.msk [vmem:[#allocation3 + $0x8] sm:$0xc0] %vm1954, %v3772
    %3776 = vrot.lane.b32.xlu0 %v3769, 64
    %v3777 = vpop.permute.xlu0 %3776
    %3779 = vst.msk [vmem:[#allocation3] sm:$0x3] %vm1960, %v3777
    %v3780 = vld [vmem:[#allocation3] sm:$0xff]
    %v3781 = vld [vmem:[#allocation3 + $0x8] sm:$0xff]
    %v3782 = vld [vmem:[#allocation19] sm:$0xff]
    %v3783 = vld [vmem:[#allocation19 + $0x8] sm:$0xff]
    %v3784 = vld [vmem:[#allocation19 + $0x10] sm:$0xff]
    %v3785 = vld [vmem:[#allocation19 + $0x18] sm:$0xff]
    %v3786 = vld [vmem:[#allocation19 + $0x20] sm:$0xff]
    %v3787 = vld [vmem:[#allocation19 + $0x28] sm:$0xff]
    %v3788 = vld [vmem:[#allocation19 + $0x30] sm:$0xff]
    %v3789 = vld [vmem:[#allocation19 + $0x38] sm:$0xff]
    %v3790 = vld [vmem:[%s21] sm:$0x1]
    %v3792 = vperm.slane %v3790, 0
    %v3795 = vsel %vm2558, %v3780, 0
    %v3798 = vsel %vm2558, %v3781, 0
    %3800 = vmatpush.msra.mxu0 0.0
    %3801 = vmatpush.msra.mxu0 0.0
    %3802 = vmatpush.msra.mxu0 0.0
    %3803 = vmatpush.msra.mxu0 0.0
    %3804 = vmatpush.msra.mxu0 0.0
    %3805 = vmatpush.msra.mxu0 0.0
    %3806 = vmatpush.msra.mxu0 0.0
    %3807 = vmatpush.msra.mxu0 0.0
    %3808 = vmatpush.msra.mxu0 %v3789
    %3809 = vmatpush.msra.mxu0 %v3788
    %3810 = vmatpush.msra.mxu0 %v3787
    %3811 = vmatpush.msra.mxu0 %v3786
    %3812 = vmatpush.msra.mxu0 %v3785
    %3813 = vmatpush.msra.mxu0 %v3784
    %3814 = vmatpush.msra.mxu0 %v3783
    %3815 = vmatpush.msra.mxu0 %v3782
    %3816 = vmatmul.f32.gmra.mxu0 %v3795
    %v3817 = vpop.f32.mrf.mxu0
    %v3818 = vadd.f32 %v3792, %v3817
    %3819 = vmatmul.f32.gmra.mxu0 %v3798
    %v3820 = vpop.f32.mrf.mxu0
    %v3821 = vadd.f32 %v3792, %v3820
    %3822 = vdwg.mxu0
    %3823 = vst [vmem:[#allocation21] sm:$0xff] %v3818
    %3824 = vst [vmem:[#allocation21 + $0x8] sm:$0xff] %v3821
    // Predicated region
    $region130: #{forward.1} parent=1 // pred_check
      _
    $region131: #{forward.1} parent=1 // pred_check_branch
      %3826 = sbr.rel (0) target = $region133
    $region132: #{forward.1} parent=1 // pred_region
      %3828 = vsyncadd [#allocation6], 0
      %s3829 = sshll.u32 [#allocation21], 4
      %s3830 = int_to_ptr.vmem [resolvable:$true] %s3829
      %s3831 = sshll.u32 %s22, 4
      %s3832 = int_to_ptr.hbm [resolvable:$true] %s3831
      %3837 = dma.vmem_to_hbm [thread:$0]  %s3830, 256, %s3832, [#allocation6], 128, 128, 8
    $region133: #{forward.1} parent=1 // pred_fallthru
      _
    // Predicated region
    $region134: #{forward.1} parent=1 // pred_check
      _
    $region135: #{forward.1} parent=1 // pred_check_branch
      %3839 = sbr.rel (0) target = $region137
    $region136: #{forward.1} parent=1 // pred_region
      %3841 = dma.done [#allocation6], 256
    $region137: #{forward.1} parent=1 // pred_fallthru
      _
    %3842 = vsyncpa [#allocation5], 1
    %3843 = vsyncpa [#allocation8], 1
    %3844 = vsyncpa [#allocation11], 1
    %3845 = vsyncpa [#allocation14], 1
    %3846 = vsyncpa [#allocation17], 1
    %3847 = vsyncpa [#allocation20], 1
    %3848 = vsyncpa [#allocation6], 1

</llo_original>
